<compile_context>
chip_gen: v7x
topology: tpu7x:2x2x1
jax: 0.10.0
libtpu: 0.0.40
codegen_flags: <defaults>
</compile_context>

<pallas_src>
import functools
import math

import jax
import jax.numpy as jnp
from jax.experimental import pallas as pl
from jax.experimental.pallas import tpu as pltpu


# ----------------------------------------------------------------------------- kernels --

def _attention_core(q, k, v, wo, bo, *, block_batch, q_len, k_len, head_count,
                    dim_per_head, out_dtype):
    """Shared attention core.

    q: (block_batch*q_len, D) — already scaled by 1/sqrt(dim_per_head) via the weights.
    k, v: (block_batch*k_len, D).  Returns (block_batch*q_len, D).
    """
    d = head_count * dim_per_head
    q3 = q.reshape(block_batch, q_len, d)     # leading-dim split only (layout preserving)
    k3 = k.reshape(block_batch, k_len, d)
    v3 = v.reshape(block_batch, k_len, d)

    ctx_heads = []
    for h in range(head_count):               # small static unroll; einsums batch over block_batch
        sl = slice(h * dim_per_head, (h + 1) * dim_per_head)
        # Scores: contract the trailing dh dims directly — no K transpose in-kernel.
        s = jnp.einsum("bqd,bkd->bqk", q3[..., sl], k3[..., sl],
                       preferred_element_type=jnp.float32)          # (bb, Lq, Lk)
        m = jnp.max(s, axis=-1, keepdims=True)
        e = jnp.exp(s - m)
        denom = jnp.sum(e, axis=-1, keepdims=True)
        # Unnormalized context; fold the softmax normalization in AFTER the matmul so the
        # divide touches (Lq, dh) elements instead of (Lq, Lk).  Exact fp32 divide
        # (approximate EUP reciprocal is not accurate enough for the tolerance check).
        ctx = jnp.einsum("bqk,bkd->bqd", e, v3[..., sl],
                         preferred_element_type=jnp.float32)        # (bb, Lq, dh)
        ctx = ctx * (1.0 / denom)
        ctx_heads.append(ctx.reshape(block_batch * q_len, dim_per_head))
        # TODO(synk): attention dropout skipped (eval-mode / deterministic forward).

    context = jnp.concatenate(ctx_heads, axis=-1)                   # unshape(): (rows, D)
    # Final linear. Output stays (rows, D); at D=32 an in-kernel row->lane reshape to a
    # lane-dense slab would cost more (relayout) than the few masked stores it saves.
    out = jnp.dot(context, wo, preferred_element_type=jnp.float32) + bo
    return out.astype(out_dtype)


def _mha_self_kernel(x_ref, wqkv_ref, bqkv_ref, wo_ref, bo_ref, out_ref, *,
                     block_batch, seq_len, head_count, dim_per_head):
    """Self-attention: one input, fused Q|K|V projection."""
    d = head_count * dim_per_head
    x = x_ref[0]                                                    # (bb*L, D)
    qkv = jnp.dot(x, wqkv_ref[...], preferred_element_type=jnp.float32) + bqkv_ref[...]
    q = qkv[:, :d]                                                  # pre-scaled via weights
    k = qkv[:, d:2 * d]
    v = qkv[:, 2 * d:]
    out_ref[0] = _attention_core(
        q, k, v, wo_ref[...], bo_ref[...],
        block_batch=block_batch, q_len=seq_len, k_len=seq_len,
        head_count=head_count, dim_per_head=dim_per_head, out_dtype=out_ref.dtype)


def _mha_cross_kernel(k_ref, v_ref, q_ref,
                      wk_ref, bk_ref, wv_ref, bv_ref, wq_ref, bq_ref, wo_ref, bo_ref,
                      out_ref, *, block_batch, q_len, k_len, head_count, dim_per_head):
    """General key/value/query path (distinct tensors)."""
    k = jnp.dot(k_ref[0], wk_ref[...], preferred_element_type=jnp.float32) + bk_ref[...]
    v = jnp.dot(v_ref[0], wv_ref[...], preferred_element_type=jnp.float32) + bv_ref[...]
    q = jnp.dot(q_ref[0], wq_ref[...], preferred_element_type=jnp.float32) + bq_ref[...]
    out_ref[0] = _attention_core(
        q, k, v, wo_ref[...], bo_ref[...],
        block_batch=block_batch, q_len=q_len, k_len=k_len,
        head_count=head_count, dim_per_head=dim_per_head, out_dtype=out_ref.dtype)


# ---------------------------------------------------------------------------- wrappers --

def _choose_block_batch(batch, seq_len, target_rows=256):
    """Fuse batches so each grid step has a few hundred rows, but keep >=2 grid steps
    when the batch allows (megacore / v7x has 2 TensorCores per chip)."""
    bb = max(1, min(batch, target_rows // max(seq_len, 1)))
    if bb >= batch and batch > 1:
        bb = batch // 2 if batch % 2 == 0 else 1
    while batch % bb:
        bb -= 1
    return bb


def _full(block_shape):
    """BlockSpec for a grid-invariant (replicated) operand."""
    return pl.BlockSpec(block_shape, lambda i, _n=len(block_shape): (0,) * _n)


def _self_attention(x, params, *, head_count):
    b, seq_len, d = x.shape
    dim_per_head = d // head_count
    bb = _choose_block_batch(b, seq_len)
    nb = b // bb
    inv_sqrt = 1.0 / math.sqrt(dim_per_head)

    # Fold the query scale into the weights; pack Q|K|V so the kernel does one projection
    # matmul and the input is DMA'd once per grid step.
    wqkv = jnp.concatenate([params["wq"] * inv_sqrt, params["wk"], params["wv"]], axis=1)
    bqkv = jnp.concatenate([params["bq"] * inv_sqrt, params["bk"], params["bv"]], axis=1)

    x3 = x.reshape(nb, bb * seq_len, d)       # free XLA reshape outside the kernel

    kernel = functools.partial(_mha_self_kernel, block_batch=bb, seq_len=seq_len,
                               head_count=head_count, dim_per_head=dim_per_head)
    io_spec = pl.BlockSpec((1, bb * seq_len, d), lambda i: (i, 0, 0))
    grid_spec = pltpu.PrefetchScalarGridSpec(
        num_scalar_prefetch=0,
        grid=(nb,),
        in_specs=[
            io_spec,                 # x (single DMA of the shared K/V/Q input)
            _full((d, 3 * d)),       # packed Wq|Wk|Wv  (Wq pre-scaled)
            _full((1, 3 * d)),       # packed bq|bk|bv
            _full((d, d)),           # Wo
            _full((1, d)),           # bo
        ],
        out_specs=io_spec,
    )
    out = pl.pallas_call(
        kernel,
        out_shape=jax.ShapeDtypeStruct((nb, bb * seq_len, d), jnp.float32),
        grid_spec=grid_spec,
        compiler_params=pltpu.CompilerParams(dimension_semantics=("parallel",)),
    )(x3, wqkv, bqkv, params["wo"], params["bo"])
    return out.reshape(b, seq_len, d)


def _cross_attention(key, value, query, params, *, head_count):
    b, k_len, d = key.shape
    _, q_len, _ = query.shape
    dim_per_head = d // head_count
    bb = _choose_block_batch(b, max(q_len, k_len))
    nb = b // bb
    inv_sqrt = 1.0 / math.sqrt(dim_per_head)

    k3 = key.reshape(nb, bb * k_len, d)
    v3 = value.reshape(nb, bb * k_len, d)
    q3 = query.reshape(nb, bb * q_len, d)

    kernel = functools.partial(_mha_cross_kernel, block_batch=bb, q_len=q_len,
                               k_len=k_len, head_count=head_count,
                               dim_per_head=dim_per_head)
    kv_spec = pl.BlockSpec((1, bb * k_len, d), lambda i: (i, 0, 0))
    q_spec = pl.BlockSpec((1, bb * q_len, d), lambda i: (i, 0, 0))
    grid_spec = pltpu.PrefetchScalarGridSpec(
        num_scalar_prefetch=0,
        grid=(nb,),
        in_specs=[kv_spec, kv_spec, q_spec,
                  _full((d, d)), _full((1, d)),    # Wk, bk
                  _full((d, d)), _full((1, d)),    # Wv, bv
                  _full((d, d)), _full((1, d)),    # Wq*scale, bq*scale
                  _full((d, d)), _full((1, d))],   # Wo, bo
        out_specs=q_spec,
    )
    out = pl.pallas_call(
        kernel,
        out_shape=jax.ShapeDtypeStruct((nb, bb * q_len, d), jnp.float32),
        grid_spec=grid_spec,
        compiler_params=pltpu.CompilerParams(dimension_semantics=("parallel",)),
    )(k3, v3, q3,
      params["wk"], params["bk"], params["wv"], params["bv"],
      params["wq"] * inv_sqrt, params["bq"] * inv_sqrt,
      params["wo"], params["bo"])
    return out.reshape(b, q_len, d)


def multi_headed_attention(key, value, query, params, *, head_count):
    """key/value: [B, Lk, D], query: [B, Lq, D] float32.  Returns [B, Lq, D].

    Matches MultiHeadedAttention.forward with mask=None, layer_cache=None,
    predefined_graph_1=None, dropout in eval mode, use_final_linear=True.
    """
    assert key.shape == value.shape
    assert key.shape[0] == query.shape[0] and key.shape[2] == query.shape[2]
    assert key.shape[2] % head_count == 0
    if key is value and key is query:       # self-attention fast path (the sort_model path)
        return _self_attention(query, params, head_count=head_count)
    return _cross_attention(key, value, query, params, head_count=head_count)


# --------------------------------------------------------------------------- reference --

def _reference(key, value, query, params, *, head_count):
    """Pure-JAX reference mirroring the PyTorch forward (no mask/cache/dropout)."""
    b, k_len, d = key.shape
    _, q_len, _ = query.shape
    dh = d // head_count

    def lin(x, w, bias):
        return x @ w + bias[0]

    def shape(x, length):
        return x.reshape(b, length, head_count, dh).transpose(0, 2, 1, 3)

    k = shape(lin(key, params["wk"], params["bk"]), k_len)
    v = shape(lin(value, params["wv"], params["bv"]), k_len)
    q = shape(lin(query, params["wq"], params["bq"]), q_len) / math.sqrt(dh)
    scores = jnp.einsum("bhqd,bhkd->bhqk", q, k)
    attn = jax.nn.softmax(scores, axis=-1)
    ctx = jnp.einsum("bhqk,bhkd->bhqd", attn, v)
    ctx = ctx.transpose(0, 2, 1, 3).reshape(b, q_len, d)
    return lin(ctx, params["wo"], params["bo"])


# -------------------------------------------------------------------------------- main --

if __name__ == "__main__":
    D, H = 32, 4
    rng = jax.random.PRNGKey(0)
    ks = jax.random.split(rng, 12)

    scale = 1.0 / math.sqrt(D)
    params = {
        "wk": jax.random.uniform(ks[0], (D, D), jnp.float32, -scale, scale),
        "bk": jax.random.uniform(ks[1], (1, D), jnp.float32, -scale, scale),
        "wv": jax.random.uniform(ks[2], (D, D), jnp.float32, -scale, scale),
        "bv": jax.random.uniform(ks[3], (1, D), jnp.float32, -scale, scale),
        "wq": jax.random.uniform(ks[4], (D, D), jnp.float32, -scale, scale),
        "bq": jax.random.uniform(ks[5], (1, D), jnp.float32, -scale, scale),
        "wo": jax.random.uniform(ks[6], (D, D), jnp.float32, -scale, scale),
        "bo": jax.random.uniform(ks[7], (1, D), jnp.float32, -scale, scale),
    }

    # Tolerance note: the kernel packs Q|K|V and folds the 1/sqrt(dh) scale into the
    # weights (mathematically identical, different fp composition), and the XLA reference
    # uses TPU-default (bf16-class) f32 matmul precision while Mosaic's in-kernel f32
    # matmuls are near-exact.  Worst-case composition drift is a few e-3; structural bugs
    # produce O(1e-1) errors, so 1e-2 remains a meaningful check.
    ATOL = RTOL = 1e-2

    # 1) Self-attention (the path sort_model's TransformerEncoderLayer actually uses).
    B, L = 8, 8
    x = jax.random.normal(ks[8], (B, L, D), jnp.float32)
    out_self = jax.block_until_ready(
        multi_headed_attention(x, x, x, params, head_count=H))
    ref_self = _reference(x, x, x, params, head_count=H)
    assert out_self.shape == (B, L, D)
    assert jnp.allclose(out_self, ref_self, atol=ATOL, rtol=RTOL), "self-attn mismatch"

    # 2) General cross-attention path (distinct key/value/query, Lk != Lq).
    Lk, Lq = 16, 8
    key_in = jax.random.normal(ks[9], (B, Lk, D), jnp.float32)
    value_in = jax.random.normal(ks[10], (B, Lk, D), jnp.float32)
    query_in = jax.random.normal(ks[11], (B, Lq, D), jnp.float32)
    out_x = jax.block_until_ready(
        multi_headed_attention(key_in, value_in, query_in, params, head_count=H))
    ref_x = _reference(key_in, value_in, query_in, params, head_count=H)
    assert out_x.shape == (B, Lq, D)
    assert jnp.allclose(out_x, ref_x, atol=ATOL, rtol=RTOL), "cross-attn mismatch"

    print("KERNEL_OK")
</pallas_src>

<mosaic_0001>
module attributes {stable_mosaic.version = 11 : i64} {
  func.func @_mha_self_kernel(%arg0: i32, %arg1: memref<1x32x32xf32, #tpu.memory_space<vmem>>, %arg2: memref<32x96xf32, #tpu.memory_space<vmem>>, %arg3: memref<1x96xf32, #tpu.memory_space<vmem>>, %arg4: memref<32x32xf32, #tpu.memory_space<vmem>>, %arg5: memref<1x32xf32, #tpu.memory_space<vmem>>, %arg6: memref<1x32x32xf32, #tpu.memory_space<vmem>>) attributes {dimension_semantics = [#tpu.dimension_semantics<parallel>], iteration_bounds = array<i64: 2>, scalar_prefetch = 0 : i64, scratch_operands = 0 : i64, tpu.core_type = #tpu.core_type<tc>, window_params = [{transform_indices = @transform_0, window_bounds = array<i64: 1, 32, 32>}, {pipeline_mode = #tpu.pipeline_mode<synchronous>, transform_indices = @transform_1, window_bounds = array<i64: 32, 96>}, {pipeline_mode = #tpu.pipeline_mode<synchronous>, transform_indices = @transform_2, window_bounds = array<i64: 1, 96>}, {pipeline_mode = #tpu.pipeline_mode<synchronous>, transform_indices = @transform_3, window_bounds = array<i64: 32, 32>}, {pipeline_mode = #tpu.pipeline_mode<synchronous>, transform_indices = @transform_4, window_bounds = array<i64: 1, 32>}, {transform_indices = @transform_5, window_bounds = array<i64: 1, 32, 32>}]} {
    %c0 = arith.constant 0 : index
    %c0_0 = arith.constant 0 : index
    %c0_1 = arith.constant 0 : index
    %0 = vector.load %arg1[%c0, %c0_0, %c0_1] : memref<1x32x32xf32, #tpu.memory_space<vmem>>, vector<1x32x32xf32>
    %1 = vector.shape_cast %0 : vector<1x32x32xf32> to vector<32x32xf32>
    %c0_2 = arith.constant 0 : index
    %c0_3 = arith.constant 0 : index
    %2 = vector.load %arg2[%c0_2, %c0_3] : memref<32x96xf32, #tpu.memory_space<vmem>>, vector<32x96xf32>
    %cst = arith.constant dense<0.000000e+00> : vector<32x96xf32>
    %3 = tpu.matmul %1, %2, %cst {dimension_numbers = #tpu.dot_dimension_numbers<[1], [0], [0], [1], [0, 0, 1, 1], [], []>} : vector<32x32xf32>, vector<32x96xf32>, vector<32x96xf32> -> vector<32x96xf32>
    %c0_4 = arith.constant 0 : index
    %c0_5 = arith.constant 0 : index
    %4 = vector.load %arg3[%c0_4, %c0_5] : memref<1x96xf32, #tpu.memory_space<vmem>>, vector<1x96xf32>
    %5 = vector.broadcast %4 : vector<1x96xf32> to vector<32x96xf32>
    %6 = arith.addf %3, %5 : vector<32x96xf32>
    %7 = vector.extract_strided_slice %6 {offsets = [0, 0], sizes = [32, 32], strides = [1, 1]} : vector<32x96xf32> to vector<32x32xf32>
    %8 = vector.extract_strided_slice %6 {offsets = [0, 32], sizes = [32, 32], strides = [1, 1]} : vector<32x96xf32> to vector<32x32xf32>
    %9 = vector.extract_strided_slice %6 {offsets = [0, 64], sizes = [32, 32], strides = [1, 1]} : vector<32x96xf32> to vector<32x32xf32>
    %c0_6 = arith.constant 0 : index
    %c0_7 = arith.constant 0 : index
    %10 = vector.load %arg4[%c0_6, %c0_7] : memref<32x32xf32, #tpu.memory_space<vmem>>, vector<32x32xf32>
    %c0_8 = arith.constant 0 : index
    %c0_9 = arith.constant 0 : index
    %11 = vector.load %arg5[%c0_8, %c0_9] : memref<1x32xf32, #tpu.memory_space<vmem>>, vector<1x32xf32>
    %12 = vector.shape_cast %7 : vector<32x32xf32> to vector<4x8x32xf32>
    %13 = vector.shape_cast %8 : vector<32x32xf32> to vector<4x8x32xf32>
    %14 = vector.shape_cast %9 : vector<32x32xf32> to vector<4x8x32xf32>
    %15 = vector.extract_strided_slice %12 {offsets = [0, 0, 0], sizes = [4, 8, 8], strides = [1, 1, 1]} : vector<4x8x32xf32> to vector<4x8x8xf32>
    %16 = vector.extract_strided_slice %13 {offsets = [0, 0, 0], sizes = [4, 8, 8], strides = [1, 1, 1]} : vector<4x8x32xf32> to vector<4x8x8xf32>
    "tpu.trace_start"() <{level = 10 : i32, message = "bqd,bkd->bqk"}> : () -> ()
    %cst_10 = arith.constant dense<0.000000e+00> : vector<4x8x8xf32>
    %17 = tpu.matmul %15, %16, %cst_10 {dimension_numbers = #tpu.dot_dimension_numbers<[2], [2], [1], [1], [0, 0, 0, 1, 1, 1], [0], [0]>} : vector<4x8x8xf32>, vector<4x8x8xf32>, vector<4x8x8xf32> -> vector<4x8x8xf32>
    "tpu.trace_stop"() : () -> ()
    %cst_11 = arith.constant dense<0xFF800000> : vector<4x8xf32>
    %18 = vector.multi_reduction <maximumf>, %17, %cst_11 [2] : vector<4x8x8xf32> to vector<4x8xf32>
    %19 = vector.shape_cast %18 : vector<4x8xf32> to vector<4x8x1xf32>
    %20 = vector.broadcast %19 : vector<4x8x1xf32> to vector<4x8x8xf32>
    %21 = arith.subf %17, %20 : vector<4x8x8xf32>
    %22 = math.exp %21 : vector<4x8x8xf32>
    %cst_12 = arith.constant dense<0.000000e+00> : vector<4x8xf32>
    %23 = vector.multi_reduction <add>, %22, %cst_12 [2] : vector<4x8x8xf32> to vector<4x8xf32>
    %24 = vector.shape_cast %23 : vector<4x8xf32> to vector<4x8x1xf32>
    %25 = vector.extract_strided_slice %14 {offsets = [0, 0, 0], sizes = [4, 8, 8], strides = [1, 1, 1]} : vector<4x8x32xf32> to vector<4x8x8xf32>
    "tpu.trace_start"() <{level = 10 : i32, message = "bqk,bkd->bqd"}> : () -> ()
    %cst_13 = arith.constant dense<0.000000e+00> : vector<4x8x8xf32>
    %26 = tpu.matmul %22, %25, %cst_13 {dimension_numbers = #tpu.dot_dimension_numbers<[2], [1], [1], [2], [0, 0, 0, 1, 1, 2], [0], [0]>} : vector<4x8x8xf32>, vector<4x8x8xf32>, vector<4x8x8xf32> -> vector<4x8x8xf32>
    "tpu.trace_stop"() : () -> ()
    %cst_14 = arith.constant 1.000000e+00 : f32
    %27 = vector.broadcast %cst_14 : f32 to vector<4x8x1xf32>
    %28 = arith.divf %27, %24 : vector<4x8x1xf32>
    %29 = vector.broadcast %28 : vector<4x8x1xf32> to vector<4x8x8xf32>
    %30 = arith.mulf %26, %29 : vector<4x8x8xf32>
    %31 = vector.shape_cast %30 : vector<4x8x8xf32> to vector<32x8xf32>
    %32 = vector.extract_strided_slice %12 {offsets = [0, 0, 8], sizes = [4, 8, 8], strides = [1, 1, 1]} : vector<4x8x32xf32> to vector<4x8x8xf32>
    %33 = vector.extract_strided_slice %13 {offsets = [0, 0, 8], sizes = [4, 8, 8], strides = [1, 1, 1]} : vector<4x8x32xf32> to vector<4x8x8xf32>
    "tpu.trace_start"() <{level = 10 : i32, message = "bqd,bkd->bqk"}> : () -> ()
    %cst_15 = arith.constant dense<0.000000e+00> : vector<4x8x8xf32>
    %34 = tpu.matmul %32, %33, %cst_15 {dimension_numbers = #tpu.dot_dimension_numbers<[2], [2], [1], [1], [0, 0, 0, 1, 1, 1], [0], [0]>} : vector<4x8x8xf32>, vector<4x8x8xf32>, vector<4x8x8xf32> -> vector<4x8x8xf32>
    "tpu.trace_stop"() : () -> ()
    %cst_16 = arith.constant dense<0xFF800000> : vector<4x8xf32>
    %35 = vector.multi_reduction <maximumf>, %34, %cst_16 [2] : vector<4x8x8xf32> to vector<4x8xf32>
    %36 = vector.shape_cast %35 : vector<4x8xf32> to vector<4x8x1xf32>
    %37 = vector.broadcast %36 : vector<4x8x1xf32> to vector<4x8x8xf32>
    %38 = arith.subf %34, %37 : vector<4x8x8xf32>
    %39 = math.exp %38 : vector<4x8x8xf32>
    %cst_17 = arith.constant dense<0.000000e+00> : vector<4x8xf32>
    %40 = vector.multi_reduction <add>, %39, %cst_17 [2] : vector<4x8x8xf32> to vector<4x8xf32>
    %41 = vector.shape_cast %40 : vector<4x8xf32> to vector<4x8x1xf32>
    %42 = vector.extract_strided_slice %14 {offsets = [0, 0, 8], sizes = [4, 8, 8], strides = [1, 1, 1]} : vector<4x8x32xf32> to vector<4x8x8xf32>
    "tpu.trace_start"() <{level = 10 : i32, message = "bqk,bkd->bqd"}> : () -> ()
    %cst_18 = arith.constant dense<0.000000e+00> : vector<4x8x8xf32>
    %43 = tpu.matmul %39, %42, %cst_18 {dimension_numbers = #tpu.dot_dimension_numbers<[2], [1], [1], [2], [0, 0, 0, 1, 1, 2], [0], [0]>} : vector<4x8x8xf32>, vector<4x8x8xf32>, vector<4x8x8xf32> -> vector<4x8x8xf32>
    "tpu.trace_stop"() : () -> ()
    %cst_19 = arith.constant 1.000000e+00 : f32
    %44 = vector.broadcast %cst_19 : f32 to vector<4x8x1xf32>
    %45 = arith.divf %44, %41 : vector<4x8x1xf32>
    %46 = vector.broadcast %45 : vector<4x8x1xf32> to vector<4x8x8xf32>
    %47 = arith.mulf %43, %46 : vector<4x8x8xf32>
    %48 = vector.shape_cast %47 : vector<4x8x8xf32> to vector<32x8xf32>
    %49 = vector.extract_strided_slice %12 {offsets = [0, 0, 16], sizes = [4, 8, 8], strides = [1, 1, 1]} : vector<4x8x32xf32> to vector<4x8x8xf32>
    %50 = vector.extract_strided_slice %13 {offsets = [0, 0, 16], sizes = [4, 8, 8], strides = [1, 1, 1]} : vector<4x8x32xf32> to vector<4x8x8xf32>
    "tpu.trace_start"() <{level = 10 : i32, message = "bqd,bkd->bqk"}> : () -> ()
    %cst_20 = arith.constant dense<0.000000e+00> : vector<4x8x8xf32>
    %51 = tpu.matmul %49, %50, %cst_20 {dimension_numbers = #tpu.dot_dimension_numbers<[2], [2], [1], [1], [0, 0, 0, 1, 1, 1], [0], [0]>} : vector<4x8x8xf32>, vector<4x8x8xf32>, vector<4x8x8xf32> -> vector<4x8x8xf32>
    "tpu.trace_stop"() : () -> ()
    %cst_21 = arith.constant dense<0xFF800000> : vector<4x8xf32>
    %52 = vector.multi_reduction <maximumf>, %51, %cst_21 [2] : vector<4x8x8xf32> to vector<4x8xf32>
    %53 = vector.shape_cast %52 : vector<4x8xf32> to vector<4x8x1xf32>
    %54 = vector.broadcast %53 : vector<4x8x1xf32> to vector<4x8x8xf32>
    %55 = arith.subf %51, %54 : vector<4x8x8xf32>
    %56 = math.exp %55 : vector<4x8x8xf32>
    %cst_22 = arith.constant dense<0.000000e+00> : vector<4x8xf32>
    %57 = vector.multi_reduction <add>, %56, %cst_22 [2] : vector<4x8x8xf32> to vector<4x8xf32>
    %58 = vector.shape_cast %57 : vector<4x8xf32> to vector<4x8x1xf32>
    %59 = vector.extract_strided_slice %14 {offsets = [0, 0, 16], sizes = [4, 8, 8], strides = [1, 1, 1]} : vector<4x8x32xf32> to vector<4x8x8xf32>
    "tpu.trace_start"() <{level = 10 : i32, message = "bqk,bkd->bqd"}> : () -> ()
    %cst_23 = arith.constant dense<0.000000e+00> : vector<4x8x8xf32>
    %60 = tpu.matmul %56, %59, %cst_23 {dimension_numbers = #tpu.dot_dimension_numbers<[2], [1], [1], [2], [0, 0, 0, 1, 1, 2], [0], [0]>} : vector<4x8x8xf32>, vector<4x8x8xf32>, vector<4x8x8xf32> -> vector<4x8x8xf32>
    "tpu.trace_stop"() : () -> ()
    %cst_24 = arith.constant 1.000000e+00 : f32
    %61 = vector.broadcast %cst_24 : f32 to vector<4x8x1xf32>
    %62 = arith.divf %61, %58 : vector<4x8x1xf32>
    %63 = vector.broadcast %62 : vector<4x8x1xf32> to vector<4x8x8xf32>
    %64 = arith.mulf %60, %63 : vector<4x8x8xf32>
    %65 = vector.shape_cast %64 : vector<4x8x8xf32> to vector<32x8xf32>
    %66 = vector.extract_strided_slice %12 {offsets = [0, 0, 24], sizes = [4, 8, 8], strides = [1, 1, 1]} : vector<4x8x32xf32> to vector<4x8x8xf32>
    %67 = vector.extract_strided_slice %13 {offsets = [0, 0, 24], sizes = [4, 8, 8], strides = [1, 1, 1]} : vector<4x8x32xf32> to vector<4x8x8xf32>
    "tpu.trace_start"() <{level = 10 : i32, message = "bqd,bkd->bqk"}> : () -> ()
    %cst_25 = arith.constant dense<0.000000e+00> : vector<4x8x8xf32>
    %68 = tpu.matmul %66, %67, %cst_25 {dimension_numbers = #tpu.dot_dimension_numbers<[2], [2], [1], [1], [0, 0, 0, 1, 1, 1], [0], [0]>} : vector<4x8x8xf32>, vector<4x8x8xf32>, vector<4x8x8xf32> -> vector<4x8x8xf32>
    "tpu.trace_stop"() : () -> ()
    %cst_26 = arith.constant dense<0xFF800000> : vector<4x8xf32>
    %69 = vector.multi_reduction <maximumf>, %68, %cst_26 [2] : vector<4x8x8xf32> to vector<4x8xf32>
    %70 = vector.shape_cast %69 : vector<4x8xf32> to vector<4x8x1xf32>
    %71 = vector.broadcast %70 : vector<4x8x1xf32> to vector<4x8x8xf32>
    %72 = arith.subf %68, %71 : vector<4x8x8xf32>
    %73 = math.exp %72 : vector<4x8x8xf32>
    %cst_27 = arith.constant dense<0.000000e+00> : vector<4x8xf32>
    %74 = vector.multi_reduction <add>, %73, %cst_27 [2] : vector<4x8x8xf32> to vector<4x8xf32>
    %75 = vector.shape_cast %74 : vector<4x8xf32> to vector<4x8x1xf32>
    %76 = vector.extract_strided_slice %14 {offsets = [0, 0, 24], sizes = [4, 8, 8], strides = [1, 1, 1]} : vector<4x8x32xf32> to vector<4x8x8xf32>
    "tpu.trace_start"() <{level = 10 : i32, message = "bqk,bkd->bqd"}> : () -> ()
    %cst_28 = arith.constant dense<0.000000e+00> : vector<4x8x8xf32>
    %77 = tpu.matmul %73, %76, %cst_28 {dimension_numbers = #tpu.dot_dimension_numbers<[2], [1], [1], [2], [0, 0, 0, 1, 1, 2], [0], [0]>} : vector<4x8x8xf32>, vector<4x8x8xf32>, vector<4x8x8xf32> -> vector<4x8x8xf32>
    "tpu.trace_stop"() : () -> ()
    %cst_29 = arith.constant 1.000000e+00 : f32
    %78 = vector.broadcast %cst_29 : f32 to vector<4x8x1xf32>
    %79 = arith.divf %78, %75 : vector<4x8x1xf32>
    %80 = vector.broadcast %79 : vector<4x8x1xf32> to vector<4x8x8xf32>
    %81 = arith.mulf %77, %80 : vector<4x8x8xf32>
    %82 = vector.shape_cast %81 : vector<4x8x8xf32> to vector<32x8xf32>
    %83 = tpu.concatenate %31, %48, %65, %82 in 1 : vector<32x8xf32>, vector<32x8xf32>, vector<32x8xf32>, vector<32x8xf32> -> vector<32x32xf32>
    %cst_30 = arith.constant dense<0.000000e+00> : vector<32x32xf32>
    %84 = tpu.matmul %83, %10, %cst_30 {dimension_numbers = #tpu.dot_dimension_numbers<[1], [0], [0], [1], [0, 0, 1, 1], [], []>} : vector<32x32xf32>, vector<32x32xf32>, vector<32x32xf32> -> vector<32x32xf32>
    %85 = vector.broadcast %11 : vector<1x32xf32> to vector<32x32xf32>
    %86 = arith.addf %84, %85 : vector<32x32xf32>
    %c0_31 = arith.constant 0 : index
    %c0_32 = arith.constant 0 : index
    %c0_33 = arith.constant 0 : index
    %87 = vector.load %arg6[%c0_31, %c0_32, %c0_33] : memref<1x32x32xf32, #tpu.memory_space<vmem>>, vector<1x32x32xf32>
    %88 = vector.shape_cast %87 : vector<1x32x32xf32> to vector<32x32xf32>
    %89 = vector.shape_cast %86 : vector<32x32xf32> to vector<1x32x32xf32>
    tpu.vector_store %arg6[%c0_31, %c0_32, %c0_33], %89 {strides = array<i32>} : memref<1x32x32xf32, #tpu.memory_space<vmem>>, vector<1x32x32xf32>,
    return
  }
  func.func @transform_0(%arg0: i32) -> (i32, i32, i32) {
    %c0_i32 = arith.constant 0 : i32
    %c0_i32_0 = arith.constant 0 : i32
    %c0_i32_1 = arith.constant 0 : i32
    return %arg0, %c0_i32, %c0_i32_0 : i32, i32, i32
  }
  func.func @transform_1(%arg0: i32) -> (i32, i32) {
    %c0_i32 = arith.constant 0 : i32
    %c0_i32_0 = arith.constant 0 : i32
    %c0_i32_1 = arith.constant 0 : i32
    return %c0_i32, %c0_i32_0 : i32, i32
  }
  func.func @transform_2(%arg0: i32) -> (i32, i32) {
    %c0_i32 = arith.constant 0 : i32
    %c0_i32_0 = arith.constant 0 : i32
    %c0_i32_1 = arith.constant 0 : i32
    return %c0_i32, %c0_i32_0 : i32, i32
  }
  func.func @transform_3(%arg0: i32) -> (i32, i32) {
    %c0_i32 = arith.constant 0 : i32
    %c0_i32_0 = arith.constant 0 : i32
    %c0_i32_1 = arith.constant 0 : i32
    return %c0_i32, %c0_i32_0 : i32, i32
  }
  func.func @transform_4(%arg0: i32) -> (i32, i32) {
    %c0_i32 = arith.constant 0 : i32
    %c0_i32_0 = arith.constant 0 : i32
    %c0_i32_1 = arith.constant 0 : i32
    return %c0_i32, %c0_i32_0 : i32, i32
  }
  func.func @transform_5(%arg0: i32) -> (i32, i32, i32) {
    %c0_i32 = arith.constant 0 : i32
    %c0_i32_0 = arith.constant 0 : i32
    %c0_i32_1 = arith.constant 0 : i32
    return %arg0, %c0_i32, %c0_i32_0 : i32, i32, i32
  }
}

</mosaic_0001>

<llo_original>
// kernel: tpu_custom_call.1
$region0: #{tpu_custom_call.1}
  #allocation0 [shape = 'u32[]', space=smem, size = 0x4, offset = 0x4, fixed_abs, tag = 'smem constant byte address 0x4 - core index']
  #allocation1 [shape = 'u32[144,128]{1,0:T(1,128)}', space=vmem, size = 0x12000, scoped, tag = 'internal scratch']
  %s0 = inlined_call_operand.hbm [shape: f32[2,32,32], index: 0, kind: input, shape index: {}]
  %s1 = inlined_call_operand.hbm [shape: f32[32,96], index: 1, kind: input, shape index: {}]
  %s2 = inlined_call_operand.vmem [shape: f32[1,96], index: 2, kind: input, shape index: {}]
  %s3 = inlined_call_operand.hbm [shape: f32[32,32], index: 3, kind: input, shape index: {}]
  %s4 = inlined_call_operand.vmem [shape: f32[1,32], index: 4, kind: input, shape index: {}]
  %s5 = inlined_call_operand.hbm [shape: f32[2,32,32], index: 5, kind: output, shape index: {}]
  %s6 = sld [smem:[#allocation0]]
  $region65: #{tpu_custom_call.1} parent=0
    _
  %s8 = ssub.s32 1, %s6
  %s9 = scalar_select 0, %s8, %s6
  $region1: #{tpu_custom_call.1} parent=0
    #allocation2 [shape = 'u8[32768]{0}', space=vmem, size = 0x8000, scoped, tag = 'input window, operand 0']
    #allocation3 [shape = 's32[2]{0}', space=sflag, size = 0x8, scoped, tag = 'scoped memory for tpu_custom_call.1']
    #allocation4 [shape = 's32[2]{0}', space=sflag, size = 0x8, scoped, tag = 'scoped memory for tpu_custom_call.1']
    #allocation5 [shape = 'u8[16384]{0}', space=vmem, size = 0x4000, scoped, tag = 'input window, operand 1, single buffered']
    #allocation6 [shape = 's32[1]{0}', space=sflag, size = 0x4, scoped, tag = 'scoped memory for tpu_custom_call.1']
    #allocation7 [shape = 'u8[16384]{0}', space=vmem, size = 0x4000, scoped, tag = 'input window, operand 3, single buffered']
    #allocation8 [shape = 'u8[32768]{0}', space=vmem, size = 0x8000, scoped, tag = 'output window, operand 0']
    %10 = vsyncpa [#allocation3], 0
    %s11 = scalar_lea.sflag [#allocation3], 1
    %12 = vsyncpa %s11, 0
    %13 = vsyncpa [#allocation6], 0
    %14 = vsyncpa [#allocation4], 0
    %s15 = scalar_lea.sflag [#allocation4], 1
    %16 = vsyncpa %s15, 0
    loop: start=0, step=1, limit=4
    $region2: #{tpu_custom_call.1} parent=1 // loop_pre_header
      _
    $region3: #{tpu_custom_call.1} parent=1 // loop_header
      %s18 = sphi 0, %s22
      %p19 = scmp.ge.s32.totalorder %s18, 4
      %s28 = sphi 0, %s30
      %s31 = sphi 0, %s28
      %s32 = sphi 0, %s31
      %s48 = sphi 0, %s32
      %s52 = sphi 0, %s52
      %s54 = sphi 0, %s52
      %s55 = sphi 0, %s54
      %s69 = sphi 0, %s55
      %s73 = sphi 0, %s73
      %s75 = sphi 0, %s73
      %s76 = sphi 0, %s75
      %s90 = sphi 0, %s76
      %s94 = sphi 0, %s94
      %s96 = sphi 0, %s94
      %s97 = sphi 0, %s96
      %s111 = sphi 0, %s97
      %s115 = sphi 0, %s115
      %s117 = sphi 0, %s115
      %s118 = sphi 0, %s117
      %s132 = sphi 0, %s118
      %s138 = sphi 0, %s140
      %s141 = sphi 0, %s138
      %s142 = sphi 0, %s141
      %s158 = sphi 0, %s142
    $region4: #{tpu_custom_call.1} parent=1 // loop_header_branch
      %21 = sbr.rel (%p19) target = $region8
    $region5: #{tpu_custom_call.1} parent=1 // loop_body
      %s23 = ssub.s32 %s18, 1
      %s24 = ssub.s32 %s18, 2
      %s25 = sadd.s32 %s18, 1
      %s26 = ssub.s32 %s18, %s25
      %p27 = scmp.eq.s32.totalorder %s26, 0
      %s29 = sadd.s32 %s28, 1
      %s30 = scalar_select %p27, %s28, %s29
      %p33 = pneg %p27
      %p34 = scmp.eq.s32.totalorder %s18, 1
      %p35 = por %p33, %p34
      %p36 = scmp.ne.s32.totalorder %s28, %s31
      %p37 = scmp.eq.s32.totalorder %s18, 0
      %p38 = por %p36, %p37
      %p39 = scmp.ne.s32.totalorder %s28, %s31
      %p40 = scmp.eq.s32.totalorder %s23, 1
      %p41 = por %p39, %p40
      %p42 = scmp.ne.s32.totalorder %s31, %s32
      %p43 = scmp.eq.s32.totalorder %s23, 0
      %p44 = por %p42, %p43
      %p45 = scmp.ne.s32.totalorder %s31, %s32
      %p46 = scmp.eq.s32.totalorder %s24, 1
      %p47 = por %p45, %p46
      %p49 = scmp.ne.s32.totalorder %s32, %s48
      %p50 = scmp.eq.s32.totalorder %s24, 0
      %p51 = por %p49, %p50
      %s53 = sadd.s32 %s52, 1
      %p56 = scmp.eq.s32.totalorder %s18, 1
      %p57 = scmp.ne.s32.totalorder %s52, %s54
      %p58 = scmp.eq.s32.totalorder %s18, 0
      %p59 = por %p57, %p58
      %p60 = scmp.ne.s32.totalorder %s52, %s54
      %p61 = scmp.eq.s32.totalorder %s23, 1
      %p62 = por %p60, %p61
      %p63 = scmp.ne.s32.totalorder %s54, %s55
      %p64 = scmp.eq.s32.totalorder %s23, 0
      %p65 = por %p63, %p64
      %p66 = scmp.ne.s32.totalorder %s54, %s55
      %p67 = scmp.eq.s32.totalorder %s24, 1
      %p68 = por %p66, %p67
      %p70 = scmp.ne.s32.totalorder %s55, %s69
      %p71 = scmp.eq.s32.totalorder %s24, 0
      %p72 = por %p70, %p71
      %s74 = sadd.s32 %s73, 1
      %p77 = scmp.eq.s32.totalorder %s18, 1
      %p78 = scmp.ne.s32.totalorder %s73, %s75
      %p79 = scmp.eq.s32.totalorder %s18, 0
      %p80 = por %p78, %p79
      %p81 = scmp.ne.s32.totalorder %s73, %s75
      %p82 = scmp.eq.s32.totalorder %s23, 1
      %p83 = por %p81, %p82
      %p84 = scmp.ne.s32.totalorder %s75, %s76
      %p85 = scmp.eq.s32.totalorder %s23, 0
      %p86 = por %p84, %p85
      %p87 = scmp.ne.s32.totalorder %s75, %s76
      %p88 = scmp.eq.s32.totalorder %s24, 1
      %p89 = por %p87, %p88
      %p91 = scmp.ne.s32.totalorder %s76, %s90
      %p92 = scmp.eq.s32.totalorder %s24, 0
      %p93 = por %p91, %p92
      %s95 = sadd.s32 %s94, 1
      %p98 = scmp.eq.s32.totalorder %s18, 1
      %p99 = scmp.ne.s32.totalorder %s94, %s96
      %p100 = scmp.eq.s32.totalorder %s18, 0
      %p101 = por %p99, %p100
      %p102 = scmp.ne.s32.totalorder %s94, %s96
      %p103 = scmp.eq.s32.totalorder %s23, 1
      %p104 = por %p102, %p103
      %p105 = scmp.ne.s32.totalorder %s96, %s97
      %p106 = scmp.eq.s32.totalorder %s23, 0
      %p107 = por %p105, %p106
      %p108 = scmp.ne.s32.totalorder %s96, %s97
      %p109 = scmp.eq.s32.totalorder %s24, 1
      %p110 = por %p108, %p109
      %p112 = scmp.ne.s32.totalorder %s97, %s111
      %p113 = scmp.eq.s32.totalorder %s24, 0
      %p114 = por %p112, %p113
      %s116 = sadd.s32 %s115, 1
      %p119 = scmp.eq.s32.totalorder %s18, 1
      %p120 = scmp.ne.s32.totalorder %s115, %s117
      %p121 = scmp.eq.s32.totalorder %s18, 0
      %p122 = por %p120, %p121
      %p123 = scmp.ne.s32.totalorder %s115, %s117
      %p124 = scmp.eq.s32.totalorder %s23, 1
      %p125 = por %p123, %p124
      %p126 = scmp.ne.s32.totalorder %s117, %s118
      %p127 = scmp.eq.s32.totalorder %s23, 0
      %p128 = por %p126, %p127
      %p129 = scmp.ne.s32.totalorder %s117, %s118
      %p130 = scmp.eq.s32.totalorder %s24, 1
      %p131 = por %p129, %p130
      %p133 = scmp.ne.s32.totalorder %s118, %s132
      %p134 = scmp.eq.s32.totalorder %s24, 0
      %p135 = por %p133, %p134
      %s136 = ssub.s32 %s18, %s25
      %p137 = scmp.eq.s32.totalorder %s136, 0
      %s139 = sadd.s32 %s138, 1
      %s140 = scalar_select %p137, %s138, %s139
      %p143 = pneg %p137
      %p144 = scmp.eq.s32.totalorder %s18, 1
      %p145 = por %p143, %p144
      %p146 = scmp.ne.s32.totalorder %s138, %s141
      %p147 = scmp.eq.s32.totalorder %s18, 0
      %p148 = por %p146, %p147
      %p149 = scmp.ne.s32.totalorder %s138, %s141
      %p150 = scmp.eq.s32.totalorder %s23, 1
      %p151 = por %p149, %p150
      %p152 = scmp.ne.s32.totalorder %s141, %s142
      %p153 = scmp.eq.s32.totalorder %s23, 0
      %p154 = por %p152, %p153
      %p155 = scmp.ne.s32.totalorder %s141, %s142
      %p156 = scmp.eq.s32.totalorder %s24, 1
      %p157 = por %p155, %p156
      %p159 = scmp.ne.s32.totalorder %s142, %s158
      %p160 = scmp.eq.s32.totalorder %s24, 0
      %p161 = por %p159, %p160
      %p162 = scmp.le.s32.totalorder 1, %s18
      %p163 = scmp.lt.s32.totalorder %s18, 3
      %p164 = pnand %p162, %p163
      %p165 = pneg %p164
      // Predicated region
      $region9: #{tpu_custom_call.1} parent=5 // pred_check
        _
      $region10: #{tpu_custom_call.1} parent=5 // pred_check_branch
        %167 = sbr.rel (%p164) target = $region12
      $region11: #{tpu_custom_call.1} parent=5 // pred_region
        %s168 = ssub.s32 %s18, 1
        // Predicated region
        $region13: #{tpu_custom_call.1} parent=11 // pred_check
          %p169 = pneg %p65
        $region14: #{tpu_custom_call.1} parent=11 // pred_check_branch
          %171 = sbr.rel (%p169) target = $region16
        $region15: #{tpu_custom_call.1} parent=11 // pred_region
          %s173 = ssub.s32 512, 512
          %174 = vsyncadd [#allocation6], %s173
          %s175 = sshll.u32 [#allocation5], 4
          %s176 = int_to_ptr.vmem [resolvable:$true] %s175
          %181 = dma.hbm_to_vmem [thread:$0]  %s1, 512, %s176, [#allocation6], 128, 128, 8
        $region16: #{tpu_custom_call.1} parent=11 // pred_fallthru
          _
        // Predicated region
        $region17: #{tpu_custom_call.1} parent=11 // pred_check
          %p182 = pneg %p86
        $region18: #{tpu_custom_call.1} parent=11 // pred_check_branch
          %184 = sbr.rel (%p182) target = $region20
        $region19: #{tpu_custom_call.1} parent=11 // pred_region
          _
        $region20: #{tpu_custom_call.1} parent=11 // pred_fallthru
          _
        // Predicated region
        $region21: #{tpu_custom_call.1} parent=11 // pred_check
          %p185 = pneg %p107
        $region22: #{tpu_custom_call.1} parent=11 // pred_check_branch
          %187 = sbr.rel (%p185) target = $region24
        $region23: #{tpu_custom_call.1} parent=11 // pred_region
          %s189 = ssub.s32 512, 512
          %190 = vsyncadd [#allocation6], %s189
          %s191 = sshll.u32 [#allocation7], 4
          %s192 = int_to_ptr.vmem [resolvable:$true] %s191
          %197 = dma.hbm_to_vmem [thread:$0]  %s3, 512, %s192, [#allocation6], 128, 128, 8
        $region24: #{tpu_custom_call.1} parent=11 // pred_fallthru
          _
        // Predicated region
        $region25: #{tpu_custom_call.1} parent=11 // pred_check
          %p198 = pneg %p128
        $region26: #{tpu_custom_call.1} parent=11 // pred_check_branch
          %200 = sbr.rel (%p198) target = $region28
        $region27: #{tpu_custom_call.1} parent=11 // pred_region
          _
        $region28: #{tpu_custom_call.1} parent=11 // pred_fallthru
          _
      $region12: #{tpu_custom_call.1} parent=5 // pred_fallthru
        _
      %p201 = scmp.lt.s32.totalorder %s18, 2
      // Predicated region
      $region29: #{tpu_custom_call.1} parent=5 // pred_check
        %p202 = pneg %p201
      $region30: #{tpu_custom_call.1} parent=5 // pred_check_branch
        %204 = sbr.rel (%p202) target = $region32
      $region31: #{tpu_custom_call.1} parent=5 // pred_region
        // Predicated region
        $region33: #{tpu_custom_call.1} parent=31 // pred_check
          %p205 = pneg %p38
        $region34: #{tpu_custom_call.1} parent=31 // pred_check_branch
          %207 = sbr.rel (%p205) target = $region36
        $region35: #{tpu_custom_call.1} parent=31 // pred_region
          %s208 = sand.u32 %s28, 1
          %s209 = scalar_lea.sflag [#allocation3], %s208
          %s210 = sand.u32 %s28, 1
          %s211 = smul.addr %s210, 32
          %s212 = scalar_lea.vmem [#allocation2], %s211
          %s214 = ssub.s32 512, 512
          %215 = vsyncadd %s209, %s214
          %s216 = smul.addr %s18, 4
          %s217 = smul.addr %s216, 128
          %s218 = scalar_lea.hbm %s0, %s217
          %s219 = sshll.u32 %s212, 4
          %s220 = int_to_ptr.vmem [resolvable:$true] %s219
          %225 = dma.hbm_to_vmem [thread:$0]  %s218, 512, %s220, %s209, 128, 128, 8
        $region36: #{tpu_custom_call.1} parent=31 // pred_fallthru
          _
      $region32: #{tpu_custom_call.1} parent=5 // pred_fallthru
        _
      %p226 = scmp.le.s32.totalorder 1, %s18
      %p227 = scmp.lt.s32.totalorder %s18, 3
      %p228 = pnand %p226, %p227
      %p229 = pneg %p228
      // Predicated region
      $region37: #{tpu_custom_call.1} parent=5 // pred_check
        _
      $region38: #{tpu_custom_call.1} parent=5 // pred_check_branch
        %231 = sbr.rel (%p228) target = $region40
      $region39: #{tpu_custom_call.1} parent=5 // pred_region
        %s232 = ssub.s32 %s18, 1
        %s233 = sand.u32 %s31, 1
        %s234 = scalar_lea.sflag [#allocation3], %s233
        %s235 = sand.u32 %s31, 1
        %s236 = smul.addr %s235, 32
        %s237 = scalar_lea.vmem [#allocation2], %s236
        // Predicated region
        $region41: #{tpu_custom_call.1} parent=39 // pred_check
          %p238 = pneg %p44
        $region42: #{tpu_custom_call.1} parent=39 // pred_check_branch
          %240 = sbr.rel (%p238) target = $region44
        $region43: #{tpu_custom_call.1} parent=39 // pred_region
          %241 = dma.done %s234, 512
        $region44: #{tpu_custom_call.1} parent=39 // pred_fallthru
          _
        // Predicated region
        $region45: #{tpu_custom_call.1} parent=39 // pred_check
          %p242 = pneg %p65
        $region46: #{tpu_custom_call.1} parent=39 // pred_check_branch
          %244 = sbr.rel (%p242) target = $region48
        $region47: #{tpu_custom_call.1} parent=39 // pred_region
          %245 = dma.done [#allocation6], 512
        $region48: #{tpu_custom_call.1} parent=39 // pred_fallthru
          _
        // Predicated region
        $region49: #{tpu_custom_call.1} parent=39 // pred_check
          %p246 = pneg %p107
        $region50: #{tpu_custom_call.1} parent=39 // pred_check_branch
          %248 = sbr.rel (%p246) target = $region52
        $region51: #{tpu_custom_call.1} parent=39 // pred_region
          %249 = dma.done [#allocation6], 512
        $region52: #{tpu_custom_call.1} parent=39 // pred_fallthru
          _
        %s250 = sand.u32 %s31, 1
        %s251 = scalar_lea.sflag [#allocation3], %s250
        %s252 = sand.u32 %s31, 1
        %s253 = smul.addr %s252, 32
        %s254 = scalar_lea.vmem [#allocation2], %s253
        %p255 = pneg %p44
        %p256 = pneg %p41
        %p257 = pneg %p65
        %p258 = pneg %p62
        %p259 = pneg %p86
        %p260 = pneg %p83
        %p261 = pneg %p107
        %p262 = pneg %p104
        %p263 = pneg %p128
        %p264 = pneg %p125
        %p265 = pneg %p154
        %p266 = pneg %p151
        %s267 = sand.u32 %s141, 1
        %s268 = scalar_lea.sflag [#allocation4], %s267
        %s269 = sand.u32 %s141, 1
        %s270 = smul.addr %s269, 32
        %s271 = scalar_lea.vmem [#allocation8], %s270
        %v272 = vld [vmem:[%s237] sm:$0xff]
        %v273 = vld [vmem:[%s237 + $0x8] sm:$0xff]
        %v274 = vld [vmem:[%s237 + $0x10] sm:$0xff]
        %v275 = vld [vmem:[%s237 + $0x18] sm:$0xff]
        %v276 = vld [vmem:[#allocation5] sm:$0xff]
        %v277 = vld [vmem:[#allocation5 + $0x8] sm:$0xff]
        %v278 = vld [vmem:[#allocation5 + $0x10] sm:$0xff]
        %v279 = vld [vmem:[#allocation5 + $0x18] sm:$0xff]
        %v280 = vld [vmem:[%s2] sm:$0x1]
        %v282 = vlaneseq
        %v283 = vshrl.u32 %v282, 7
        %v284 = vsub.s32 0, %v283
        %v285 = vrot.slane %v280, %v284
        %vm287 = vcmask 261120
        %v289 = vsel %vm287, %v272, 0
        %v292 = vsel %vm287, %v273, 0
        %v295 = vsel %vm287, %v274, 0
        %v298 = vsel %vm287, %v275, 0
        %300 = vmatprep.subr.mxu0 0.0
        %301 = vmatpush1.msra.mxu0 %v276
        %302 = vmatprep.subr.mxu0 0.0
        %303 = vmatpush1.msra.mxu0 %v277
        %304 = vmatprep.subr.mxu0 0.0
        %305 = vmatpush1.msra.mxu0 %v278
        %306 = vmatprep.subr.mxu0 0.0
        %307 = vmatpush1.msra.mxu0 %v279
        %308 = vmatprep.subr.mxu0 0.0
        %309 = vmatpush1.msra.mxu0 0.0
        %310 = vmatprep.subr.mxu0 0.0
        %311 = vmatpush1.msra.mxu0 0.0
        %312 = vmatprep.subr.mxu0 0.0
        %313 = vmatpush1.msra.mxu0 0.0
        %314 = vmatprep.subr.mxu0 0.0
        %315 = vmatpush1.msra.mxu0 0.0
        %316 = vmatprep.subr.mxu0 0.0
        %317 = vmatpush1.msra.mxu0 0.0
        %318 = vmatprep.subr.mxu0 0.0
        %319 = vmatpush1.msra.mxu0 0.0
        %320 = vmatprep.subr.mxu0 0.0
        %321 = vmatpush1.msra.mxu0 0.0
        %322 = vmatprep.subr.mxu0 0.0
        %323 = vmatpush1.msra.mxu0 0.0
        %324 = vmatprep.subr.mxu0 0.0
        %325 = vmatpush1.msra.mxu0 0.0
        %326 = vmatprep.subr.mxu0 0.0
        %327 = vmatpush1.msra.mxu0 0.0
        %328 = vmatprep.subr.mxu0 0.0
        %329 = vmatpush1.msra.mxu0 0.0
        %330 = vmatprep.subr.mxu0 0.0
        %331 = vmatpush1.msra.mxu0 0.0
        %332 = vmatprep.subr.mxu0 0.0
        %333 = vmatpush1.msra.mxu0 0.0
        %334 = vmatprep.subr.mxu0 0.0
        %335 = vmatpush1.msra.mxu0 0.0
        %336 = vmatprep.subr.mxu0 0.0
        %337 = vmatpush1.msra.mxu0 0.0
        %338 = vmatprep.subr.mxu0 0.0
        %339 = vmatpush1.msra.mxu0 0.0
        %340 = vmatprep.subr.mxu0 0.0
        %341 = vmatpush1.msra.mxu0 0.0
        %342 = vmatprep.subr.mxu0 0.0
        %343 = vmatpush1.msra.mxu0 0.0
        %344 = vmatprep.subr.mxu0 0.0
        %345 = vmatpush1.msra.mxu0 0.0
        %346 = vmatprep.subr.mxu0 0.0
        %347 = vmatpush1.msra.mxu0 0.0
        %348 = vmatprep.subr.mxu0 0.0
        %349 = vmatpush1.msra.mxu0 0.0
        %350 = vmatprep.subr.mxu0 0.0
        %351 = vmatpush1.msra.mxu0 0.0
        %352 = vmatprep.subr.mxu0 0.0
        %353 = vmatpush1.msra.mxu0 0.0
        %354 = vmatprep.subr.mxu0 0.0
        %355 = vmatpush1.msra.mxu0 0.0
        %356 = vmatprep.subr.mxu0 0.0
        %357 = vmatpush1.msra.mxu0 0.0
        %358 = vmatprep.subr.mxu0 0.0
        %359 = vmatpush1.msra.mxu0 0.0
        %360 = vmatprep.subr.mxu0 0.0
        %361 = vmatpush1.msra.mxu0 0.0
        %362 = vmatprep.subr.mxu0 0.0
        %363 = vmatpush1.msra.mxu0 0.0
        %364 = vmatprep.mubr.f32.mxu0 0.0
        %365 = vmatmul.mubr.f32.gmra.mrb[0].mxu0 %v289
        %v366 = vpop.f32.mrb[0].mxu0
        %v367 = vadd.f32 %v285, %v366
        %v368 = vpop.f32.mrb[0].mxu0
        %369 = vmatprep.mubr.f32.mxu0 0.0
        %370 = vmatmul.mubr.f32.gmra.mrb[0].mxu0 %v292
        %v371 = vpop.f32.mrb[0].mxu0
        %v372 = vadd.f32 %v285, %v371
        %v373 = vpop.f32.mrb[0].mxu0
        %374 = vmatprep.mubr.f32.mxu0 0.0
        %375 = vmatmul.mubr.f32.gmra.mrb[0].mxu0 %v295
        %v376 = vpop.f32.mrb[0].mxu0
        %v377 = vadd.f32 %v285, %v376
        %v378 = vpop.f32.mrb[0].mxu0
        %379 = vmatprep.mubr.f32.mxu0 0.0
        %380 = vmatmul.mubr.f32.gmra.mrb[0].mxu0 %v298
        %v381 = vpop.f32.mrb[0].mxu0
        %v382 = vadd.f32 %v285, %v381
        %v383 = vpop.f32.mrb[0].mxu0
        %384 = vdwg.mxu0
        %v385 = vld [vmem:[#allocation7] sm:$0xff]
        %v386 = vld [vmem:[#allocation7 + $0x8] sm:$0xff]
        %v387 = vld [vmem:[#allocation7 + $0x10] sm:$0xff]
        %v388 = vld [vmem:[#allocation7 + $0x18] sm:$0xff]
        %v389 = vld [vmem:[%s4] sm:$0x1]
        %391 = vrot.lane.b32.xlu0 %v367, 96
        %v392 = vpop.permute.xlu0 %391
        %vm393 = vcmask 64512
        %v394 = vsel %vm393, %v367, 0
        %v396 = vsel %vm393, %v392, 0
        %398 = vmatprep.subr.mxu0 0.0
        %399 = vmatpush1.xpose.msra.mxu0 %v396
        %400 = vmatprep.subr.mxu0 0.0
        %401 = vmatpush1.xpose.msra.mxu0 0.0
        %402 = vmatprep.subr.mxu0 0.0
        %403 = vmatpush1.xpose.msra.mxu0 0.0
        %404 = vmatprep.subr.mxu0 0.0
        %405 = vmatpush1.xpose.msra.mxu0 0.0
        %406 = vmatprep.subr.mxu0 0.0
        %407 = vmatpush1.xpose.msra.mxu0 0.0
        %408 = vmatprep.subr.mxu0 0.0
        %409 = vmatpush1.xpose.msra.mxu0 0.0
        %410 = vmatprep.subr.mxu0 0.0
        %411 = vmatpush1.xpose.msra.mxu0 0.0
        %412 = vmatprep.subr.mxu0 0.0
        %413 = vmatpush1.xpose.msra.mxu0 0.0
        %414 = vmatprep.subr.mxu0 0.0
        %415 = vmatpush1.xpose.msra.mxu0 0.0
        %416 = vmatprep.subr.mxu0 0.0
        %417 = vmatpush1.xpose.msra.mxu0 0.0
        %418 = vmatprep.subr.mxu0 0.0
        %419 = vmatpush1.xpose.msra.mxu0 0.0
        %420 = vmatprep.subr.mxu0 0.0
        %421 = vmatpush1.xpose.msra.mxu0 0.0
        %422 = vmatprep.subr.mxu0 0.0
        %423 = vmatpush1.xpose.msra.mxu0 0.0
        %424 = vmatprep.subr.mxu0 0.0
        %425 = vmatpush1.xpose.msra.mxu0 0.0
        %426 = vmatprep.subr.mxu0 0.0
        %427 = vmatpush1.xpose.msra.mxu0 0.0
        %428 = vmatprep.subr.mxu0 0.0
        %429 = vmatpush1.xpose.msra.mxu0 0.0
        %430 = vmatprep.subr.mxu0 0.0
        %431 = vmatpush1.xpose.msra.mxu0 0.0
        %432 = vmatprep.subr.mxu0 0.0
        %433 = vmatpush1.xpose.msra.mxu0 0.0
        %434 = vmatprep.subr.mxu0 0.0
        %435 = vmatpush1.xpose.msra.mxu0 0.0
        %436 = vmatprep.subr.mxu0 0.0
        %437 = vmatpush1.xpose.msra.mxu0 0.0
        %438 = vmatprep.subr.mxu0 0.0
        %439 = vmatpush1.xpose.msra.mxu0 0.0
        %440 = vmatprep.subr.mxu0 0.0
        %441 = vmatpush1.xpose.msra.mxu0 0.0
        %442 = vmatprep.subr.mxu0 0.0
        %443 = vmatpush1.xpose.msra.mxu0 0.0
        %444 = vmatprep.subr.mxu0 0.0
        %445 = vmatpush1.xpose.msra.mxu0 0.0
        %446 = vmatprep.subr.mxu0 0.0
        %447 = vmatpush1.xpose.msra.mxu0 0.0
        %448 = vmatprep.subr.mxu0 0.0
        %449 = vmatpush1.xpose.msra.mxu0 0.0
        %450 = vmatprep.subr.mxu0 0.0
        %451 = vmatpush1.xpose.msra.mxu0 0.0
        %452 = vmatprep.subr.mxu0 0.0
        %453 = vmatpush1.xpose.msra.mxu0 0.0
        %454 = vmatprep.subr.mxu0 0.0
        %455 = vmatpush1.xpose.msra.mxu0 0.0
        %456 = vmatprep.subr.mxu0 0.0
        %457 = vmatpush1.xpose.msra.mxu0 0.0
        %458 = vmatprep.subr.mxu0 0.0
        %459 = vmatpush1.xpose.msra.mxu0 0.0
        %460 = vmatprep.subr.mxu0 0.0
        %461 = vmatpush1.xpose.msra.mxu0 0.0
        %462 = vmatprep.mubr.f32.mxu0 0.0
        %463 = vmatmul.mubr.f32.gmra.mrb[0].mxu0 %v394
        %v464 = vpop.f32.mrb[0].mxu0
        %v465 = vadd.f32 0.0, %v464
        %v466 = vpop.f32.mrb[0].mxu0
        %467 = vdwg.mxu0
        %469 = vrot.lane.b32.xlu0 %v372, 96
        %v470 = vpop.permute.xlu0 %469
        %v471 = vsel %vm393, %v372, 0
        %v473 = vsel %vm393, %v470, 0
        %475 = vmatprep.subr.mxu0 0.0
        %476 = vmatpush1.xpose.msra.mxu0 %v473
        %477 = vmatprep.subr.mxu0 0.0
        %478 = vmatpush1.xpose.msra.mxu0 0.0
        %479 = vmatprep.subr.mxu0 0.0
        %480 = vmatpush1.xpose.msra.mxu0 0.0
        %481 = vmatprep.subr.mxu0 0.0
        %482 = vmatpush1.xpose.msra.mxu0 0.0
        %483 = vmatprep.subr.mxu0 0.0
        %484 = vmatpush1.xpose.msra.mxu0 0.0
        %485 = vmatprep.subr.mxu0 0.0
        %486 = vmatpush1.xpose.msra.mxu0 0.0
        %487 = vmatprep.subr.mxu0 0.0
        %488 = vmatpush1.xpose.msra.mxu0 0.0
        %489 = vmatprep.subr.mxu0 0.0
        %490 = vmatpush1.xpose.msra.mxu0 0.0
        %491 = vmatprep.subr.mxu0 0.0
        %492 = vmatpush1.xpose.msra.mxu0 0.0
        %493 = vmatprep.subr.mxu0 0.0
        %494 = vmatpush1.xpose.msra.mxu0 0.0
        %495 = vmatprep.subr.mxu0 0.0
        %496 = vmatpush1.xpose.msra.mxu0 0.0
        %497 = vmatprep.subr.mxu0 0.0
        %498 = vmatpush1.xpose.msra.mxu0 0.0
        %499 = vmatprep.subr.mxu0 0.0
        %500 = vmatpush1.xpose.msra.mxu0 0.0
        %501 = vmatprep.subr.mxu0 0.0
        %502 = vmatpush1.xpose.msra.mxu0 0.0
        %503 = vmatprep.subr.mxu0 0.0
        %504 = vmatpush1.xpose.msra.mxu0 0.0
        %505 = vmatprep.subr.mxu0 0.0
        %506 = vmatpush1.xpose.msra.mxu0 0.0
        %507 = vmatprep.subr.mxu0 0.0
        %508 = vmatpush1.xpose.msra.mxu0 0.0
        %509 = vmatprep.subr.mxu0 0.0
        %510 = vmatpush1.xpose.msra.mxu0 0.0
        %511 = vmatprep.subr.mxu0 0.0
        %512 = vmatpush1.xpose.msra.mxu0 0.0
        %513 = vmatprep.subr.mxu0 0.0
        %514 = vmatpush1.xpose.msra.mxu0 0.0
        %515 = vmatprep.subr.mxu0 0.0
        %516 = vmatpush1.xpose.msra.mxu0 0.0
        %517 = vmatprep.subr.mxu0 0.0
        %518 = vmatpush1.xpose.msra.mxu0 0.0
        %519 = vmatprep.subr.mxu0 0.0
        %520 = vmatpush1.xpose.msra.mxu0 0.0
        %521 = vmatprep.subr.mxu0 0.0
        %522 = vmatpush1.xpose.msra.mxu0 0.0
        %523 = vmatprep.subr.mxu0 0.0
        %524 = vmatpush1.xpose.msra.mxu0 0.0
        %525 = vmatprep.subr.mxu0 0.0
        %526 = vmatpush1.xpose.msra.mxu0 0.0
        %527 = vmatprep.subr.mxu0 0.0
        %528 = vmatpush1.xpose.msra.mxu0 0.0
        %529 = vmatprep.subr.mxu0 0.0
        %530 = vmatpush1.xpose.msra.mxu0 0.0
        %531 = vmatprep.subr.mxu0 0.0
        %532 = vmatpush1.xpose.msra.mxu0 0.0
        %533 = vmatprep.subr.mxu0 0.0
        %534 = vmatpush1.xpose.msra.mxu0 0.0
        %535 = vmatprep.subr.mxu0 0.0
        %536 = vmatpush1.xpose.msra.mxu0 0.0
        %537 = vmatprep.subr.mxu0 0.0
        %538 = vmatpush1.xpose.msra.mxu0 0.0
        %539 = vmatprep.mubr.f32.mxu0 0.0
        %540 = vmatmul.mubr.f32.gmra.mrb[0].mxu0 %v471
        %v541 = vpop.f32.mrb[0].mxu0
        %v542 = vadd.f32 0.0, %v541
        %v543 = vpop.f32.mrb[0].mxu0
        %544 = vdwg.mxu0
        %546 = vrot.lane.b32.xlu0 %v377, 96
        %v547 = vpop.permute.xlu0 %546
        %v548 = vsel %vm393, %v377, 0
        %v550 = vsel %vm393, %v547, 0
        %552 = vmatprep.subr.mxu0 0.0
        %553 = vmatpush1.xpose.msra.mxu0 %v550
        %554 = vmatprep.subr.mxu0 0.0
        %555 = vmatpush1.xpose.msra.mxu0 0.0
        %556 = vmatprep.subr.mxu0 0.0
        %557 = vmatpush1.xpose.msra.mxu0 0.0
        %558 = vmatprep.subr.mxu0 0.0
        %559 = vmatpush1.xpose.msra.mxu0 0.0
        %560 = vmatprep.subr.mxu0 0.0
        %561 = vmatpush1.xpose.msra.mxu0 0.0
        %562 = vmatprep.subr.mxu0 0.0
        %563 = vmatpush1.xpose.msra.mxu0 0.0
        %564 = vmatprep.subr.mxu0 0.0
        %565 = vmatpush1.xpose.msra.mxu0 0.0
        %566 = vmatprep.subr.mxu0 0.0
        %567 = vmatpush1.xpose.msra.mxu0 0.0
        %568 = vmatprep.subr.mxu0 0.0
        %569 = vmatpush1.xpose.msra.mxu0 0.0
        %570 = vmatprep.subr.mxu0 0.0
        %571 = vmatpush1.xpose.msra.mxu0 0.0
        %572 = vmatprep.subr.mxu0 0.0
        %573 = vmatpush1.xpose.msra.mxu0 0.0
        %574 = vmatprep.subr.mxu0 0.0
        %575 = vmatpush1.xpose.msra.mxu0 0.0
        %576 = vmatprep.subr.mxu0 0.0
        %577 = vmatpush1.xpose.msra.mxu0 0.0
        %578 = vmatprep.subr.mxu0 0.0
        %579 = vmatpush1.xpose.msra.mxu0 0.0
        %580 = vmatprep.subr.mxu0 0.0
        %581 = vmatpush1.xpose.msra.mxu0 0.0
        %582 = vmatprep.subr.mxu0 0.0
        %583 = vmatpush1.xpose.msra.mxu0 0.0
        %584 = vmatprep.subr.mxu0 0.0
        %585 = vmatpush1.xpose.msra.mxu0 0.0
        %586 = vmatprep.subr.mxu0 0.0
        %587 = vmatpush1.xpose.msra.mxu0 0.0
        %588 = vmatprep.subr.mxu0 0.0
        %589 = vmatpush1.xpose.msra.mxu0 0.0
        %590 = vmatprep.subr.mxu0 0.0
        %591 = vmatpush1.xpose.msra.mxu0 0.0
        %592 = vmatprep.subr.mxu0 0.0
        %593 = vmatpush1.xpose.msra.mxu0 0.0
        %594 = vmatprep.subr.mxu0 0.0
        %595 = vmatpush1.xpose.msra.mxu0 0.0
        %596 = vmatprep.subr.mxu0 0.0
        %597 = vmatpush1.xpose.msra.mxu0 0.0
        %598 = vmatprep.subr.mxu0 0.0
        %599 = vmatpush1.xpose.msra.mxu0 0.0
        %600 = vmatprep.subr.mxu0 0.0
        %601 = vmatpush1.xpose.msra.mxu0 0.0
        %602 = vmatprep.subr.mxu0 0.0
        %603 = vmatpush1.xpose.msra.mxu0 0.0
        %604 = vmatprep.subr.mxu0 0.0
        %605 = vmatpush1.xpose.msra.mxu0 0.0
        %606 = vmatprep.subr.mxu0 0.0
        %607 = vmatpush1.xpose.msra.mxu0 0.0
        %608 = vmatprep.subr.mxu0 0.0
        %609 = vmatpush1.xpose.msra.mxu0 0.0
        %610 = vmatprep.subr.mxu0 0.0
        %611 = vmatpush1.xpose.msra.mxu0 0.0
        %612 = vmatprep.subr.mxu0 0.0
        %613 = vmatpush1.xpose.msra.mxu0 0.0
        %614 = vmatprep.subr.mxu0 0.0
        %615 = vmatpush1.xpose.msra.mxu0 0.0
        %616 = vmatprep.mubr.f32.mxu0 0.0
        %617 = vmatmul.mubr.f32.gmra.mrb[0].mxu0 %v548
        %v618 = vpop.f32.mrb[0].mxu0
        %v619 = vadd.f32 0.0, %v618
        %v620 = vpop.f32.mrb[0].mxu0
        %621 = vdwg.mxu0
        %623 = vrot.lane.b32.xlu0 %v382, 96
        %v624 = vpop.permute.xlu0 %623
        %v625 = vsel %vm393, %v382, 0
        %v627 = vsel %vm393, %v624, 0
        %629 = vmatprep.subr.mxu0 0.0
        %630 = vmatpush1.xpose.msra.mxu0 %v627
        %631 = vmatprep.subr.mxu0 0.0
        %632 = vmatpush1.xpose.msra.mxu0 0.0
        %633 = vmatprep.subr.mxu0 0.0
        %634 = vmatpush1.xpose.msra.mxu0 0.0
        %635 = vmatprep.subr.mxu0 0.0
        %636 = vmatpush1.xpose.msra.mxu0 0.0
        %637 = vmatprep.subr.mxu0 0.0
        %638 = vmatpush1.xpose.msra.mxu0 0.0
        %639 = vmatprep.subr.mxu0 0.0
        %640 = vmatpush1.xpose.msra.mxu0 0.0
        %641 = vmatprep.subr.mxu0 0.0
        %642 = vmatpush1.xpose.msra.mxu0 0.0
        %643 = vmatprep.subr.mxu0 0.0
        %644 = vmatpush1.xpose.msra.mxu0 0.0
        %645 = vmatprep.subr.mxu0 0.0
        %646 = vmatpush1.xpose.msra.mxu0 0.0
        %647 = vmatprep.subr.mxu0 0.0
        %648 = vmatpush1.xpose.msra.mxu0 0.0
        %649 = vmatprep.subr.mxu0 0.0
        %650 = vmatpush1.xpose.msra.mxu0 0.0
        %651 = vmatprep.subr.mxu0 0.0
        %652 = vmatpush1.xpose.msra.mxu0 0.0
        %653 = vmatprep.subr.mxu0 0.0
        %654 = vmatpush1.xpose.msra.mxu0 0.0
        %655 = vmatprep.subr.mxu0 0.0
        %656 = vmatpush1.xpose.msra.mxu0 0.0
        %657 = vmatprep.subr.mxu0 0.0
        %658 = vmatpush1.xpose.msra.mxu0 0.0
        %659 = vmatprep.subr.mxu0 0.0
        %660 = vmatpush1.xpose.msra.mxu0 0.0
        %661 = vmatprep.subr.mxu0 0.0
        %662 = vmatpush1.xpose.msra.mxu0 0.0
        %663 = vmatprep.subr.mxu0 0.0
        %664 = vmatpush1.xpose.msra.mxu0 0.0
        %665 = vmatprep.subr.mxu0 0.0
        %666 = vmatpush1.xpose.msra.mxu0 0.0
        %667 = vmatprep.subr.mxu0 0.0
        %668 = vmatpush1.xpose.msra.mxu0 0.0
        %669 = vmatprep.subr.mxu0 0.0
        %670 = vmatpush1.xpose.msra.mxu0 0.0
        %671 = vmatprep.subr.mxu0 0.0
        %672 = vmatpush1.xpose.msra.mxu0 0.0
        %673 = vmatprep.subr.mxu0 0.0
        %674 = vmatpush1.xpose.msra.mxu0 0.0
        %675 = vmatprep.subr.mxu0 0.0
        %676 = vmatpush1.xpose.msra.mxu0 0.0
        %677 = vmatprep.subr.mxu0 0.0
        %678 = vmatpush1.xpose.msra.mxu0 0.0
        %679 = vmatprep.subr.mxu0 0.0
        %680 = vmatpush1.xpose.msra.mxu0 0.0
        %681 = vmatprep.subr.mxu0 0.0
        %682 = vmatpush1.xpose.msra.mxu0 0.0
        %683 = vmatprep.subr.mxu0 0.0
        %684 = vmatpush1.xpose.msra.mxu0 0.0
        %685 = vmatprep.subr.mxu0 0.0
        %686 = vmatpush1.xpose.msra.mxu0 0.0
        %687 = vmatprep.subr.mxu0 0.0
        %688 = vmatpush1.xpose.msra.mxu0 0.0
        %689 = vmatprep.subr.mxu0 0.0
        %690 = vmatpush1.xpose.msra.mxu0 0.0
        %691 = vmatprep.subr.mxu0 0.0
        %692 = vmatpush1.xpose.msra.mxu0 0.0
        %693 = vmatprep.mubr.f32.mxu0 0.0
        %694 = vmatmul.mubr.f32.gmra.mrb[0].mxu0 %v625
        %v695 = vpop.f32.mrb[0].mxu0
        %v696 = vadd.f32 0.0, %v695
        %v697 = vpop.f32.mrb[0].mxu0
        %698 = vdwg.mxu0
        %v699 = vsel %vm393, %v465, -inf
        %700 = vmax.xlane.f32.xlu0 %v699
        %v701 = vpop.xlane.xlu0 %700
        %v702 = vsel %vm393, %v542, -inf
        %703 = vmax.xlane.f32.xlu0 %v702
        %v704 = vpop.xlane.xlu0 %703
        %v705 = vsel %vm393, %v619, -inf
        %706 = vmax.xlane.f32.xlu0 %v705
        %v707 = vpop.xlane.xlu0 %706
        %v708 = vsel %vm393, %v696, -inf
        %709 = vmax.xlane.f32.xlu0 %v708
        %v710 = vpop.xlane.xlu0 %709
        %v711 = vsub.f32 %v465, %v701
        %v712 = vsub.f32 %v542, %v704
        %v713 = vsub.f32 %v619, %v707
        %v714 = vsub.f32 %v696, %v710
        %v715 = vmul.f32 %v711, 1.442695
        %v716 = vpow.pop %v715
        %v717 = vmul.f32 %v712, 1.442695
        %v718 = vpow.pop %v717
        %v719 = vmul.f32 %v713, 1.442695
        %v720 = vpow.pop %v719
        %v721 = vmul.f32 %v714, 1.442695
        %v722 = vpow.pop %v721
        %v723 = vsel %vm393, %v716, 0.0
        %724 = vadd.xlane.f32.xlu0 %v723
        %v725 = vpop.xlane.xlu0 %724
        %v726 = vsel %vm393, %v718, 0.0
        %727 = vadd.xlane.f32.xlu0 %v726
        %v728 = vpop.xlane.xlu0 %727
        %v729 = vsel %vm393, %v720, 0.0
        %730 = vadd.xlane.f32.xlu0 %v729
        %v731 = vpop.xlane.xlu0 %730
        %v732 = vsel %vm393, %v722, 0.0
        %733 = vadd.xlane.f32.xlu0 %v732
        %v734 = vpop.xlane.xlu0 %733
        %735 = vrot.lane.b32.xlu0 %v367, 64
        %v736 = vpop.permute.xlu0 %735
        %v739 = vsel %vm393, %v716, 0
        %741 = vmatprep.subr.mxu0 0.0
        %742 = vmatpush1.msra.mxu0 %v736
        %743 = vmatprep.subr.mxu0 0.0
        %744 = vmatpush1.msra.mxu0 0.0
        %745 = vmatprep.subr.mxu0 0.0
        %746 = vmatpush1.msra.mxu0 0.0
        %747 = vmatprep.subr.mxu0 0.0
        %748 = vmatpush1.msra.mxu0 0.0
        %749 = vmatprep.subr.mxu0 0.0
        %750 = vmatpush1.msra.mxu0 0.0
        %751 = vmatprep.subr.mxu0 0.0
        %752 = vmatpush1.msra.mxu0 0.0
        %753 = vmatprep.subr.mxu0 0.0
        %754 = vmatpush1.msra.mxu0 0.0
        %755 = vmatprep.subr.mxu0 0.0
        %756 = vmatpush1.msra.mxu0 0.0
        %757 = vmatprep.subr.mxu0 0.0
        %758 = vmatpush1.msra.mxu0 0.0
        %759 = vmatprep.subr.mxu0 0.0
        %760 = vmatpush1.msra.mxu0 0.0
        %761 = vmatprep.subr.mxu0 0.0
        %762 = vmatpush1.msra.mxu0 0.0
        %763 = vmatprep.subr.mxu0 0.0
        %764 = vmatpush1.msra.mxu0 0.0
        %765 = vmatprep.subr.mxu0 0.0
        %766 = vmatpush1.msra.mxu0 0.0
        %767 = vmatprep.subr.mxu0 0.0
        %768 = vmatpush1.msra.mxu0 0.0
        %769 = vmatprep.subr.mxu0 0.0
        %770 = vmatpush1.msra.mxu0 0.0
        %771 = vmatprep.subr.mxu0 0.0
        %772 = vmatpush1.msra.mxu0 0.0
        %773 = vmatprep.subr.mxu0 0.0
        %774 = vmatpush1.msra.mxu0 0.0
        %775 = vmatprep.subr.mxu0 0.0
        %776 = vmatpush1.msra.mxu0 0.0
        %777 = vmatprep.subr.mxu0 0.0
        %778 = vmatpush1.msra.mxu0 0.0
        %779 = vmatprep.subr.mxu0 0.0
        %780 = vmatpush1.msra.mxu0 0.0
        %781 = vmatprep.subr.mxu0 0.0
        %782 = vmatpush1.msra.mxu0 0.0
        %783 = vmatprep.subr.mxu0 0.0
        %784 = vmatpush1.msra.mxu0 0.0
        %785 = vmatprep.subr.mxu0 0.0
        %786 = vmatpush1.msra.mxu0 0.0
        %787 = vmatprep.subr.mxu0 0.0
        %788 = vmatpush1.msra.mxu0 0.0
        %789 = vmatprep.subr.mxu0 0.0
        %790 = vmatpush1.msra.mxu0 0.0
        %791 = vmatprep.subr.mxu0 0.0
        %792 = vmatpush1.msra.mxu0 0.0
        %793 = vmatprep.subr.mxu0 0.0
        %794 = vmatpush1.msra.mxu0 0.0
        %795 = vmatprep.subr.mxu0 0.0
        %796 = vmatpush1.msra.mxu0 0.0
        %797 = vmatprep.subr.mxu0 0.0
        %798 = vmatpush1.msra.mxu0 0.0
        %799 = vmatprep.subr.mxu0 0.0
        %800 = vmatpush1.msra.mxu0 0.0
        %801 = vmatprep.subr.mxu0 0.0
        %802 = vmatpush1.msra.mxu0 0.0
        %803 = vmatprep.subr.mxu0 0.0
        %804 = vmatpush1.msra.mxu0 0.0
        %805 = vmatprep.mubr.f32.mxu0 0.0
        %806 = vmatmul.mubr.f32.gmra.mrb[0].mxu0 %v739
        %v807 = vpop.f32.mrb[0].mxu0
        %v808 = vadd.f32 0.0, %v807
        %v809 = vpop.f32.mrb[0].mxu0
        %810 = vdwg.mxu0
        %811 = vrot.lane.b32.xlu0 %v372, 64
        %v812 = vpop.permute.xlu0 %811
        %v815 = vsel %vm393, %v718, 0
        %817 = vmatprep.subr.mxu0 0.0
        %818 = vmatpush1.msra.mxu0 %v812
        %819 = vmatprep.subr.mxu0 0.0
        %820 = vmatpush1.msra.mxu0 0.0
        %821 = vmatprep.subr.mxu0 0.0
        %822 = vmatpush1.msra.mxu0 0.0
        %823 = vmatprep.subr.mxu0 0.0
        %824 = vmatpush1.msra.mxu0 0.0
        %825 = vmatprep.subr.mxu0 0.0
        %826 = vmatpush1.msra.mxu0 0.0
        %827 = vmatprep.subr.mxu0 0.0
        %828 = vmatpush1.msra.mxu0 0.0
        %829 = vmatprep.subr.mxu0 0.0
        %830 = vmatpush1.msra.mxu0 0.0
        %831 = vmatprep.subr.mxu0 0.0
        %832 = vmatpush1.msra.mxu0 0.0
        %833 = vmatprep.subr.mxu0 0.0
        %834 = vmatpush1.msra.mxu0 0.0
        %835 = vmatprep.subr.mxu0 0.0
        %836 = vmatpush1.msra.mxu0 0.0
        %837 = vmatprep.subr.mxu0 0.0
        %838 = vmatpush1.msra.mxu0 0.0
        %839 = vmatprep.subr.mxu0 0.0
        %840 = vmatpush1.msra.mxu0 0.0
        %841 = vmatprep.subr.mxu0 0.0
        %842 = vmatpush1.msra.mxu0 0.0
        %843 = vmatprep.subr.mxu0 0.0
        %844 = vmatpush1.msra.mxu0 0.0
        %845 = vmatprep.subr.mxu0 0.0
        %846 = vmatpush1.msra.mxu0 0.0
        %847 = vmatprep.subr.mxu0 0.0
        %848 = vmatpush1.msra.mxu0 0.0
        %849 = vmatprep.subr.mxu0 0.0
        %850 = vmatpush1.msra.mxu0 0.0
        %851 = vmatprep.subr.mxu0 0.0
        %852 = vmatpush1.msra.mxu0 0.0
        %853 = vmatprep.subr.mxu0 0.0
        %854 = vmatpush1.msra.mxu0 0.0
        %855 = vmatprep.subr.mxu0 0.0
        %856 = vmatpush1.msra.mxu0 0.0
        %857 = vmatprep.subr.mxu0 0.0
        %858 = vmatpush1.msra.mxu0 0.0
        %859 = vmatprep.subr.mxu0 0.0
        %860 = vmatpush1.msra.mxu0 0.0
        %861 = vmatprep.subr.mxu0 0.0
        %862 = vmatpush1.msra.mxu0 0.0
        %863 = vmatprep.subr.mxu0 0.0
        %864 = vmatpush1.msra.mxu0 0.0
        %865 = vmatprep.subr.mxu0 0.0
        %866 = vmatpush1.msra.mxu0 0.0
        %867 = vmatprep.subr.mxu0 0.0
        %868 = vmatpush1.msra.mxu0 0.0
        %869 = vmatprep.subr.mxu0 0.0
        %870 = vmatpush1.msra.mxu0 0.0
        %871 = vmatprep.subr.mxu0 0.0
        %872 = vmatpush1.msra.mxu0 0.0
        %873 = vmatprep.subr.mxu0 0.0
        %874 = vmatpush1.msra.mxu0 0.0
        %875 = vmatprep.subr.mxu0 0.0
        %876 = vmatpush1.msra.mxu0 0.0
        %877 = vmatprep.subr.mxu0 0.0
        %878 = vmatpush1.msra.mxu0 0.0
        %879 = vmatprep.subr.mxu0 0.0
        %880 = vmatpush1.msra.mxu0 0.0
        %881 = vmatprep.mubr.f32.mxu0 0.0
        %882 = vmatmul.mubr.f32.gmra.mrb[0].mxu0 %v815
        %v883 = vpop.f32.mrb[0].mxu0
        %v884 = vadd.f32 0.0, %v883
        %v885 = vpop.f32.mrb[0].mxu0
        %886 = vdwg.mxu0
        %887 = vrot.lane.b32.xlu0 %v377, 64
        %v888 = vpop.permute.xlu0 %887
        %v891 = vsel %vm393, %v720, 0
        %893 = vmatprep.subr.mxu0 0.0
        %894 = vmatpush1.msra.mxu0 %v888
        %895 = vmatprep.subr.mxu0 0.0
        %896 = vmatpush1.msra.mxu0 0.0
        %897 = vmatprep.subr.mxu0 0.0
        %898 = vmatpush1.msra.mxu0 0.0
        %899 = vmatprep.subr.mxu0 0.0
        %900 = vmatpush1.msra.mxu0 0.0
        %901 = vmatprep.subr.mxu0 0.0
        %902 = vmatpush1.msra.mxu0 0.0
        %903 = vmatprep.subr.mxu0 0.0
        %904 = vmatpush1.msra.mxu0 0.0
        %905 = vmatprep.subr.mxu0 0.0
        %906 = vmatpush1.msra.mxu0 0.0
        %907 = vmatprep.subr.mxu0 0.0
        %908 = vmatpush1.msra.mxu0 0.0
        %909 = vmatprep.subr.mxu0 0.0
        %910 = vmatpush1.msra.mxu0 0.0
        %911 = vmatprep.subr.mxu0 0.0
        %912 = vmatpush1.msra.mxu0 0.0
        %913 = vmatprep.subr.mxu0 0.0
        %914 = vmatpush1.msra.mxu0 0.0
        %915 = vmatprep.subr.mxu0 0.0
        %916 = vmatpush1.msra.mxu0 0.0
        %917 = vmatprep.subr.mxu0 0.0
        %918 = vmatpush1.msra.mxu0 0.0
        %919 = vmatprep.subr.mxu0 0.0
        %920 = vmatpush1.msra.mxu0 0.0
        %921 = vmatprep.subr.mxu0 0.0
        %922 = vmatpush1.msra.mxu0 0.0
        %923 = vmatprep.subr.mxu0 0.0
        %924 = vmatpush1.msra.mxu0 0.0
        %925 = vmatprep.subr.mxu0 0.0
        %926 = vmatpush1.msra.mxu0 0.0
        %927 = vmatprep.subr.mxu0 0.0
        %928 = vmatpush1.msra.mxu0 0.0
        %929 = vmatprep.subr.mxu0 0.0
        %930 = vmatpush1.msra.mxu0 0.0
        %931 = vmatprep.subr.mxu0 0.0
        %932 = vmatpush1.msra.mxu0 0.0
        %933 = vmatprep.subr.mxu0 0.0
        %934 = vmatpush1.msra.mxu0 0.0
        %935 = vmatprep.subr.mxu0 0.0
        %936 = vmatpush1.msra.mxu0 0.0
        %937 = vmatprep.subr.mxu0 0.0
        %938 = vmatpush1.msra.mxu0 0.0
        %939 = vmatprep.subr.mxu0 0.0
        %940 = vmatpush1.msra.mxu0 0.0
        %941 = vmatprep.subr.mxu0 0.0
        %942 = vmatpush1.msra.mxu0 0.0
        %943 = vmatprep.subr.mxu0 0.0
        %944 = vmatpush1.msra.mxu0 0.0
        %945 = vmatprep.subr.mxu0 0.0
        %946 = vmatpush1.msra.mxu0 0.0
        %947 = vmatprep.subr.mxu0 0.0
        %948 = vmatpush1.msra.mxu0 0.0
        %949 = vmatprep.subr.mxu0 0.0
        %950 = vmatpush1.msra.mxu0 0.0
        %951 = vmatprep.subr.mxu0 0.0
        %952 = vmatpush1.msra.mxu0 0.0
        %953 = vmatprep.subr.mxu0 0.0
        %954 = vmatpush1.msra.mxu0 0.0
        %955 = vmatprep.subr.mxu0 0.0
        %956 = vmatpush1.msra.mxu0 0.0
        %957 = vmatprep.mubr.f32.mxu0 0.0
        %958 = vmatmul.mubr.f32.gmra.mrb[0].mxu0 %v891
        %v959 = vpop.f32.mrb[0].mxu0
        %v960 = vadd.f32 0.0, %v959
        %v961 = vpop.f32.mrb[0].mxu0
        %962 = vdwg.mxu0
        %963 = vrot.lane.b32.xlu0 %v382, 64
        %v964 = vpop.permute.xlu0 %963
        %v967 = vsel %vm393, %v722, 0
        %969 = vmatprep.subr.mxu0 0.0
        %970 = vmatpush1.msra.mxu0 %v964
        %971 = vmatprep.subr.mxu0 0.0
        %972 = vmatpush1.msra.mxu0 0.0
        %973 = vmatprep.subr.mxu0 0.0
        %974 = vmatpush1.msra.mxu0 0.0
        %975 = vmatprep.subr.mxu0 0.0
        %976 = vmatpush1.msra.mxu0 0.0
        %977 = vmatprep.subr.mxu0 0.0
        %978 = vmatpush1.msra.mxu0 0.0
        %979 = vmatprep.subr.mxu0 0.0
        %980 = vmatpush1.msra.mxu0 0.0
        %981 = vmatprep.subr.mxu0 0.0
        %982 = vmatpush1.msra.mxu0 0.0
        %983 = vmatprep.subr.mxu0 0.0
        %984 = vmatpush1.msra.mxu0 0.0
        %985 = vmatprep.subr.mxu0 0.0
        %986 = vmatpush1.msra.mxu0 0.0
        %987 = vmatprep.subr.mxu0 0.0
        %988 = vmatpush1.msra.mxu0 0.0
        %989 = vmatprep.subr.mxu0 0.0
        %990 = vmatpush1.msra.mxu0 0.0
        %991 = vmatprep.subr.mxu0 0.0
        %992 = vmatpush1.msra.mxu0 0.0
        %993 = vmatprep.subr.mxu0 0.0
        %994 = vmatpush1.msra.mxu0 0.0
        %995 = vmatprep.subr.mxu0 0.0
        %996 = vmatpush1.msra.mxu0 0.0
        %997 = vmatprep.subr.mxu0 0.0
        %998 = vmatpush1.msra.mxu0 0.0
        %999 = vmatprep.subr.mxu0 0.0
        %1000 = vmatpush1.msra.mxu0 0.0
        %1001 = vmatprep.subr.mxu0 0.0
        %1002 = vmatpush1.msra.mxu0 0.0
        %1003 = vmatprep.subr.mxu0 0.0
        %1004 = vmatpush1.msra.mxu0 0.0
        %1005 = vmatprep.subr.mxu0 0.0
        %1006 = vmatpush1.msra.mxu0 0.0
        %1007 = vmatprep.subr.mxu0 0.0
        %1008 = vmatpush1.msra.mxu0 0.0
        %1009 = vmatprep.subr.mxu0 0.0
        %1010 = vmatpush1.msra.mxu0 0.0
        %1011 = vmatprep.subr.mxu0 0.0
        %1012 = vmatpush1.msra.mxu0 0.0
        %1013 = vmatprep.subr.mxu0 0.0
        %1014 = vmatpush1.msra.mxu0 0.0
        %1015 = vmatprep.subr.mxu0 0.0
        %1016 = vmatpush1.msra.mxu0 0.0
        %1017 = vmatprep.subr.mxu0 0.0
        %1018 = vmatpush1.msra.mxu0 0.0
        %1019 = vmatprep.subr.mxu0 0.0
        %1020 = vmatpush1.msra.mxu0 0.0
        %1021 = vmatprep.subr.mxu0 0.0
        %1022 = vmatpush1.msra.mxu0 0.0
        %1023 = vmatprep.subr.mxu0 0.0
        %1024 = vmatpush1.msra.mxu0 0.0
        %1025 = vmatprep.subr.mxu0 0.0
        %1026 = vmatpush1.msra.mxu0 0.0
        %1027 = vmatprep.subr.mxu0 0.0
        %1028 = vmatpush1.msra.mxu0 0.0
        %1029 = vmatprep.subr.mxu0 0.0
        %1030 = vmatpush1.msra.mxu0 0.0
        %1031 = vmatprep.subr.mxu0 0.0
        %1032 = vmatpush1.msra.mxu0 0.0
        %1033 = vmatprep.mubr.f32.mxu0 0.0
        %1034 = vmatmul.mubr.f32.gmra.mrb[0].mxu0 %v967
        %v1035 = vpop.f32.mrb[0].mxu0
        %v1036 = vadd.f32 0.0, %v1035
        %v1037 = vpop.f32.mrb[0].mxu0
        %1038 = vdwg.mxu0
        %v1039 = vrcp.pop %v725
        %v1040 = vmul.f32 1.0, %v1039
        %v1041 = vrcp.pop %v728
        %v1042 = vmul.f32 1.0, %v1041
        %v1043 = vrcp.pop %v731
        %v1044 = vmul.f32 1.0, %v1043
        %v1045 = vrcp.pop %v734
        %v1046 = vmul.f32 1.0, %v1045
        %v1047 = vmul.f32 %v808, %v1040
        %v1048 = vmul.f32 %v884, %v1042
        %v1049 = vmul.f32 %v960, %v1044
        %v1050 = vmul.f32 %v1036, %v1046
        %1051 = vrot.lane.b32.xlu0 %v367, 120
        %v1052 = vpop.permute.xlu0 %1051
        %1053 = vrot.lane.b32.xlu0 %v367, 88
        %v1054 = vpop.permute.xlu0 %1053
        %v1055 = vsel %vm393, %v1052, 0
        %v1057 = vsel %vm393, %v1054, 0
        %1059 = vmatprep.subr.mxu0 0.0
        %1060 = vmatpush1.xpose.msra.mxu0 %v1057
        %1061 = vmatprep.subr.mxu0 0.0
        %1062 = vmatpush1.xpose.msra.mxu0 0.0
        %1063 = vmatprep.subr.mxu0 0.0
        %1064 = vmatpush1.xpose.msra.mxu0 0.0
        %1065 = vmatprep.subr.mxu0 0.0
        %1066 = vmatpush1.xpose.msra.mxu0 0.0
        %1067 = vmatprep.subr.mxu0 0.0
        %1068 = vmatpush1.xpose.msra.mxu0 0.0
        %1069 = vmatprep.subr.mxu0 0.0
        %1070 = vmatpush1.xpose.msra.mxu0 0.0
        %1071 = vmatprep.subr.mxu0 0.0
        %1072 = vmatpush1.xpose.msra.mxu0 0.0
        %1073 = vmatprep.subr.mxu0 0.0
        %1074 = vmatpush1.xpose.msra.mxu0 0.0
        %1075 = vmatprep.subr.mxu0 0.0
        %1076 = vmatpush1.xpose.msra.mxu0 0.0
        %1077 = vmatprep.subr.mxu0 0.0
        %1078 = vmatpush1.xpose.msra.mxu0 0.0
        %1079 = vmatprep.subr.mxu0 0.0
        %1080 = vmatpush1.xpose.msra.mxu0 0.0
        %1081 = vmatprep.subr.mxu0 0.0
        %1082 = vmatpush1.xpose.msra.mxu0 0.0
        %1083 = vmatprep.subr.mxu0 0.0
        %1084 = vmatpush1.xpose.msra.mxu0 0.0
        %1085 = vmatprep.subr.mxu0 0.0
        %1086 = vmatpush1.xpose.msra.mxu0 0.0
        %1087 = vmatprep.subr.mxu0 0.0
        %1088 = vmatpush1.xpose.msra.mxu0 0.0
        %1089 = vmatprep.subr.mxu0 0.0
        %1090 = vmatpush1.xpose.msra.mxu0 0.0
        %1091 = vmatprep.subr.mxu0 0.0
        %1092 = vmatpush1.xpose.msra.mxu0 0.0
        %1093 = vmatprep.subr.mxu0 0.0
        %1094 = vmatpush1.xpose.msra.mxu0 0.0
        %1095 = vmatprep.subr.mxu0 0.0
        %1096 = vmatpush1.xpose.msra.mxu0 0.0
        %1097 = vmatprep.subr.mxu0 0.0
        %1098 = vmatpush1.xpose.msra.mxu0 0.0
        %1099 = vmatprep.subr.mxu0 0.0
        %1100 = vmatpush1.xpose.msra.mxu0 0.0
        %1101 = vmatprep.subr.mxu0 0.0
        %1102 = vmatpush1.xpose.msra.mxu0 0.0
        %1103 = vmatprep.subr.mxu0 0.0
        %1104 = vmatpush1.xpose.msra.mxu0 0.0
        %1105 = vmatprep.subr.mxu0 0.0
        %1106 = vmatpush1.xpose.msra.mxu0 0.0
        %1107 = vmatprep.subr.mxu0 0.0
        %1108 = vmatpush1.xpose.msra.mxu0 0.0
        %1109 = vmatprep.subr.mxu0 0.0
        %1110 = vmatpush1.xpose.msra.mxu0 0.0
        %1111 = vmatprep.subr.mxu0 0.0
        %1112 = vmatpush1.xpose.msra.mxu0 0.0
        %1113 = vmatprep.subr.mxu0 0.0
        %1114 = vmatpush1.xpose.msra.mxu0 0.0
        %1115 = vmatprep.subr.mxu0 0.0
        %1116 = vmatpush1.xpose.msra.mxu0 0.0
        %1117 = vmatprep.subr.mxu0 0.0
        %1118 = vmatpush1.xpose.msra.mxu0 0.0
        %1119 = vmatprep.subr.mxu0 0.0
        %1120 = vmatpush1.xpose.msra.mxu0 0.0
        %1121 = vmatprep.subr.mxu0 0.0
        %1122 = vmatpush1.xpose.msra.mxu0 0.0
        %1123 = vmatprep.mubr.f32.mxu0 0.0
        %1124 = vmatmul.mubr.f32.gmra.mrb[0].mxu0 %v1055
        %v1125 = vpop.f32.mrb[0].mxu0
        %v1126 = vadd.f32 0.0, %v1125
        %v1127 = vpop.f32.mrb[0].mxu0
        %1128 = vdwg.mxu0
        %1129 = vrot.lane.b32.xlu0 %v372, 120
        %v1130 = vpop.permute.xlu0 %1129
        %1131 = vrot.lane.b32.xlu0 %v372, 88
        %v1132 = vpop.permute.xlu0 %1131
        %v1133 = vsel %vm393, %v1130, 0
        %v1135 = vsel %vm393, %v1132, 0
        %1137 = vmatprep.subr.mxu0 0.0
        %1138 = vmatpush1.xpose.msra.mxu0 %v1135
        %1139 = vmatprep.subr.mxu0 0.0
        %1140 = vmatpush1.xpose.msra.mxu0 0.0
        %1141 = vmatprep.subr.mxu0 0.0
        %1142 = vmatpush1.xpose.msra.mxu0 0.0
        %1143 = vmatprep.subr.mxu0 0.0
        %1144 = vmatpush1.xpose.msra.mxu0 0.0
        %1145 = vmatprep.subr.mxu0 0.0
        %1146 = vmatpush1.xpose.msra.mxu0 0.0
        %1147 = vmatprep.subr.mxu0 0.0
        %1148 = vmatpush1.xpose.msra.mxu0 0.0
        %1149 = vmatprep.subr.mxu0 0.0
        %1150 = vmatpush1.xpose.msra.mxu0 0.0
        %1151 = vmatprep.subr.mxu0 0.0
        %1152 = vmatpush1.xpose.msra.mxu0 0.0
        %1153 = vmatprep.subr.mxu0 0.0
        %1154 = vmatpush1.xpose.msra.mxu0 0.0
        %1155 = vmatprep.subr.mxu0 0.0
        %1156 = vmatpush1.xpose.msra.mxu0 0.0
        %1157 = vmatprep.subr.mxu0 0.0
        %1158 = vmatpush1.xpose.msra.mxu0 0.0
        %1159 = vmatprep.subr.mxu0 0.0
        %1160 = vmatpush1.xpose.msra.mxu0 0.0
        %1161 = vmatprep.subr.mxu0 0.0
        %1162 = vmatpush1.xpose.msra.mxu0 0.0
        %1163 = vmatprep.subr.mxu0 0.0
        %1164 = vmatpush1.xpose.msra.mxu0 0.0
        %1165 = vmatprep.subr.mxu0 0.0
        %1166 = vmatpush1.xpose.msra.mxu0 0.0
        %1167 = vmatprep.subr.mxu0 0.0
        %1168 = vmatpush1.xpose.msra.mxu0 0.0
        %1169 = vmatprep.subr.mxu0 0.0
        %1170 = vmatpush1.xpose.msra.mxu0 0.0
        %1171 = vmatprep.subr.mxu0 0.0
        %1172 = vmatpush1.xpose.msra.mxu0 0.0
        %1173 = vmatprep.subr.mxu0 0.0
        %1174 = vmatpush1.xpose.msra.mxu0 0.0
        %1175 = vmatprep.subr.mxu0 0.0
        %1176 = vmatpush1.xpose.msra.mxu0 0.0
        %1177 = vmatprep.subr.mxu0 0.0
        %1178 = vmatpush1.xpose.msra.mxu0 0.0
        %1179 = vmatprep.subr.mxu0 0.0
        %1180 = vmatpush1.xpose.msra.mxu0 0.0
        %1181 = vmatprep.subr.mxu0 0.0
        %1182 = vmatpush1.xpose.msra.mxu0 0.0
        %1183 = vmatprep.subr.mxu0 0.0
        %1184 = vmatpush1.xpose.msra.mxu0 0.0
        %1185 = vmatprep.subr.mxu0 0.0
        %1186 = vmatpush1.xpose.msra.mxu0 0.0
        %1187 = vmatprep.subr.mxu0 0.0
        %1188 = vmatpush1.xpose.msra.mxu0 0.0
        %1189 = vmatprep.subr.mxu0 0.0
        %1190 = vmatpush1.xpose.msra.mxu0 0.0
        %1191 = vmatprep.subr.mxu0 0.0
        %1192 = vmatpush1.xpose.msra.mxu0 0.0
        %1193 = vmatprep.subr.mxu0 0.0
        %1194 = vmatpush1.xpose.msra.mxu0 0.0
        %1195 = vmatprep.subr.mxu0 0.0
        %1196 = vmatpush1.xpose.msra.mxu0 0.0
        %1197 = vmatprep.subr.mxu0 0.0
        %1198 = vmatpush1.xpose.msra.mxu0 0.0
        %1199 = vmatprep.subr.mxu0 0.0
        %1200 = vmatpush1.xpose.msra.mxu0 0.0
        %1201 = vmatprep.mubr.f32.mxu0 0.0
        %1202 = vmatmul.mubr.f32.gmra.mrb[0].mxu0 %v1133
        %v1203 = vpop.f32.mrb[0].mxu0
        %v1204 = vadd.f32 0.0, %v1203
        %v1205 = vpop.f32.mrb[0].mxu0
        %1206 = vdwg.mxu0
        %1207 = vrot.lane.b32.xlu0 %v377, 120
        %v1208 = vpop.permute.xlu0 %1207
        %1209 = vrot.lane.b32.xlu0 %v377, 88
        %v1210 = vpop.permute.xlu0 %1209
        %v1211 = vsel %vm393, %v1208, 0
        %v1213 = vsel %vm393, %v1210, 0
        %1215 = vmatprep.subr.mxu0 0.0
        %1216 = vmatpush1.xpose.msra.mxu0 %v1213
        %1217 = vmatprep.subr.mxu0 0.0
        %1218 = vmatpush1.xpose.msra.mxu0 0.0
        %1219 = vmatprep.subr.mxu0 0.0
        %1220 = vmatpush1.xpose.msra.mxu0 0.0
        %1221 = vmatprep.subr.mxu0 0.0
        %1222 = vmatpush1.xpose.msra.mxu0 0.0
        %1223 = vmatprep.subr.mxu0 0.0
        %1224 = vmatpush1.xpose.msra.mxu0 0.0
        %1225 = vmatprep.subr.mxu0 0.0
        %1226 = vmatpush1.xpose.msra.mxu0 0.0
        %1227 = vmatprep.subr.mxu0 0.0
        %1228 = vmatpush1.xpose.msra.mxu0 0.0
        %1229 = vmatprep.subr.mxu0 0.0
        %1230 = vmatpush1.xpose.msra.mxu0 0.0
        %1231 = vmatprep.subr.mxu0 0.0
        %1232 = vmatpush1.xpose.msra.mxu0 0.0
        %1233 = vmatprep.subr.mxu0 0.0
        %1234 = vmatpush1.xpose.msra.mxu0 0.0
        %1235 = vmatprep.subr.mxu0 0.0
        %1236 = vmatpush1.xpose.msra.mxu0 0.0
        %1237 = vmatprep.subr.mxu0 0.0
        %1238 = vmatpush1.xpose.msra.mxu0 0.0
        %1239 = vmatprep.subr.mxu0 0.0
        %1240 = vmatpush1.xpose.msra.mxu0 0.0
        %1241 = vmatprep.subr.mxu0 0.0
        %1242 = vmatpush1.xpose.msra.mxu0 0.0
        %1243 = vmatprep.subr.mxu0 0.0
        %1244 = vmatpush1.xpose.msra.mxu0 0.0
        %1245 = vmatprep.subr.mxu0 0.0
        %1246 = vmatpush1.xpose.msra.mxu0 0.0
        %1247 = vmatprep.subr.mxu0 0.0
        %1248 = vmatpush1.xpose.msra.mxu0 0.0
        %1249 = vmatprep.subr.mxu0 0.0
        %1250 = vmatpush1.xpose.msra.mxu0 0.0
        %1251 = vmatprep.subr.mxu0 0.0
        %1252 = vmatpush1.xpose.msra.mxu0 0.0
        %1253 = vmatprep.subr.mxu0 0.0
        %1254 = vmatpush1.xpose.msra.mxu0 0.0
        %1255 = vmatprep.subr.mxu0 0.0
        %1256 = vmatpush1.xpose.msra.mxu0 0.0
        %1257 = vmatprep.subr.mxu0 0.0
        %1258 = vmatpush1.xpose.msra.mxu0 0.0
        %1259 = vmatprep.subr.mxu0 0.0
        %1260 = vmatpush1.xpose.msra.mxu0 0.0
        %1261 = vmatprep.subr.mxu0 0.0
        %1262 = vmatpush1.xpose.msra.mxu0 0.0
        %1263 = vmatprep.subr.mxu0 0.0
        %1264 = vmatpush1.xpose.msra.mxu0 0.0
        %1265 = vmatprep.subr.mxu0 0.0
        %1266 = vmatpush1.xpose.msra.mxu0 0.0
        %1267 = vmatprep.subr.mxu0 0.0
        %1268 = vmatpush1.xpose.msra.mxu0 0.0
        %1269 = vmatprep.subr.mxu0 0.0
        %1270 = vmatpush1.xpose.msra.mxu0 0.0
        %1271 = vmatprep.subr.mxu0 0.0
        %1272 = vmatpush1.xpose.msra.mxu0 0.0
        %1273 = vmatprep.subr.mxu0 0.0
        %1274 = vmatpush1.xpose.msra.mxu0 0.0
        %1275 = vmatprep.subr.mxu0 0.0
        %1276 = vmatpush1.xpose.msra.mxu0 0.0
        %1277 = vmatprep.subr.mxu0 0.0
        %1278 = vmatpush1.xpose.msra.mxu0 0.0
        %1279 = vmatprep.mubr.f32.mxu0 0.0
        %1280 = vmatmul.mubr.f32.gmra.mrb[0].mxu0 %v1211
        %v1281 = vpop.f32.mrb[0].mxu0
        %v1282 = vadd.f32 0.0, %v1281
        %v1283 = vpop.f32.mrb[0].mxu0
        %1284 = vdwg.mxu0
        %1285 = vrot.lane.b32.xlu0 %v382, 120
        %v1286 = vpop.permute.xlu0 %1285
        %1287 = vrot.lane.b32.xlu0 %v382, 88
        %v1288 = vpop.permute.xlu0 %1287
        %v1289 = vsel %vm393, %v1286, 0
        %v1291 = vsel %vm393, %v1288, 0
        %1293 = vmatprep.subr.mxu0 0.0
        %1294 = vmatpush1.xpose.msra.mxu0 %v1291
        %1295 = vmatprep.subr.mxu0 0.0
        %1296 = vmatpush1.xpose.msra.mxu0 0.0
        %1297 = vmatprep.subr.mxu0 0.0
        %1298 = vmatpush1.xpose.msra.mxu0 0.0
        %1299 = vmatprep.subr.mxu0 0.0
        %1300 = vmatpush1.xpose.msra.mxu0 0.0
        %1301 = vmatprep.subr.mxu0 0.0
        %1302 = vmatpush1.xpose.msra.mxu0 0.0
        %1303 = vmatprep.subr.mxu0 0.0
        %1304 = vmatpush1.xpose.msra.mxu0 0.0
        %1305 = vmatprep.subr.mxu0 0.0
        %1306 = vmatpush1.xpose.msra.mxu0 0.0
        %1307 = vmatprep.subr.mxu0 0.0
        %1308 = vmatpush1.xpose.msra.mxu0 0.0
        %1309 = vmatprep.subr.mxu0 0.0
        %1310 = vmatpush1.xpose.msra.mxu0 0.0
        %1311 = vmatprep.subr.mxu0 0.0
        %1312 = vmatpush1.xpose.msra.mxu0 0.0
        %1313 = vmatprep.subr.mxu0 0.0
        %1314 = vmatpush1.xpose.msra.mxu0 0.0
        %1315 = vmatprep.subr.mxu0 0.0
        %1316 = vmatpush1.xpose.msra.mxu0 0.0
        %1317 = vmatprep.subr.mxu0 0.0
        %1318 = vmatpush1.xpose.msra.mxu0 0.0
        %1319 = vmatprep.subr.mxu0 0.0
        %1320 = vmatpush1.xpose.msra.mxu0 0.0
        %1321 = vmatprep.subr.mxu0 0.0
        %1322 = vmatpush1.xpose.msra.mxu0 0.0
        %1323 = vmatprep.subr.mxu0 0.0
        %1324 = vmatpush1.xpose.msra.mxu0 0.0
        %1325 = vmatprep.subr.mxu0 0.0
        %1326 = vmatpush1.xpose.msra.mxu0 0.0
        %1327 = vmatprep.subr.mxu0 0.0
        %1328 = vmatpush1.xpose.msra.mxu0 0.0
        %1329 = vmatprep.subr.mxu0 0.0
        %1330 = vmatpush1.xpose.msra.mxu0 0.0
        %1331 = vmatprep.subr.mxu0 0.0
        %1332 = vmatpush1.xpose.msra.mxu0 0.0
        %1333 = vmatprep.subr.mxu0 0.0
        %1334 = vmatpush1.xpose.msra.mxu0 0.0
        %1335 = vmatprep.subr.mxu0 0.0
        %1336 = vmatpush1.xpose.msra.mxu0 0.0
        %1337 = vmatprep.subr.mxu0 0.0
        %1338 = vmatpush1.xpose.msra.mxu0 0.0
        %1339 = vmatprep.subr.mxu0 0.0
        %1340 = vmatpush1.xpose.msra.mxu0 0.0
        %1341 = vmatprep.subr.mxu0 0.0
        %1342 = vmatpush1.xpose.msra.mxu0 0.0
        %1343 = vmatprep.subr.mxu0 0.0
        %1344 = vmatpush1.xpose.msra.mxu0 0.0
        %1345 = vmatprep.subr.mxu0 0.0
        %1346 = vmatpush1.xpose.msra.mxu0 0.0
        %1347 = vmatprep.subr.mxu0 0.0
        %1348 = vmatpush1.xpose.msra.mxu0 0.0
        %1349 = vmatprep.subr.mxu0 0.0
        %1350 = vmatpush1.xpose.msra.mxu0 0.0
        %1351 = vmatprep.subr.mxu0 0.0
        %1352 = vmatpush1.xpose.msra.mxu0 0.0
        %1353 = vmatprep.subr.mxu0 0.0
        %1354 = vmatpush1.xpose.msra.mxu0 0.0
        %1355 = vmatprep.subr.mxu0 0.0
        %1356 = vmatpush1.xpose.msra.mxu0 0.0
        %1357 = vmatprep.mubr.f32.mxu0 0.0
        %1358 = vmatmul.mubr.f32.gmra.mrb[0].mxu0 %v1289
        %v1359 = vpop.f32.mrb[0].mxu0
        %v1360 = vadd.f32 0.0, %v1359
        %v1361 = vpop.f32.mrb[0].mxu0
        %1362 = vdwg.mxu0
        %v1363 = vsel %vm393, %v1126, -inf
        %1364 = vmax.xlane.f32.xlu0 %v1363
        %v1365 = vpop.xlane.xlu0 %1364
        %v1366 = vsel %vm393, %v1204, -inf
        %1367 = vmax.xlane.f32.xlu0 %v1366
        %v1368 = vpop.xlane.xlu0 %1367
        %v1369 = vsel %vm393, %v1282, -inf
        %1370 = vmax.xlane.f32.xlu0 %v1369
        %v1371 = vpop.xlane.xlu0 %1370
        %v1372 = vsel %vm393, %v1360, -inf
        %1373 = vmax.xlane.f32.xlu0 %v1372
        %v1374 = vpop.xlane.xlu0 %1373
        %v1375 = vsub.f32 %v1126, %v1365
        %v1376 = vsub.f32 %v1204, %v1368
        %v1377 = vsub.f32 %v1282, %v1371
        %v1378 = vsub.f32 %v1360, %v1374
        %v1379 = vmul.f32 %v1375, 1.442695
        %v1380 = vpow.pop %v1379
        %v1381 = vmul.f32 %v1376, 1.442695
        %v1382 = vpow.pop %v1381
        %v1383 = vmul.f32 %v1377, 1.442695
        %v1384 = vpow.pop %v1383
        %v1385 = vmul.f32 %v1378, 1.442695
        %v1386 = vpow.pop %v1385
        %v1387 = vsel %vm393, %v1380, 0.0
        %1388 = vadd.xlane.f32.xlu0 %v1387
        %v1389 = vpop.xlane.xlu0 %1388
        %v1390 = vsel %vm393, %v1382, 0.0
        %1391 = vadd.xlane.f32.xlu0 %v1390
        %v1392 = vpop.xlane.xlu0 %1391
        %v1393 = vsel %vm393, %v1384, 0.0
        %1394 = vadd.xlane.f32.xlu0 %v1393
        %v1395 = vpop.xlane.xlu0 %1394
        %v1396 = vsel %vm393, %v1386, 0.0
        %1397 = vadd.xlane.f32.xlu0 %v1396
        %v1398 = vpop.xlane.xlu0 %1397
        %1399 = vrot.lane.b32.xlu0 %v367, 56
        %v1400 = vpop.permute.xlu0 %1399
        %v1403 = vsel %vm393, %v1380, 0
        %1405 = vmatprep.subr.mxu0 0.0
        %1406 = vmatpush1.msra.mxu0 %v1400
        %1407 = vmatprep.subr.mxu0 0.0
        %1408 = vmatpush1.msra.mxu0 0.0
        %1409 = vmatprep.subr.mxu0 0.0
        %1410 = vmatpush1.msra.mxu0 0.0
        %1411 = vmatprep.subr.mxu0 0.0
        %1412 = vmatpush1.msra.mxu0 0.0
        %1413 = vmatprep.subr.mxu0 0.0
        %1414 = vmatpush1.msra.mxu0 0.0
        %1415 = vmatprep.subr.mxu0 0.0
        %1416 = vmatpush1.msra.mxu0 0.0
        %1417 = vmatprep.subr.mxu0 0.0
        %1418 = vmatpush1.msra.mxu0 0.0
        %1419 = vmatprep.subr.mxu0 0.0
        %1420 = vmatpush1.msra.mxu0 0.0
        %1421 = vmatprep.subr.mxu0 0.0
        %1422 = vmatpush1.msra.mxu0 0.0
        %1423 = vmatprep.subr.mxu0 0.0
        %1424 = vmatpush1.msra.mxu0 0.0
        %1425 = vmatprep.subr.mxu0 0.0
        %1426 = vmatpush1.msra.mxu0 0.0
        %1427 = vmatprep.subr.mxu0 0.0
        %1428 = vmatpush1.msra.mxu0 0.0
        %1429 = vmatprep.subr.mxu0 0.0
        %1430 = vmatpush1.msra.mxu0 0.0
        %1431 = vmatprep.subr.mxu0 0.0
        %1432 = vmatpush1.msra.mxu0 0.0
        %1433 = vmatprep.subr.mxu0 0.0
        %1434 = vmatpush1.msra.mxu0 0.0
        %1435 = vmatprep.subr.mxu0 0.0
        %1436 = vmatpush1.msra.mxu0 0.0
        %1437 = vmatprep.subr.mxu0 0.0
        %1438 = vmatpush1.msra.mxu0 0.0
        %1439 = vmatprep.subr.mxu0 0.0
        %1440 = vmatpush1.msra.mxu0 0.0
        %1441 = vmatprep.subr.mxu0 0.0
        %1442 = vmatpush1.msra.mxu0 0.0
        %1443 = vmatprep.subr.mxu0 0.0
        %1444 = vmatpush1.msra.mxu0 0.0
        %1445 = vmatprep.subr.mxu0 0.0
        %1446 = vmatpush1.msra.mxu0 0.0
        %1447 = vmatprep.subr.mxu0 0.0
        %1448 = vmatpush1.msra.mxu0 0.0
        %1449 = vmatprep.subr.mxu0 0.0
        %1450 = vmatpush1.msra.mxu0 0.0
        %1451 = vmatprep.subr.mxu0 0.0
        %1452 = vmatpush1.msra.mxu0 0.0
        %1453 = vmatprep.subr.mxu0 0.0
        %1454 = vmatpush1.msra.mxu0 0.0
        %1455 = vmatprep.subr.mxu0 0.0
        %1456 = vmatpush1.msra.mxu0 0.0
        %1457 = vmatprep.subr.mxu0 0.0
        %1458 = vmatpush1.msra.mxu0 0.0
        %1459 = vmatprep.subr.mxu0 0.0
        %1460 = vmatpush1.msra.mxu0 0.0
        %1461 = vmatprep.subr.mxu0 0.0
        %1462 = vmatpush1.msra.mxu0 0.0
        %1463 = vmatprep.subr.mxu0 0.0
        %1464 = vmatpush1.msra.mxu0 0.0
        %1465 = vmatprep.subr.mxu0 0.0
        %1466 = vmatpush1.msra.mxu0 0.0
        %1467 = vmatprep.subr.mxu0 0.0
        %1468 = vmatpush1.msra.mxu0 0.0
        %1469 = vmatprep.mubr.f32.mxu0 0.0
        %1470 = vmatmul.mubr.f32.gmra.mrb[0].mxu0 %v1403
        %v1471 = vpop.f32.mrb[0].mxu0
        %v1472 = vadd.f32 0.0, %v1471
        %v1473 = vpop.f32.mrb[0].mxu0
        %1474 = vdwg.mxu0
        %1475 = vrot.lane.b32.xlu0 %v372, 56
        %v1476 = vpop.permute.xlu0 %1475
        %v1479 = vsel %vm393, %v1382, 0
        %1481 = vmatprep.subr.mxu0 0.0
        %1482 = vmatpush1.msra.mxu0 %v1476
        %1483 = vmatprep.subr.mxu0 0.0
        %1484 = vmatpush1.msra.mxu0 0.0
        %1485 = vmatprep.subr.mxu0 0.0
        %1486 = vmatpush1.msra.mxu0 0.0
        %1487 = vmatprep.subr.mxu0 0.0
        %1488 = vmatpush1.msra.mxu0 0.0
        %1489 = vmatprep.subr.mxu0 0.0
        %1490 = vmatpush1.msra.mxu0 0.0
        %1491 = vmatprep.subr.mxu0 0.0
        %1492 = vmatpush1.msra.mxu0 0.0
        %1493 = vmatprep.subr.mxu0 0.0
        %1494 = vmatpush1.msra.mxu0 0.0
        %1495 = vmatprep.subr.mxu0 0.0
        %1496 = vmatpush1.msra.mxu0 0.0
        %1497 = vmatprep.subr.mxu0 0.0
        %1498 = vmatpush1.msra.mxu0 0.0
        %1499 = vmatprep.subr.mxu0 0.0
        %1500 = vmatpush1.msra.mxu0 0.0
        %1501 = vmatprep.subr.mxu0 0.0
        %1502 = vmatpush1.msra.mxu0 0.0
        %1503 = vmatprep.subr.mxu0 0.0
        %1504 = vmatpush1.msra.mxu0 0.0
        %1505 = vmatprep.subr.mxu0 0.0
        %1506 = vmatpush1.msra.mxu0 0.0
        %1507 = vmatprep.subr.mxu0 0.0
        %1508 = vmatpush1.msra.mxu0 0.0
        %1509 = vmatprep.subr.mxu0 0.0
        %1510 = vmatpush1.msra.mxu0 0.0
        %1511 = vmatprep.subr.mxu0 0.0
        %1512 = vmatpush1.msra.mxu0 0.0
        %1513 = vmatprep.subr.mxu0 0.0
        %1514 = vmatpush1.msra.mxu0 0.0
        %1515 = vmatprep.subr.mxu0 0.0
        %1516 = vmatpush1.msra.mxu0 0.0
        %1517 = vmatprep.subr.mxu0 0.0
        %1518 = vmatpush1.msra.mxu0 0.0
        %1519 = vmatprep.subr.mxu0 0.0
        %1520 = vmatpush1.msra.mxu0 0.0
        %1521 = vmatprep.subr.mxu0 0.0
        %1522 = vmatpush1.msra.mxu0 0.0
        %1523 = vmatprep.subr.mxu0 0.0
        %1524 = vmatpush1.msra.mxu0 0.0
        %1525 = vmatprep.subr.mxu0 0.0
        %1526 = vmatpush1.msra.mxu0 0.0
        %1527 = vmatprep.subr.mxu0 0.0
        %1528 = vmatpush1.msra.mxu0 0.0
        %1529 = vmatprep.subr.mxu0 0.0
        %1530 = vmatpush1.msra.mxu0 0.0
        %1531 = vmatprep.subr.mxu0 0.0
        %1532 = vmatpush1.msra.mxu0 0.0
        %1533 = vmatprep.subr.mxu0 0.0
        %1534 = vmatpush1.msra.mxu0 0.0
        %1535 = vmatprep.subr.mxu0 0.0
        %1536 = vmatpush1.msra.mxu0 0.0
        %1537 = vmatprep.subr.mxu0 0.0
        %1538 = vmatpush1.msra.mxu0 0.0
        %1539 = vmatprep.subr.mxu0 0.0
        %1540 = vmatpush1.msra.mxu0 0.0
        %1541 = vmatprep.subr.mxu0 0.0
        %1542 = vmatpush1.msra.mxu0 0.0
        %1543 = vmatprep.subr.mxu0 0.0
        %1544 = vmatpush1.msra.mxu0 0.0
        %1545 = vmatprep.mubr.f32.mxu0 0.0
        %1546 = vmatmul.mubr.f32.gmra.mrb[0].mxu0 %v1479
        %v1547 = vpop.f32.mrb[0].mxu0
        %v1548 = vadd.f32 0.0, %v1547
        %v1549 = vpop.f32.mrb[0].mxu0
        %1550 = vdwg.mxu0
        %1551 = vrot.lane.b32.xlu0 %v377, 56
        %v1552 = vpop.permute.xlu0 %1551
        %v1555 = vsel %vm393, %v1384, 0
        %1557 = vmatprep.subr.mxu0 0.0
        %1558 = vmatpush1.msra.mxu0 %v1552
        %1559 = vmatprep.subr.mxu0 0.0
        %1560 = vmatpush1.msra.mxu0 0.0
        %1561 = vmatprep.subr.mxu0 0.0
        %1562 = vmatpush1.msra.mxu0 0.0
        %1563 = vmatprep.subr.mxu0 0.0
        %1564 = vmatpush1.msra.mxu0 0.0
        %1565 = vmatprep.subr.mxu0 0.0
        %1566 = vmatpush1.msra.mxu0 0.0
        %1567 = vmatprep.subr.mxu0 0.0
        %1568 = vmatpush1.msra.mxu0 0.0
        %1569 = vmatprep.subr.mxu0 0.0
        %1570 = vmatpush1.msra.mxu0 0.0
        %1571 = vmatprep.subr.mxu0 0.0
        %1572 = vmatpush1.msra.mxu0 0.0
        %1573 = vmatprep.subr.mxu0 0.0
        %1574 = vmatpush1.msra.mxu0 0.0
        %1575 = vmatprep.subr.mxu0 0.0
        %1576 = vmatpush1.msra.mxu0 0.0
        %1577 = vmatprep.subr.mxu0 0.0
        %1578 = vmatpush1.msra.mxu0 0.0
        %1579 = vmatprep.subr.mxu0 0.0
        %1580 = vmatpush1.msra.mxu0 0.0
        %1581 = vmatprep.subr.mxu0 0.0
        %1582 = vmatpush1.msra.mxu0 0.0
        %1583 = vmatprep.subr.mxu0 0.0
        %1584 = vmatpush1.msra.mxu0 0.0
        %1585 = vmatprep.subr.mxu0 0.0
        %1586 = vmatpush1.msra.mxu0 0.0
        %1587 = vmatprep.subr.mxu0 0.0
        %1588 = vmatpush1.msra.mxu0 0.0
        %1589 = vmatprep.subr.mxu0 0.0
        %1590 = vmatpush1.msra.mxu0 0.0
        %1591 = vmatprep.subr.mxu0 0.0
        %1592 = vmatpush1.msra.mxu0 0.0
        %1593 = vmatprep.subr.mxu0 0.0
        %1594 = vmatpush1.msra.mxu0 0.0
        %1595 = vmatprep.subr.mxu0 0.0
        %1596 = vmatpush1.msra.mxu0 0.0
        %1597 = vmatprep.subr.mxu0 0.0
        %1598 = vmatpush1.msra.mxu0 0.0
        %1599 = vmatprep.subr.mxu0 0.0
        %1600 = vmatpush1.msra.mxu0 0.0
        %1601 = vmatprep.subr.mxu0 0.0
        %1602 = vmatpush1.msra.mxu0 0.0
        %1603 = vmatprep.subr.mxu0 0.0
        %1604 = vmatpush1.msra.mxu0 0.0
        %1605 = vmatprep.subr.mxu0 0.0
        %1606 = vmatpush1.msra.mxu0 0.0
        %1607 = vmatprep.subr.mxu0 0.0
        %1608 = vmatpush1.msra.mxu0 0.0
        %1609 = vmatprep.subr.mxu0 0.0
        %1610 = vmatpush1.msra.mxu0 0.0
        %1611 = vmatprep.subr.mxu0 0.0
        %1612 = vmatpush1.msra.mxu0 0.0
        %1613 = vmatprep.subr.mxu0 0.0
        %1614 = vmatpush1.msra.mxu0 0.0
        %1615 = vmatprep.subr.mxu0 0.0
        %1616 = vmatpush1.msra.mxu0 0.0
        %1617 = vmatprep.subr.mxu0 0.0
        %1618 = vmatpush1.msra.mxu0 0.0
        %1619 = vmatprep.subr.mxu0 0.0
        %1620 = vmatpush1.msra.mxu0 0.0
        %1621 = vmatprep.mubr.f32.mxu0 0.0
        %1622 = vmatmul.mubr.f32.gmra.mrb[0].mxu0 %v1555
        %v1623 = vpop.f32.mrb[0].mxu0
        %v1624 = vadd.f32 0.0, %v1623
        %v1625 = vpop.f32.mrb[0].mxu0
        %1626 = vdwg.mxu0
        %1627 = vrot.lane.b32.xlu0 %v382, 56
        %v1628 = vpop.permute.xlu0 %1627
        %v1631 = vsel %vm393, %v1386, 0
        %1633 = vmatprep.subr.mxu0 0.0
        %1634 = vmatpush1.msra.mxu0 %v1628
        %1635 = vmatprep.subr.mxu0 0.0
        %1636 = vmatpush1.msra.mxu0 0.0
        %1637 = vmatprep.subr.mxu0 0.0
        %1638 = vmatpush1.msra.mxu0 0.0
        %1639 = vmatprep.subr.mxu0 0.0
        %1640 = vmatpush1.msra.mxu0 0.0
        %1641 = vmatprep.subr.mxu0 0.0
        %1642 = vmatpush1.msra.mxu0 0.0
        %1643 = vmatprep.subr.mxu0 0.0
        %1644 = vmatpush1.msra.mxu0 0.0
        %1645 = vmatprep.subr.mxu0 0.0
        %1646 = vmatpush1.msra.mxu0 0.0
        %1647 = vmatprep.subr.mxu0 0.0
        %1648 = vmatpush1.msra.mxu0 0.0
        %1649 = vmatprep.subr.mxu0 0.0
        %1650 = vmatpush1.msra.mxu0 0.0
        %1651 = vmatprep.subr.mxu0 0.0
        %1652 = vmatpush1.msra.mxu0 0.0
        %1653 = vmatprep.subr.mxu0 0.0
        %1654 = vmatpush1.msra.mxu0 0.0
        %1655 = vmatprep.subr.mxu0 0.0
        %1656 = vmatpush1.msra.mxu0 0.0
        %1657 = vmatprep.subr.mxu0 0.0
        %1658 = vmatpush1.msra.mxu0 0.0
        %1659 = vmatprep.subr.mxu0 0.0
        %1660 = vmatpush1.msra.mxu0 0.0
        %1661 = vmatprep.subr.mxu0 0.0
        %1662 = vmatpush1.msra.mxu0 0.0
        %1663 = vmatprep.subr.mxu0 0.0
        %1664 = vmatpush1.msra.mxu0 0.0
        %1665 = vmatprep.subr.mxu0 0.0
        %1666 = vmatpush1.msra.mxu0 0.0
        %1667 = vmatprep.subr.mxu0 0.0
        %1668 = vmatpush1.msra.mxu0 0.0
        %1669 = vmatprep.subr.mxu0 0.0
        %1670 = vmatpush1.msra.mxu0 0.0
        %1671 = vmatprep.subr.mxu0 0.0
        %1672 = vmatpush1.msra.mxu0 0.0
        %1673 = vmatprep.subr.mxu0 0.0
        %1674 = vmatpush1.msra.mxu0 0.0
        %1675 = vmatprep.subr.mxu0 0.0
        %1676 = vmatpush1.msra.mxu0 0.0
        %1677 = vmatprep.subr.mxu0 0.0
        %1678 = vmatpush1.msra.mxu0 0.0
        %1679 = vmatprep.subr.mxu0 0.0
        %1680 = vmatpush1.msra.mxu0 0.0
        %1681 = vmatprep.subr.mxu0 0.0
        %1682 = vmatpush1.msra.mxu0 0.0
        %1683 = vmatprep.subr.mxu0 0.0
        %1684 = vmatpush1.msra.mxu0 0.0
        %1685 = vmatprep.subr.mxu0 0.0
        %1686 = vmatpush1.msra.mxu0 0.0
        %1687 = vmatprep.subr.mxu0 0.0
        %1688 = vmatpush1.msra.mxu0 0.0
        %1689 = vmatprep.subr.mxu0 0.0
        %1690 = vmatpush1.msra.mxu0 0.0
        %1691 = vmatprep.subr.mxu0 0.0
        %1692 = vmatpush1.msra.mxu0 0.0
        %1693 = vmatprep.subr.mxu0 0.0
        %1694 = vmatpush1.msra.mxu0 0.0
        %1695 = vmatprep.subr.mxu0 0.0
        %1696 = vmatpush1.msra.mxu0 0.0
        %1697 = vmatprep.mubr.f32.mxu0 0.0
        %1698 = vmatmul.mubr.f32.gmra.mrb[0].mxu0 %v1631
        %v1699 = vpop.f32.mrb[0].mxu0
        %v1700 = vadd.f32 0.0, %v1699
        %v1701 = vpop.f32.mrb[0].mxu0
        %1702 = vdwg.mxu0
        %v1703 = vrcp.pop %v1389
        %v1704 = vmul.f32 1.0, %v1703
        %v1705 = vrcp.pop %v1392
        %v1706 = vmul.f32 1.0, %v1705
        %v1707 = vrcp.pop %v1395
        %v1708 = vmul.f32 1.0, %v1707
        %v1709 = vrcp.pop %v1398
        %v1710 = vmul.f32 1.0, %v1709
        %v1711 = vmul.f32 %v1472, %v1704
        %v1712 = vmul.f32 %v1548, %v1706
        %v1713 = vmul.f32 %v1624, %v1708
        %v1714 = vmul.f32 %v1700, %v1710
        %1715 = vrot.lane.b32.xlu0 %v367, 112
        %v1716 = vpop.permute.xlu0 %1715
        %1717 = vrot.lane.b32.xlu0 %v367, 80
        %v1718 = vpop.permute.xlu0 %1717
        %v1719 = vsel %vm393, %v1716, 0
        %v1721 = vsel %vm393, %v1718, 0
        %1723 = vmatprep.subr.mxu0 0.0
        %1724 = vmatpush1.xpose.msra.mxu0 %v1721
        %1725 = vmatprep.subr.mxu0 0.0
        %1726 = vmatpush1.xpose.msra.mxu0 0.0
        %1727 = vmatprep.subr.mxu0 0.0
        %1728 = vmatpush1.xpose.msra.mxu0 0.0
        %1729 = vmatprep.subr.mxu0 0.0
        %1730 = vmatpush1.xpose.msra.mxu0 0.0
        %1731 = vmatprep.subr.mxu0 0.0
        %1732 = vmatpush1.xpose.msra.mxu0 0.0
        %1733 = vmatprep.subr.mxu0 0.0
        %1734 = vmatpush1.xpose.msra.mxu0 0.0
        %1735 = vmatprep.subr.mxu0 0.0
        %1736 = vmatpush1.xpose.msra.mxu0 0.0
        %1737 = vmatprep.subr.mxu0 0.0
        %1738 = vmatpush1.xpose.msra.mxu0 0.0
        %1739 = vmatprep.subr.mxu0 0.0
        %1740 = vmatpush1.xpose.msra.mxu0 0.0
        %1741 = vmatprep.subr.mxu0 0.0
        %1742 = vmatpush1.xpose.msra.mxu0 0.0
        %1743 = vmatprep.subr.mxu0 0.0
        %1744 = vmatpush1.xpose.msra.mxu0 0.0
        %1745 = vmatprep.subr.mxu0 0.0
        %1746 = vmatpush1.xpose.msra.mxu0 0.0
        %1747 = vmatprep.subr.mxu0 0.0
        %1748 = vmatpush1.xpose.msra.mxu0 0.0
        %1749 = vmatprep.subr.mxu0 0.0
        %1750 = vmatpush1.xpose.msra.mxu0 0.0
        %1751 = vmatprep.subr.mxu0 0.0
        %1752 = vmatpush1.xpose.msra.mxu0 0.0
        %1753 = vmatprep.subr.mxu0 0.0
        %1754 = vmatpush1.xpose.msra.mxu0 0.0
        %1755 = vmatprep.subr.mxu0 0.0
        %1756 = vmatpush1.xpose.msra.mxu0 0.0
        %1757 = vmatprep.subr.mxu0 0.0
        %1758 = vmatpush1.xpose.msra.mxu0 0.0
        %1759 = vmatprep.subr.mxu0 0.0
        %1760 = vmatpush1.xpose.msra.mxu0 0.0
        %1761 = vmatprep.subr.mxu0 0.0
        %1762 = vmatpush1.xpose.msra.mxu0 0.0
        %1763 = vmatprep.subr.mxu0 0.0
        %1764 = vmatpush1.xpose.msra.mxu0 0.0
        %1765 = vmatprep.subr.mxu0 0.0
        %1766 = vmatpush1.xpose.msra.mxu0 0.0
        %1767 = vmatprep.subr.mxu0 0.0
        %1768 = vmatpush1.xpose.msra.mxu0 0.0
        %1769 = vmatprep.subr.mxu0 0.0
        %1770 = vmatpush1.xpose.msra.mxu0 0.0
        %1771 = vmatprep.subr.mxu0 0.0
        %1772 = vmatpush1.xpose.msra.mxu0 0.0
        %1773 = vmatprep.subr.mxu0 0.0
        %1774 = vmatpush1.xpose.msra.mxu0 0.0
        %1775 = vmatprep.subr.mxu0 0.0
        %1776 = vmatpush1.xpose.msra.mxu0 0.0
        %1777 = vmatprep.subr.mxu0 0.0
        %1778 = vmatpush1.xpose.msra.mxu0 0.0
        %1779 = vmatprep.subr.mxu0 0.0
        %1780 = vmatpush1.xpose.msra.mxu0 0.0
        %1781 = vmatprep.subr.mxu0 0.0
        %1782 = vmatpush1.xpose.msra.mxu0 0.0
        %1783 = vmatprep.subr.mxu0 0.0
        %1784 = vmatpush1.xpose.msra.mxu0 0.0
        %1785 = vmatprep.subr.mxu0 0.0
        %1786 = vmatpush1.xpose.msra.mxu0 0.0
        %1787 = vmatprep.mubr.f32.mxu0 0.0
        %1788 = vmatmul.mubr.f32.gmra.mrb[0].mxu0 %v1719
        %v1789 = vpop.f32.mrb[0].mxu0
        %v1790 = vadd.f32 0.0, %v1789
        %v1791 = vpop.f32.mrb[0].mxu0
        %1792 = vdwg.mxu0
        %1793 = vrot.lane.b32.xlu0 %v372, 112
        %v1794 = vpop.permute.xlu0 %1793
        %1795 = vrot.lane.b32.xlu0 %v372, 80
        %v1796 = vpop.permute.xlu0 %1795
        %v1797 = vsel %vm393, %v1794, 0
        %v1799 = vsel %vm393, %v1796, 0
        %1801 = vmatprep.subr.mxu0 0.0
        %1802 = vmatpush1.xpose.msra.mxu0 %v1799
        %1803 = vmatprep.subr.mxu0 0.0
        %1804 = vmatpush1.xpose.msra.mxu0 0.0
        %1805 = vmatprep.subr.mxu0 0.0
        %1806 = vmatpush1.xpose.msra.mxu0 0.0
        %1807 = vmatprep.subr.mxu0 0.0
        %1808 = vmatpush1.xpose.msra.mxu0 0.0
        %1809 = vmatprep.subr.mxu0 0.0
        %1810 = vmatpush1.xpose.msra.mxu0 0.0
        %1811 = vmatprep.subr.mxu0 0.0
        %1812 = vmatpush1.xpose.msra.mxu0 0.0
        %1813 = vmatprep.subr.mxu0 0.0
        %1814 = vmatpush1.xpose.msra.mxu0 0.0
        %1815 = vmatprep.subr.mxu0 0.0
        %1816 = vmatpush1.xpose.msra.mxu0 0.0
        %1817 = vmatprep.subr.mxu0 0.0
        %1818 = vmatpush1.xpose.msra.mxu0 0.0
        %1819 = vmatprep.subr.mxu0 0.0
        %1820 = vmatpush1.xpose.msra.mxu0 0.0
        %1821 = vmatprep.subr.mxu0 0.0
        %1822 = vmatpush1.xpose.msra.mxu0 0.0
        %1823 = vmatprep.subr.mxu0 0.0
        %1824 = vmatpush1.xpose.msra.mxu0 0.0
        %1825 = vmatprep.subr.mxu0 0.0
        %1826 = vmatpush1.xpose.msra.mxu0 0.0
        %1827 = vmatprep.subr.mxu0 0.0
        %1828 = vmatpush1.xpose.msra.mxu0 0.0
        %1829 = vmatprep.subr.mxu0 0.0
        %1830 = vmatpush1.xpose.msra.mxu0 0.0
        %1831 = vmatprep.subr.mxu0 0.0
        %1832 = vmatpush1.xpose.msra.mxu0 0.0
        %1833 = vmatprep.subr.mxu0 0.0
        %1834 = vmatpush1.xpose.msra.mxu0 0.0
        %1835 = vmatprep.subr.mxu0 0.0
        %1836 = vmatpush1.xpose.msra.mxu0 0.0
        %1837 = vmatprep.subr.mxu0 0.0
        %1838 = vmatpush1.xpose.msra.mxu0 0.0
        %1839 = vmatprep.subr.mxu0 0.0
        %1840 = vmatpush1.xpose.msra.mxu0 0.0
        %1841 = vmatprep.subr.mxu0 0.0
        %1842 = vmatpush1.xpose.msra.mxu0 0.0
        %1843 = vmatprep.subr.mxu0 0.0
        %1844 = vmatpush1.xpose.msra.mxu0 0.0
        %1845 = vmatprep.subr.mxu0 0.0
        %1846 = vmatpush1.xpose.msra.mxu0 0.0
        %1847 = vmatprep.subr.mxu0 0.0
        %1848 = vmatpush1.xpose.msra.mxu0 0.0
        %1849 = vmatprep.subr.mxu0 0.0
        %1850 = vmatpush1.xpose.msra.mxu0 0.0
        %1851 = vmatprep.subr.mxu0 0.0
        %1852 = vmatpush1.xpose.msra.mxu0 0.0
        %1853 = vmatprep.subr.mxu0 0.0
        %1854 = vmatpush1.xpose.msra.mxu0 0.0
        %1855 = vmatprep.subr.mxu0 0.0
        %1856 = vmatpush1.xpose.msra.mxu0 0.0
        %1857 = vmatprep.subr.mxu0 0.0
        %1858 = vmatpush1.xpose.msra.mxu0 0.0
        %1859 = vmatprep.subr.mxu0 0.0
        %1860 = vmatpush1.xpose.msra.mxu0 0.0
        %1861 = vmatprep.subr.mxu0 0.0
        %1862 = vmatpush1.xpose.msra.mxu0 0.0
        %1863 = vmatprep.subr.mxu0 0.0
        %1864 = vmatpush1.xpose.msra.mxu0 0.0
        %1865 = vmatprep.mubr.f32.mxu0 0.0
        %1866 = vmatmul.mubr.f32.gmra.mrb[0].mxu0 %v1797
        %v1867 = vpop.f32.mrb[0].mxu0
        %v1868 = vadd.f32 0.0, %v1867
        %v1869 = vpop.f32.mrb[0].mxu0
        %1870 = vdwg.mxu0
        %1871 = vrot.lane.b32.xlu0 %v377, 112
        %v1872 = vpop.permute.xlu0 %1871
        %1873 = vrot.lane.b32.xlu0 %v377, 80
        %v1874 = vpop.permute.xlu0 %1873
        %v1875 = vsel %vm393, %v1872, 0
        %v1877 = vsel %vm393, %v1874, 0
        %1879 = vmatprep.subr.mxu0 0.0
        %1880 = vmatpush1.xpose.msra.mxu0 %v1877
        %1881 = vmatprep.subr.mxu0 0.0
        %1882 = vmatpush1.xpose.msra.mxu0 0.0
        %1883 = vmatprep.subr.mxu0 0.0
        %1884 = vmatpush1.xpose.msra.mxu0 0.0
        %1885 = vmatprep.subr.mxu0 0.0
        %1886 = vmatpush1.xpose.msra.mxu0 0.0
        %1887 = vmatprep.subr.mxu0 0.0
        %1888 = vmatpush1.xpose.msra.mxu0 0.0
        %1889 = vmatprep.subr.mxu0 0.0
        %1890 = vmatpush1.xpose.msra.mxu0 0.0
        %1891 = vmatprep.subr.mxu0 0.0
        %1892 = vmatpush1.xpose.msra.mxu0 0.0
        %1893 = vmatprep.subr.mxu0 0.0
        %1894 = vmatpush1.xpose.msra.mxu0 0.0
        %1895 = vmatprep.subr.mxu0 0.0
        %1896 = vmatpush1.xpose.msra.mxu0 0.0
        %1897 = vmatprep.subr.mxu0 0.0
        %1898 = vmatpush1.xpose.msra.mxu0 0.0
        %1899 = vmatprep.subr.mxu0 0.0
        %1900 = vmatpush1.xpose.msra.mxu0 0.0
        %1901 = vmatprep.subr.mxu0 0.0
        %1902 = vmatpush1.xpose.msra.mxu0 0.0
        %1903 = vmatprep.subr.mxu0 0.0
        %1904 = vmatpush1.xpose.msra.mxu0 0.0
        %1905 = vmatprep.subr.mxu0 0.0
        %1906 = vmatpush1.xpose.msra.mxu0 0.0
        %1907 = vmatprep.subr.mxu0 0.0
        %1908 = vmatpush1.xpose.msra.mxu0 0.0
        %1909 = vmatprep.subr.mxu0 0.0
        %1910 = vmatpush1.xpose.msra.mxu0 0.0
        %1911 = vmatprep.subr.mxu0 0.0
        %1912 = vmatpush1.xpose.msra.mxu0 0.0
        %1913 = vmatprep.subr.mxu0 0.0
        %1914 = vmatpush1.xpose.msra.mxu0 0.0
        %1915 = vmatprep.subr.mxu0 0.0
        %1916 = vmatpush1.xpose.msra.mxu0 0.0
        %1917 = vmatprep.subr.mxu0 0.0
        %1918 = vmatpush1.xpose.msra.mxu0 0.0
        %1919 = vmatprep.subr.mxu0 0.0
        %1920 = vmatpush1.xpose.msra.mxu0 0.0
        %1921 = vmatprep.subr.mxu0 0.0
        %1922 = vmatpush1.xpose.msra.mxu0 0.0
        %1923 = vmatprep.subr.mxu0 0.0
        %1924 = vmatpush1.xpose.msra.mxu0 0.0
        %1925 = vmatprep.subr.mxu0 0.0
        %1926 = vmatpush1.xpose.msra.mxu0 0.0
        %1927 = vmatprep.subr.mxu0 0.0
        %1928 = vmatpush1.xpose.msra.mxu0 0.0
        %1929 = vmatprep.subr.mxu0 0.0
        %1930 = vmatpush1.xpose.msra.mxu0 0.0
        %1931 = vmatprep.subr.mxu0 0.0
        %1932 = vmatpush1.xpose.msra.mxu0 0.0
        %1933 = vmatprep.subr.mxu0 0.0
        %1934 = vmatpush1.xpose.msra.mxu0 0.0
        %1935 = vmatprep.subr.mxu0 0.0
        %1936 = vmatpush1.xpose.msra.mxu0 0.0
        %1937 = vmatprep.subr.mxu0 0.0
        %1938 = vmatpush1.xpose.msra.mxu0 0.0
        %1939 = vmatprep.subr.mxu0 0.0
        %1940 = vmatpush1.xpose.msra.mxu0 0.0
        %1941 = vmatprep.subr.mxu0 0.0
        %1942 = vmatpush1.xpose.msra.mxu0 0.0
        %1943 = vmatprep.mubr.f32.mxu0 0.0
        %1944 = vmatmul.mubr.f32.gmra.mrb[0].mxu0 %v1875
        %v1945 = vpop.f32.mrb[0].mxu0
        %v1946 = vadd.f32 0.0, %v1945
        %v1947 = vpop.f32.mrb[0].mxu0
        %1948 = vdwg.mxu0
        %1949 = vrot.lane.b32.xlu0 %v382, 112
        %v1950 = vpop.permute.xlu0 %1949
        %1951 = vrot.lane.b32.xlu0 %v382, 80
        %v1952 = vpop.permute.xlu0 %1951
        %v1953 = vsel %vm393, %v1950, 0
        %v1955 = vsel %vm393, %v1952, 0
        %1957 = vmatprep.subr.mxu0 0.0
        %1958 = vmatpush1.xpose.msra.mxu0 %v1955
        %1959 = vmatprep.subr.mxu0 0.0
        %1960 = vmatpush1.xpose.msra.mxu0 0.0
        %1961 = vmatprep.subr.mxu0 0.0
        %1962 = vmatpush1.xpose.msra.mxu0 0.0
        %1963 = vmatprep.subr.mxu0 0.0
        %1964 = vmatpush1.xpose.msra.mxu0 0.0
        %1965 = vmatprep.subr.mxu0 0.0
        %1966 = vmatpush1.xpose.msra.mxu0 0.0
        %1967 = vmatprep.subr.mxu0 0.0
        %1968 = vmatpush1.xpose.msra.mxu0 0.0
        %1969 = vmatprep.subr.mxu0 0.0
        %1970 = vmatpush1.xpose.msra.mxu0 0.0
        %1971 = vmatprep.subr.mxu0 0.0
        %1972 = vmatpush1.xpose.msra.mxu0 0.0
        %1973 = vmatprep.subr.mxu0 0.0
        %1974 = vmatpush1.xpose.msra.mxu0 0.0
        %1975 = vmatprep.subr.mxu0 0.0
        %1976 = vmatpush1.xpose.msra.mxu0 0.0
        %1977 = vmatprep.subr.mxu0 0.0
        %1978 = vmatpush1.xpose.msra.mxu0 0.0
        %1979 = vmatprep.subr.mxu0 0.0
        %1980 = vmatpush1.xpose.msra.mxu0 0.0
        %1981 = vmatprep.subr.mxu0 0.0
        %1982 = vmatpush1.xpose.msra.mxu0 0.0
        %1983 = vmatprep.subr.mxu0 0.0
        %1984 = vmatpush1.xpose.msra.mxu0 0.0
        %1985 = vmatprep.subr.mxu0 0.0
        %1986 = vmatpush1.xpose.msra.mxu0 0.0
        %1987 = vmatprep.subr.mxu0 0.0
        %1988 = vmatpush1.xpose.msra.mxu0 0.0
        %1989 = vmatprep.subr.mxu0 0.0
        %1990 = vmatpush1.xpose.msra.mxu0 0.0
        %1991 = vmatprep.subr.mxu0 0.0
        %1992 = vmatpush1.xpose.msra.mxu0 0.0
        %1993 = vmatprep.subr.mxu0 0.0
        %1994 = vmatpush1.xpose.msra.mxu0 0.0
        %1995 = vmatprep.subr.mxu0 0.0
        %1996 = vmatpush1.xpose.msra.mxu0 0.0
        %1997 = vmatprep.subr.mxu0 0.0
        %1998 = vmatpush1.xpose.msra.mxu0 0.0
        %1999 = vmatprep.subr.mxu0 0.0
        %2000 = vmatpush1.xpose.msra.mxu0 0.0
        %2001 = vmatprep.subr.mxu0 0.0
        %2002 = vmatpush1.xpose.msra.mxu0 0.0
        %2003 = vmatprep.subr.mxu0 0.0
        %2004 = vmatpush1.xpose.msra.mxu0 0.0
        %2005 = vmatprep.subr.mxu0 0.0
        %2006 = vmatpush1.xpose.msra.mxu0 0.0
        %2007 = vmatprep.subr.mxu0 0.0
        %2008 = vmatpush1.xpose.msra.mxu0 0.0
        %2009 = vmatprep.subr.mxu0 0.0
        %2010 = vmatpush1.xpose.msra.mxu0 0.0
        %2011 = vmatprep.subr.mxu0 0.0
        %2012 = vmatpush1.xpose.msra.mxu0 0.0
        %2013 = vmatprep.subr.mxu0 0.0
        %2014 = vmatpush1.xpose.msra.mxu0 0.0
        %2015 = vmatprep.subr.mxu0 0.0
        %2016 = vmatpush1.xpose.msra.mxu0 0.0
        %2017 = vmatprep.subr.mxu0 0.0
        %2018 = vmatpush1.xpose.msra.mxu0 0.0
        %2019 = vmatprep.subr.mxu0 0.0
        %2020 = vmatpush1.xpose.msra.mxu0 0.0
        %2021 = vmatprep.mubr.f32.mxu0 0.0
        %2022 = vmatmul.mubr.f32.gmra.mrb[0].mxu0 %v1953
        %v2023 = vpop.f32.mrb[0].mxu0
        %v2024 = vadd.f32 0.0, %v2023
        %v2025 = vpop.f32.mrb[0].mxu0
        %2026 = vdwg.mxu0
        %v2027 = vsel %vm393, %v1790, -inf
        %2028 = vmax.xlane.f32.xlu0 %v2027
        %v2029 = vpop.xlane.xlu0 %2028
        %v2030 = vsel %vm393, %v1868, -inf
        %2031 = vmax.xlane.f32.xlu0 %v2030
        %v2032 = vpop.xlane.xlu0 %2031
        %v2033 = vsel %vm393, %v1946, -inf
        %2034 = vmax.xlane.f32.xlu0 %v2033
        %v2035 = vpop.xlane.xlu0 %2034
        %v2036 = vsel %vm393, %v2024, -inf
        %2037 = vmax.xlane.f32.xlu0 %v2036
        %v2038 = vpop.xlane.xlu0 %2037
        %v2039 = vsub.f32 %v1790, %v2029
        %v2040 = vsub.f32 %v1868, %v2032
        %v2041 = vsub.f32 %v1946, %v2035
        %v2042 = vsub.f32 %v2024, %v2038
        %v2043 = vmul.f32 %v2039, 1.442695
        %v2044 = vpow.pop %v2043
        %v2045 = vmul.f32 %v2040, 1.442695
        %v2046 = vpow.pop %v2045
        %v2047 = vmul.f32 %v2041, 1.442695
        %v2048 = vpow.pop %v2047
        %v2049 = vmul.f32 %v2042, 1.442695
        %v2050 = vpow.pop %v2049
        %v2051 = vsel %vm393, %v2044, 0.0
        %2052 = vadd.xlane.f32.xlu0 %v2051
        %v2053 = vpop.xlane.xlu0 %2052
        %v2054 = vsel %vm393, %v2046, 0.0
        %2055 = vadd.xlane.f32.xlu0 %v2054
        %v2056 = vpop.xlane.xlu0 %2055
        %v2057 = vsel %vm393, %v2048, 0.0
        %2058 = vadd.xlane.f32.xlu0 %v2057
        %v2059 = vpop.xlane.xlu0 %2058
        %v2060 = vsel %vm393, %v2050, 0.0
        %2061 = vadd.xlane.f32.xlu0 %v2060
        %v2062 = vpop.xlane.xlu0 %2061
        %2063 = vrot.lane.b32.xlu0 %v367, 48
        %v2064 = vpop.permute.xlu0 %2063
        %v2067 = vsel %vm393, %v2044, 0
        %2069 = vmatprep.subr.mxu0 0.0
        %2070 = vmatpush1.msra.mxu0 %v2064
        %2071 = vmatprep.subr.mxu0 0.0
        %2072 = vmatpush1.msra.mxu0 0.0
        %2073 = vmatprep.subr.mxu0 0.0
        %2074 = vmatpush1.msra.mxu0 0.0
        %2075 = vmatprep.subr.mxu0 0.0
        %2076 = vmatpush1.msra.mxu0 0.0
        %2077 = vmatprep.subr.mxu0 0.0
        %2078 = vmatpush1.msra.mxu0 0.0
        %2079 = vmatprep.subr.mxu0 0.0
        %2080 = vmatpush1.msra.mxu0 0.0
        %2081 = vmatprep.subr.mxu0 0.0
        %2082 = vmatpush1.msra.mxu0 0.0
        %2083 = vmatprep.subr.mxu0 0.0
        %2084 = vmatpush1.msra.mxu0 0.0
        %2085 = vmatprep.subr.mxu0 0.0
        %2086 = vmatpush1.msra.mxu0 0.0
        %2087 = vmatprep.subr.mxu0 0.0
        %2088 = vmatpush1.msra.mxu0 0.0
        %2089 = vmatprep.subr.mxu0 0.0
        %2090 = vmatpush1.msra.mxu0 0.0
        %2091 = vmatprep.subr.mxu0 0.0
        %2092 = vmatpush1.msra.mxu0 0.0
        %2093 = vmatprep.subr.mxu0 0.0
        %2094 = vmatpush1.msra.mxu0 0.0
        %2095 = vmatprep.subr.mxu0 0.0
        %2096 = vmatpush1.msra.mxu0 0.0
        %2097 = vmatprep.subr.mxu0 0.0
        %2098 = vmatpush1.msra.mxu0 0.0
        %2099 = vmatprep.subr.mxu0 0.0
        %2100 = vmatpush1.msra.mxu0 0.0
        %2101 = vmatprep.subr.mxu0 0.0
        %2102 = vmatpush1.msra.mxu0 0.0
        %2103 = vmatprep.subr.mxu0 0.0
        %2104 = vmatpush1.msra.mxu0 0.0
        %2105 = vmatprep.subr.mxu0 0.0
        %2106 = vmatpush1.msra.mxu0 0.0
        %2107 = vmatprep.subr.mxu0 0.0
        %2108 = vmatpush1.msra.mxu0 0.0
        %2109 = vmatprep.subr.mxu0 0.0
        %2110 = vmatpush1.msra.mxu0 0.0
        %2111 = vmatprep.subr.mxu0 0.0
        %2112 = vmatpush1.msra.mxu0 0.0
        %2113 = vmatprep.subr.mxu0 0.0
        %2114 = vmatpush1.msra.mxu0 0.0
        %2115 = vmatprep.subr.mxu0 0.0
        %2116 = vmatpush1.msra.mxu0 0.0
        %2117 = vmatprep.subr.mxu0 0.0
        %2118 = vmatpush1.msra.mxu0 0.0
        %2119 = vmatprep.subr.mxu0 0.0
        %2120 = vmatpush1.msra.mxu0 0.0
        %2121 = vmatprep.subr.mxu0 0.0
        %2122 = vmatpush1.msra.mxu0 0.0
        %2123 = vmatprep.subr.mxu0 0.0
        %2124 = vmatpush1.msra.mxu0 0.0
        %2125 = vmatprep.subr.mxu0 0.0
        %2126 = vmatpush1.msra.mxu0 0.0
        %2127 = vmatprep.subr.mxu0 0.0
        %2128 = vmatpush1.msra.mxu0 0.0
        %2129 = vmatprep.subr.mxu0 0.0
        %2130 = vmatpush1.msra.mxu0 0.0
        %2131 = vmatprep.subr.mxu0 0.0
        %2132 = vmatpush1.msra.mxu0 0.0
        %2133 = vmatprep.mubr.f32.mxu0 0.0
        %2134 = vmatmul.mubr.f32.gmra.mrb[0].mxu0 %v2067
        %v2135 = vpop.f32.mrb[0].mxu0
        %v2136 = vadd.f32 0.0, %v2135
        %v2137 = vpop.f32.mrb[0].mxu0
        %2138 = vdwg.mxu0
        %2139 = vrot.lane.b32.xlu0 %v372, 48
        %v2140 = vpop.permute.xlu0 %2139
        %v2143 = vsel %vm393, %v2046, 0
        %2145 = vmatprep.subr.mxu0 0.0
        %2146 = vmatpush1.msra.mxu0 %v2140
        %2147 = vmatprep.subr.mxu0 0.0
        %2148 = vmatpush1.msra.mxu0 0.0
        %2149 = vmatprep.subr.mxu0 0.0
        %2150 = vmatpush1.msra.mxu0 0.0
        %2151 = vmatprep.subr.mxu0 0.0
        %2152 = vmatpush1.msra.mxu0 0.0
        %2153 = vmatprep.subr.mxu0 0.0
        %2154 = vmatpush1.msra.mxu0 0.0
        %2155 = vmatprep.subr.mxu0 0.0
        %2156 = vmatpush1.msra.mxu0 0.0
        %2157 = vmatprep.subr.mxu0 0.0
        %2158 = vmatpush1.msra.mxu0 0.0
        %2159 = vmatprep.subr.mxu0 0.0
        %2160 = vmatpush1.msra.mxu0 0.0
        %2161 = vmatprep.subr.mxu0 0.0
        %2162 = vmatpush1.msra.mxu0 0.0
        %2163 = vmatprep.subr.mxu0 0.0
        %2164 = vmatpush1.msra.mxu0 0.0
        %2165 = vmatprep.subr.mxu0 0.0
        %2166 = vmatpush1.msra.mxu0 0.0
        %2167 = vmatprep.subr.mxu0 0.0
        %2168 = vmatpush1.msra.mxu0 0.0
        %2169 = vmatprep.subr.mxu0 0.0
        %2170 = vmatpush1.msra.mxu0 0.0
        %2171 = vmatprep.subr.mxu0 0.0
        %2172 = vmatpush1.msra.mxu0 0.0
        %2173 = vmatprep.subr.mxu0 0.0
        %2174 = vmatpush1.msra.mxu0 0.0
        %2175 = vmatprep.subr.mxu0 0.0
        %2176 = vmatpush1.msra.mxu0 0.0
        %2177 = vmatprep.subr.mxu0 0.0
        %2178 = vmatpush1.msra.mxu0 0.0
        %2179 = vmatprep.subr.mxu0 0.0
        %2180 = vmatpush1.msra.mxu0 0.0
        %2181 = vmatprep.subr.mxu0 0.0
        %2182 = vmatpush1.msra.mxu0 0.0
        %2183 = vmatprep.subr.mxu0 0.0
        %2184 = vmatpush1.msra.mxu0 0.0
        %2185 = vmatprep.subr.mxu0 0.0
        %2186 = vmatpush1.msra.mxu0 0.0
        %2187 = vmatprep.subr.mxu0 0.0
        %2188 = vmatpush1.msra.mxu0 0.0
        %2189 = vmatprep.subr.mxu0 0.0
        %2190 = vmatpush1.msra.mxu0 0.0
        %2191 = vmatprep.subr.mxu0 0.0
        %2192 = vmatpush1.msra.mxu0 0.0
        %2193 = vmatprep.subr.mxu0 0.0
        %2194 = vmatpush1.msra.mxu0 0.0
        %2195 = vmatprep.subr.mxu0 0.0
        %2196 = vmatpush1.msra.mxu0 0.0
        %2197 = vmatprep.subr.mxu0 0.0
        %2198 = vmatpush1.msra.mxu0 0.0
        %2199 = vmatprep.subr.mxu0 0.0
        %2200 = vmatpush1.msra.mxu0 0.0
        %2201 = vmatprep.subr.mxu0 0.0
        %2202 = vmatpush1.msra.mxu0 0.0
        %2203 = vmatprep.subr.mxu0 0.0
        %2204 = vmatpush1.msra.mxu0 0.0
        %2205 = vmatprep.subr.mxu0 0.0
        %2206 = vmatpush1.msra.mxu0 0.0
        %2207 = vmatprep.subr.mxu0 0.0
        %2208 = vmatpush1.msra.mxu0 0.0
        %2209 = vmatprep.mubr.f32.mxu0 0.0
        %2210 = vmatmul.mubr.f32.gmra.mrb[0].mxu0 %v2143
        %v2211 = vpop.f32.mrb[0].mxu0
        %v2212 = vadd.f32 0.0, %v2211
        %v2213 = vpop.f32.mrb[0].mxu0
        %2214 = vdwg.mxu0
        %2215 = vrot.lane.b32.xlu0 %v377, 48
        %v2216 = vpop.permute.xlu0 %2215
        %v2219 = vsel %vm393, %v2048, 0
        %2221 = vmatprep.subr.mxu0 0.0
        %2222 = vmatpush1.msra.mxu0 %v2216
        %2223 = vmatprep.subr.mxu0 0.0
        %2224 = vmatpush1.msra.mxu0 0.0
        %2225 = vmatprep.subr.mxu0 0.0
        %2226 = vmatpush1.msra.mxu0 0.0
        %2227 = vmatprep.subr.mxu0 0.0
        %2228 = vmatpush1.msra.mxu0 0.0
        %2229 = vmatprep.subr.mxu0 0.0
        %2230 = vmatpush1.msra.mxu0 0.0
        %2231 = vmatprep.subr.mxu0 0.0
        %2232 = vmatpush1.msra.mxu0 0.0
        %2233 = vmatprep.subr.mxu0 0.0
        %2234 = vmatpush1.msra.mxu0 0.0
        %2235 = vmatprep.subr.mxu0 0.0
        %2236 = vmatpush1.msra.mxu0 0.0
        %2237 = vmatprep.subr.mxu0 0.0
        %2238 = vmatpush1.msra.mxu0 0.0
        %2239 = vmatprep.subr.mxu0 0.0
        %2240 = vmatpush1.msra.mxu0 0.0
        %2241 = vmatprep.subr.mxu0 0.0
        %2242 = vmatpush1.msra.mxu0 0.0
        %2243 = vmatprep.subr.mxu0 0.0
        %2244 = vmatpush1.msra.mxu0 0.0
        %2245 = vmatprep.subr.mxu0 0.0
        %2246 = vmatpush1.msra.mxu0 0.0
        %2247 = vmatprep.subr.mxu0 0.0
        %2248 = vmatpush1.msra.mxu0 0.0
        %2249 = vmatprep.subr.mxu0 0.0
        %2250 = vmatpush1.msra.mxu0 0.0
        %2251 = vmatprep.subr.mxu0 0.0
        %2252 = vmatpush1.msra.mxu0 0.0
        %2253 = vmatprep.subr.mxu0 0.0
        %2254 = vmatpush1.msra.mxu0 0.0
        %2255 = vmatprep.subr.mxu0 0.0
        %2256 = vmatpush1.msra.mxu0 0.0
        %2257 = vmatprep.subr.mxu0 0.0
        %2258 = vmatpush1.msra.mxu0 0.0
        %2259 = vmatprep.subr.mxu0 0.0
        %2260 = vmatpush1.msra.mxu0 0.0
        %2261 = vmatprep.subr.mxu0 0.0
        %2262 = vmatpush1.msra.mxu0 0.0
        %2263 = vmatprep.subr.mxu0 0.0
        %2264 = vmatpush1.msra.mxu0 0.0
        %2265 = vmatprep.subr.mxu0 0.0
        %2266 = vmatpush1.msra.mxu0 0.0
        %2267 = vmatprep.subr.mxu0 0.0
        %2268 = vmatpush1.msra.mxu0 0.0
        %2269 = vmatprep.subr.mxu0 0.0
        %2270 = vmatpush1.msra.mxu0 0.0
        %2271 = vmatprep.subr.mxu0 0.0
        %2272 = vmatpush1.msra.mxu0 0.0
        %2273 = vmatprep.subr.mxu0 0.0
        %2274 = vmatpush1.msra.mxu0 0.0
        %2275 = vmatprep.subr.mxu0 0.0
        %2276 = vmatpush1.msra.mxu0 0.0
        %2277 = vmatprep.subr.mxu0 0.0
        %2278 = vmatpush1.msra.mxu0 0.0
        %2279 = vmatprep.subr.mxu0 0.0
        %2280 = vmatpush1.msra.mxu0 0.0
        %2281 = vmatprep.subr.mxu0 0.0
        %2282 = vmatpush1.msra.mxu0 0.0
        %2283 = vmatprep.subr.mxu0 0.0
        %2284 = vmatpush1.msra.mxu0 0.0
        %2285 = vmatprep.mubr.f32.mxu0 0.0
        %2286 = vmatmul.mubr.f32.gmra.mrb[0].mxu0 %v2219
        %v2287 = vpop.f32.mrb[0].mxu0
        %v2288 = vadd.f32 0.0, %v2287
        %v2289 = vpop.f32.mrb[0].mxu0
        %2290 = vdwg.mxu0
        %2291 = vrot.lane.b32.xlu0 %v382, 48
        %v2292 = vpop.permute.xlu0 %2291
        %v2295 = vsel %vm393, %v2050, 0
        %2297 = vmatprep.subr.mxu0 0.0
        %2298 = vmatpush1.msra.mxu0 %v2292
        %2299 = vmatprep.subr.mxu0 0.0
        %2300 = vmatpush1.msra.mxu0 0.0
        %2301 = vmatprep.subr.mxu0 0.0
        %2302 = vmatpush1.msra.mxu0 0.0
        %2303 = vmatprep.subr.mxu0 0.0
        %2304 = vmatpush1.msra.mxu0 0.0
        %2305 = vmatprep.subr.mxu0 0.0
        %2306 = vmatpush1.msra.mxu0 0.0
        %2307 = vmatprep.subr.mxu0 0.0
        %2308 = vmatpush1.msra.mxu0 0.0
        %2309 = vmatprep.subr.mxu0 0.0
        %2310 = vmatpush1.msra.mxu0 0.0
        %2311 = vmatprep.subr.mxu0 0.0
        %2312 = vmatpush1.msra.mxu0 0.0
        %2313 = vmatprep.subr.mxu0 0.0
        %2314 = vmatpush1.msra.mxu0 0.0
        %2315 = vmatprep.subr.mxu0 0.0
        %2316 = vmatpush1.msra.mxu0 0.0
        %2317 = vmatprep.subr.mxu0 0.0
        %2318 = vmatpush1.msra.mxu0 0.0
        %2319 = vmatprep.subr.mxu0 0.0
        %2320 = vmatpush1.msra.mxu0 0.0
        %2321 = vmatprep.subr.mxu0 0.0
        %2322 = vmatpush1.msra.mxu0 0.0
        %2323 = vmatprep.subr.mxu0 0.0
        %2324 = vmatpush1.msra.mxu0 0.0
        %2325 = vmatprep.subr.mxu0 0.0
        %2326 = vmatpush1.msra.mxu0 0.0
        %2327 = vmatprep.subr.mxu0 0.0
        %2328 = vmatpush1.msra.mxu0 0.0
        %2329 = vmatprep.subr.mxu0 0.0
        %2330 = vmatpush1.msra.mxu0 0.0
        %2331 = vmatprep.subr.mxu0 0.0
        %2332 = vmatpush1.msra.mxu0 0.0
        %2333 = vmatprep.subr.mxu0 0.0
        %2334 = vmatpush1.msra.mxu0 0.0
        %2335 = vmatprep.subr.mxu0 0.0
        %2336 = vmatpush1.msra.mxu0 0.0
        %2337 = vmatprep.subr.mxu0 0.0
        %2338 = vmatpush1.msra.mxu0 0.0
        %2339 = vmatprep.subr.mxu0 0.0
        %2340 = vmatpush1.msra.mxu0 0.0
        %2341 = vmatprep.subr.mxu0 0.0
        %2342 = vmatpush1.msra.mxu0 0.0
        %2343 = vmatprep.subr.mxu0 0.0
        %2344 = vmatpush1.msra.mxu0 0.0
        %2345 = vmatprep.subr.mxu0 0.0
        %2346 = vmatpush1.msra.mxu0 0.0
        %2347 = vmatprep.subr.mxu0 0.0
        %2348 = vmatpush1.msra.mxu0 0.0
        %2349 = vmatprep.subr.mxu0 0.0
        %2350 = vmatpush1.msra.mxu0 0.0
        %2351 = vmatprep.subr.mxu0 0.0
        %2352 = vmatpush1.msra.mxu0 0.0
        %2353 = vmatprep.subr.mxu0 0.0
        %2354 = vmatpush1.msra.mxu0 0.0
        %2355 = vmatprep.subr.mxu0 0.0
        %2356 = vmatpush1.msra.mxu0 0.0
        %2357 = vmatprep.subr.mxu0 0.0
        %2358 = vmatpush1.msra.mxu0 0.0
        %2359 = vmatprep.subr.mxu0 0.0
        %2360 = vmatpush1.msra.mxu0 0.0
        %2361 = vmatprep.mubr.f32.mxu0 0.0
        %2362 = vmatmul.mubr.f32.gmra.mrb[0].mxu0 %v2295
        %v2363 = vpop.f32.mrb[0].mxu0
        %v2364 = vadd.f32 0.0, %v2363
        %v2365 = vpop.f32.mrb[0].mxu0
        %2366 = vdwg.mxu0
        %v2367 = vrcp.pop %v2053
        %v2368 = vmul.f32 1.0, %v2367
        %v2369 = vrcp.pop %v2056
        %v2370 = vmul.f32 1.0, %v2369
        %v2371 = vrcp.pop %v2059
        %v2372 = vmul.f32 1.0, %v2371
        %v2373 = vrcp.pop %v2062
        %v2374 = vmul.f32 1.0, %v2373
        %v2375 = vmul.f32 %v2136, %v2368
        %v2376 = vmul.f32 %v2212, %v2370
        %v2377 = vmul.f32 %v2288, %v2372
        %v2378 = vmul.f32 %v2364, %v2374
        %2379 = vrot.lane.b32.xlu0 %v367, 104
        %v2380 = vpop.permute.xlu0 %2379
        %2381 = vrot.lane.b32.xlu0 %v367, 72
        %v2382 = vpop.permute.xlu0 %2381
        %v2383 = vsel %vm393, %v2380, 0
        %v2385 = vsel %vm393, %v2382, 0
        %2387 = vmatprep.subr.mxu0 0.0
        %2388 = vmatpush1.xpose.msra.mxu0 %v2385
        %2389 = vmatprep.subr.mxu0 0.0
        %2390 = vmatpush1.xpose.msra.mxu0 0.0
        %2391 = vmatprep.subr.mxu0 0.0
        %2392 = vmatpush1.xpose.msra.mxu0 0.0
        %2393 = vmatprep.subr.mxu0 0.0
        %2394 = vmatpush1.xpose.msra.mxu0 0.0
        %2395 = vmatprep.subr.mxu0 0.0
        %2396 = vmatpush1.xpose.msra.mxu0 0.0
        %2397 = vmatprep.subr.mxu0 0.0
        %2398 = vmatpush1.xpose.msra.mxu0 0.0
        %2399 = vmatprep.subr.mxu0 0.0
        %2400 = vmatpush1.xpose.msra.mxu0 0.0
        %2401 = vmatprep.subr.mxu0 0.0
        %2402 = vmatpush1.xpose.msra.mxu0 0.0
        %2403 = vmatprep.subr.mxu0 0.0
        %2404 = vmatpush1.xpose.msra.mxu0 0.0
        %2405 = vmatprep.subr.mxu0 0.0
        %2406 = vmatpush1.xpose.msra.mxu0 0.0
        %2407 = vmatprep.subr.mxu0 0.0
        %2408 = vmatpush1.xpose.msra.mxu0 0.0
        %2409 = vmatprep.subr.mxu0 0.0
        %2410 = vmatpush1.xpose.msra.mxu0 0.0
        %2411 = vmatprep.subr.mxu0 0.0
        %2412 = vmatpush1.xpose.msra.mxu0 0.0
        %2413 = vmatprep.subr.mxu0 0.0
        %2414 = vmatpush1.xpose.msra.mxu0 0.0
        %2415 = vmatprep.subr.mxu0 0.0
        %2416 = vmatpush1.xpose.msra.mxu0 0.0
        %2417 = vmatprep.subr.mxu0 0.0
        %2418 = vmatpush1.xpose.msra.mxu0 0.0
        %2419 = vmatprep.subr.mxu0 0.0
        %2420 = vmatpush1.xpose.msra.mxu0 0.0
        %2421 = vmatprep.subr.mxu0 0.0
        %2422 = vmatpush1.xpose.msra.mxu0 0.0
        %2423 = vmatprep.subr.mxu0 0.0
        %2424 = vmatpush1.xpose.msra.mxu0 0.0
        %2425 = vmatprep.subr.mxu0 0.0
        %2426 = vmatpush1.xpose.msra.mxu0 0.0
        %2427 = vmatprep.subr.mxu0 0.0
        %2428 = vmatpush1.xpose.msra.mxu0 0.0
        %2429 = vmatprep.subr.mxu0 0.0
        %2430 = vmatpush1.xpose.msra.mxu0 0.0
        %2431 = vmatprep.subr.mxu0 0.0
        %2432 = vmatpush1.xpose.msra.mxu0 0.0
        %2433 = vmatprep.subr.mxu0 0.0
        %2434 = vmatpush1.xpose.msra.mxu0 0.0
        %2435 = vmatprep.subr.mxu0 0.0
        %2436 = vmatpush1.xpose.msra.mxu0 0.0
        %2437 = vmatprep.subr.mxu0 0.0
        %2438 = vmatpush1.xpose.msra.mxu0 0.0
        %2439 = vmatprep.subr.mxu0 0.0
        %2440 = vmatpush1.xpose.msra.mxu0 0.0
        %2441 = vmatprep.subr.mxu0 0.0
        %2442 = vmatpush1.xpose.msra.mxu0 0.0
        %2443 = vmatprep.subr.mxu0 0.0
        %2444 = vmatpush1.xpose.msra.mxu0 0.0
        %2445 = vmatprep.subr.mxu0 0.0
        %2446 = vmatpush1.xpose.msra.mxu0 0.0
        %2447 = vmatprep.subr.mxu0 0.0
        %2448 = vmatpush1.xpose.msra.mxu0 0.0
        %2449 = vmatprep.subr.mxu0 0.0
        %2450 = vmatpush1.xpose.msra.mxu0 0.0
        %2451 = vmatprep.mubr.f32.mxu0 0.0
        %2452 = vmatmul.mubr.f32.gmra.mrb[0].mxu0 %v2383
        %v2453 = vpop.f32.mrb[0].mxu0
        %v2454 = vadd.f32 0.0, %v2453
        %v2455 = vpop.f32.mrb[0].mxu0
        %2456 = vdwg.mxu0
        %2457 = vrot.lane.b32.xlu0 %v372, 104
        %v2458 = vpop.permute.xlu0 %2457
        %2459 = vrot.lane.b32.xlu0 %v372, 72
        %v2460 = vpop.permute.xlu0 %2459
        %v2461 = vsel %vm393, %v2458, 0
        %v2463 = vsel %vm393, %v2460, 0
        %2465 = vmatprep.subr.mxu0 0.0
        %2466 = vmatpush1.xpose.msra.mxu0 %v2463
        %2467 = vmatprep.subr.mxu0 0.0
        %2468 = vmatpush1.xpose.msra.mxu0 0.0
        %2469 = vmatprep.subr.mxu0 0.0
        %2470 = vmatpush1.xpose.msra.mxu0 0.0
        %2471 = vmatprep.subr.mxu0 0.0
        %2472 = vmatpush1.xpose.msra.mxu0 0.0
        %2473 = vmatprep.subr.mxu0 0.0
        %2474 = vmatpush1.xpose.msra.mxu0 0.0
        %2475 = vmatprep.subr.mxu0 0.0
        %2476 = vmatpush1.xpose.msra.mxu0 0.0
        %2477 = vmatprep.subr.mxu0 0.0
        %2478 = vmatpush1.xpose.msra.mxu0 0.0
        %2479 = vmatprep.subr.mxu0 0.0
        %2480 = vmatpush1.xpose.msra.mxu0 0.0
        %2481 = vmatprep.subr.mxu0 0.0
        %2482 = vmatpush1.xpose.msra.mxu0 0.0
        %2483 = vmatprep.subr.mxu0 0.0
        %2484 = vmatpush1.xpose.msra.mxu0 0.0
        %2485 = vmatprep.subr.mxu0 0.0
        %2486 = vmatpush1.xpose.msra.mxu0 0.0
        %2487 = vmatprep.subr.mxu0 0.0
        %2488 = vmatpush1.xpose.msra.mxu0 0.0
        %2489 = vmatprep.subr.mxu0 0.0
        %2490 = vmatpush1.xpose.msra.mxu0 0.0
        %2491 = vmatprep.subr.mxu0 0.0
        %2492 = vmatpush1.xpose.msra.mxu0 0.0
        %2493 = vmatprep.subr.mxu0 0.0
        %2494 = vmatpush1.xpose.msra.mxu0 0.0
        %2495 = vmatprep.subr.mxu0 0.0
        %2496 = vmatpush1.xpose.msra.mxu0 0.0
        %2497 = vmatprep.subr.mxu0 0.0
        %2498 = vmatpush1.xpose.msra.mxu0 0.0
        %2499 = vmatprep.subr.mxu0 0.0
        %2500 = vmatpush1.xpose.msra.mxu0 0.0
        %2501 = vmatprep.subr.mxu0 0.0
        %2502 = vmatpush1.xpose.msra.mxu0 0.0
        %2503 = vmatprep.subr.mxu0 0.0
        %2504 = vmatpush1.xpose.msra.mxu0 0.0
        %2505 = vmatprep.subr.mxu0 0.0
        %2506 = vmatpush1.xpose.msra.mxu0 0.0
        %2507 = vmatprep.subr.mxu0 0.0
        %2508 = vmatpush1.xpose.msra.mxu0 0.0
        %2509 = vmatprep.subr.mxu0 0.0
        %2510 = vmatpush1.xpose.msra.mxu0 0.0
        %2511 = vmatprep.subr.mxu0 0.0
        %2512 = vmatpush1.xpose.msra.mxu0 0.0
        %2513 = vmatprep.subr.mxu0 0.0
        %2514 = vmatpush1.xpose.msra.mxu0 0.0
        %2515 = vmatprep.subr.mxu0 0.0
        %2516 = vmatpush1.xpose.msra.mxu0 0.0
        %2517 = vmatprep.subr.mxu0 0.0
        %2518 = vmatpush1.xpose.msra.mxu0 0.0
        %2519 = vmatprep.subr.mxu0 0.0
        %2520 = vmatpush1.xpose.msra.mxu0 0.0
        %2521 = vmatprep.subr.mxu0 0.0
        %2522 = vmatpush1.xpose.msra.mxu0 0.0
        %2523 = vmatprep.subr.mxu0 0.0
        %2524 = vmatpush1.xpose.msra.mxu0 0.0
        %2525 = vmatprep.subr.mxu0 0.0
        %2526 = vmatpush1.xpose.msra.mxu0 0.0
        %2527 = vmatprep.subr.mxu0 0.0
        %2528 = vmatpush1.xpose.msra.mxu0 0.0
        %2529 = vmatprep.mubr.f32.mxu0 0.0
        %2530 = vmatmul.mubr.f32.gmra.mrb[0].mxu0 %v2461
        %v2531 = vpop.f32.mrb[0].mxu0
        %v2532 = vadd.f32 0.0, %v2531
        %v2533 = vpop.f32.mrb[0].mxu0
        %2534 = vdwg.mxu0
        %2535 = vrot.lane.b32.xlu0 %v377, 104
        %v2536 = vpop.permute.xlu0 %2535
        %2537 = vrot.lane.b32.xlu0 %v377, 72
        %v2538 = vpop.permute.xlu0 %2537
        %v2539 = vsel %vm393, %v2536, 0
        %v2541 = vsel %vm393, %v2538, 0
        %2543 = vmatprep.subr.mxu0 0.0
        %2544 = vmatpush1.xpose.msra.mxu0 %v2541
        %2545 = vmatprep.subr.mxu0 0.0
        %2546 = vmatpush1.xpose.msra.mxu0 0.0
        %2547 = vmatprep.subr.mxu0 0.0
        %2548 = vmatpush1.xpose.msra.mxu0 0.0
        %2549 = vmatprep.subr.mxu0 0.0
        %2550 = vmatpush1.xpose.msra.mxu0 0.0
        %2551 = vmatprep.subr.mxu0 0.0
        %2552 = vmatpush1.xpose.msra.mxu0 0.0
        %2553 = vmatprep.subr.mxu0 0.0
        %2554 = vmatpush1.xpose.msra.mxu0 0.0
        %2555 = vmatprep.subr.mxu0 0.0
        %2556 = vmatpush1.xpose.msra.mxu0 0.0
        %2557 = vmatprep.subr.mxu0 0.0
        %2558 = vmatpush1.xpose.msra.mxu0 0.0
        %2559 = vmatprep.subr.mxu0 0.0
        %2560 = vmatpush1.xpose.msra.mxu0 0.0
        %2561 = vmatprep.subr.mxu0 0.0
        %2562 = vmatpush1.xpose.msra.mxu0 0.0
        %2563 = vmatprep.subr.mxu0 0.0
        %2564 = vmatpush1.xpose.msra.mxu0 0.0
        %2565 = vmatprep.subr.mxu0 0.0
        %2566 = vmatpush1.xpose.msra.mxu0 0.0
        %2567 = vmatprep.subr.mxu0 0.0
        %2568 = vmatpush1.xpose.msra.mxu0 0.0
        %2569 = vmatprep.subr.mxu0 0.0
        %2570 = vmatpush1.xpose.msra.mxu0 0.0
        %2571 = vmatprep.subr.mxu0 0.0
        %2572 = vmatpush1.xpose.msra.mxu0 0.0
        %2573 = vmatprep.subr.mxu0 0.0
        %2574 = vmatpush1.xpose.msra.mxu0 0.0
        %2575 = vmatprep.subr.mxu0 0.0
        %2576 = vmatpush1.xpose.msra.mxu0 0.0
        %2577 = vmatprep.subr.mxu0 0.0
        %2578 = vmatpush1.xpose.msra.mxu0 0.0
        %2579 = vmatprep.subr.mxu0 0.0
        %2580 = vmatpush1.xpose.msra.mxu0 0.0
        %2581 = vmatprep.subr.mxu0 0.0
        %2582 = vmatpush1.xpose.msra.mxu0 0.0
        %2583 = vmatprep.subr.mxu0 0.0
        %2584 = vmatpush1.xpose.msra.mxu0 0.0
        %2585 = vmatprep.subr.mxu0 0.0
        %2586 = vmatpush1.xpose.msra.mxu0 0.0
        %2587 = vmatprep.subr.mxu0 0.0
        %2588 = vmatpush1.xpose.msra.mxu0 0.0
        %2589 = vmatprep.subr.mxu0 0.0
        %2590 = vmatpush1.xpose.msra.mxu0 0.0
        %2591 = vmatprep.subr.mxu0 0.0
        %2592 = vmatpush1.xpose.msra.mxu0 0.0
        %2593 = vmatprep.subr.mxu0 0.0
        %2594 = vmatpush1.xpose.msra.mxu0 0.0
        %2595 = vmatprep.subr.mxu0 0.0
        %2596 = vmatpush1.xpose.msra.mxu0 0.0
        %2597 = vmatprep.subr.mxu0 0.0
        %2598 = vmatpush1.xpose.msra.mxu0 0.0
        %2599 = vmatprep.subr.mxu0 0.0
        %2600 = vmatpush1.xpose.msra.mxu0 0.0
        %2601 = vmatprep.subr.mxu0 0.0
        %2602 = vmatpush1.xpose.msra.mxu0 0.0
        %2603 = vmatprep.subr.mxu0 0.0
        %2604 = vmatpush1.xpose.msra.mxu0 0.0
        %2605 = vmatprep.subr.mxu0 0.0
        %2606 = vmatpush1.xpose.msra.mxu0 0.0
        %2607 = vmatprep.mubr.f32.mxu0 0.0
        %2608 = vmatmul.mubr.f32.gmra.mrb[0].mxu0 %v2539
        %v2609 = vpop.f32.mrb[0].mxu0
        %v2610 = vadd.f32 0.0, %v2609
        %v2611 = vpop.f32.mrb[0].mxu0
        %2612 = vdwg.mxu0
        %2613 = vrot.lane.b32.xlu0 %v382, 104
        %v2614 = vpop.permute.xlu0 %2613
        %2615 = vrot.lane.b32.xlu0 %v382, 72
        %v2616 = vpop.permute.xlu0 %2615
        %v2617 = vsel %vm393, %v2614, 0
        %v2619 = vsel %vm393, %v2616, 0
        %2621 = vmatprep.subr.mxu0 0.0
        %2622 = vmatpush1.xpose.msra.mxu0 %v2619
        %2623 = vmatprep.subr.mxu0 0.0
        %2624 = vmatpush1.xpose.msra.mxu0 0.0
        %2625 = vmatprep.subr.mxu0 0.0
        %2626 = vmatpush1.xpose.msra.mxu0 0.0
        %2627 = vmatprep.subr.mxu0 0.0
        %2628 = vmatpush1.xpose.msra.mxu0 0.0
        %2629 = vmatprep.subr.mxu0 0.0
        %2630 = vmatpush1.xpose.msra.mxu0 0.0
        %2631 = vmatprep.subr.mxu0 0.0
        %2632 = vmatpush1.xpose.msra.mxu0 0.0
        %2633 = vmatprep.subr.mxu0 0.0
        %2634 = vmatpush1.xpose.msra.mxu0 0.0
        %2635 = vmatprep.subr.mxu0 0.0
        %2636 = vmatpush1.xpose.msra.mxu0 0.0
        %2637 = vmatprep.subr.mxu0 0.0
        %2638 = vmatpush1.xpose.msra.mxu0 0.0
        %2639 = vmatprep.subr.mxu0 0.0
        %2640 = vmatpush1.xpose.msra.mxu0 0.0
        %2641 = vmatprep.subr.mxu0 0.0
        %2642 = vmatpush1.xpose.msra.mxu0 0.0
        %2643 = vmatprep.subr.mxu0 0.0
        %2644 = vmatpush1.xpose.msra.mxu0 0.0
        %2645 = vmatprep.subr.mxu0 0.0
        %2646 = vmatpush1.xpose.msra.mxu0 0.0
        %2647 = vmatprep.subr.mxu0 0.0
        %2648 = vmatpush1.xpose.msra.mxu0 0.0
        %2649 = vmatprep.subr.mxu0 0.0
        %2650 = vmatpush1.xpose.msra.mxu0 0.0
        %2651 = vmatprep.subr.mxu0 0.0
        %2652 = vmatpush1.xpose.msra.mxu0 0.0
        %2653 = vmatprep.subr.mxu0 0.0
        %2654 = vmatpush1.xpose.msra.mxu0 0.0
        %2655 = vmatprep.subr.mxu0 0.0
        %2656 = vmatpush1.xpose.msra.mxu0 0.0
        %2657 = vmatprep.subr.mxu0 0.0
        %2658 = vmatpush1.xpose.msra.mxu0 0.0
        %2659 = vmatprep.subr.mxu0 0.0
        %2660 = vmatpush1.xpose.msra.mxu0 0.0
        %2661 = vmatprep.subr.mxu0 0.0
        %2662 = vmatpush1.xpose.msra.mxu0 0.0
        %2663 = vmatprep.subr.mxu0 0.0
        %2664 = vmatpush1.xpose.msra.mxu0 0.0
        %2665 = vmatprep.subr.mxu0 0.0
        %2666 = vmatpush1.xpose.msra.mxu0 0.0
        %2667 = vmatprep.subr.mxu0 0.0
        %2668 = vmatpush1.xpose.msra.mxu0 0.0
        %2669 = vmatprep.subr.mxu0 0.0
        %2670 = vmatpush1.xpose.msra.mxu0 0.0
        %2671 = vmatprep.subr.mxu0 0.0
        %2672 = vmatpush1.xpose.msra.mxu0 0.0
        %2673 = vmatprep.subr.mxu0 0.0
        %2674 = vmatpush1.xpose.msra.mxu0 0.0
        %2675 = vmatprep.subr.mxu0 0.0
        %2676 = vmatpush1.xpose.msra.mxu0 0.0
        %2677 = vmatprep.subr.mxu0 0.0
        %2678 = vmatpush1.xpose.msra.mxu0 0.0
        %2679 = vmatprep.subr.mxu0 0.0
        %2680 = vmatpush1.xpose.msra.mxu0 0.0
        %2681 = vmatprep.subr.mxu0 0.0
        %2682 = vmatpush1.xpose.msra.mxu0 0.0
        %2683 = vmatprep.subr.mxu0 0.0
        %2684 = vmatpush1.xpose.msra.mxu0 0.0
        %2685 = vmatprep.mubr.f32.mxu0 0.0
        %2686 = vmatmul.mubr.f32.gmra.mrb[0].mxu0 %v2617
        %v2687 = vpop.f32.mrb[0].mxu0
        %v2688 = vadd.f32 0.0, %v2687
        %v2689 = vpop.f32.mrb[0].mxu0
        %2690 = vdwg.mxu0
        %v2691 = vsel %vm393, %v2454, -inf
        %2692 = vmax.xlane.f32.xlu0 %v2691
        %v2693 = vpop.xlane.xlu0 %2692
        %v2694 = vsel %vm393, %v2532, -inf
        %2695 = vmax.xlane.f32.xlu0 %v2694
        %v2696 = vpop.xlane.xlu0 %2695
        %v2697 = vsel %vm393, %v2610, -inf
        %2698 = vmax.xlane.f32.xlu0 %v2697
        %v2699 = vpop.xlane.xlu0 %2698
        %v2700 = vsel %vm393, %v2688, -inf
        %2701 = vmax.xlane.f32.xlu0 %v2700
        %v2702 = vpop.xlane.xlu0 %2701
        %v2703 = vsub.f32 %v2454, %v2693
        %v2704 = vsub.f32 %v2532, %v2696
        %v2705 = vsub.f32 %v2610, %v2699
        %v2706 = vsub.f32 %v2688, %v2702
        %v2707 = vmul.f32 %v2703, 1.442695
        %v2708 = vpow.pop %v2707
        %v2709 = vmul.f32 %v2704, 1.442695
        %v2710 = vpow.pop %v2709
        %v2711 = vmul.f32 %v2705, 1.442695
        %v2712 = vpow.pop %v2711
        %v2713 = vmul.f32 %v2706, 1.442695
        %v2714 = vpow.pop %v2713
        %v2715 = vsel %vm393, %v2708, 0.0
        %2716 = vadd.xlane.f32.xlu0 %v2715
        %v2717 = vpop.xlane.xlu0 %2716
        %v2718 = vsel %vm393, %v2710, 0.0
        %2719 = vadd.xlane.f32.xlu0 %v2718
        %v2720 = vpop.xlane.xlu0 %2719
        %v2721 = vsel %vm393, %v2712, 0.0
        %2722 = vadd.xlane.f32.xlu0 %v2721
        %v2723 = vpop.xlane.xlu0 %2722
        %v2724 = vsel %vm393, %v2714, 0.0
        %2725 = vadd.xlane.f32.xlu0 %v2724
        %v2726 = vpop.xlane.xlu0 %2725
        %2727 = vrot.lane.b32.xlu0 %v367, 40
        %v2728 = vpop.permute.xlu0 %2727
        %v2731 = vsel %vm393, %v2708, 0
        %2733 = vmatprep.subr.mxu0 0.0
        %2734 = vmatpush1.msra.mxu0 %v2728
        %2735 = vmatprep.subr.mxu0 0.0
        %2736 = vmatpush1.msra.mxu0 0.0
        %2737 = vmatprep.subr.mxu0 0.0
        %2738 = vmatpush1.msra.mxu0 0.0
        %2739 = vmatprep.subr.mxu0 0.0
        %2740 = vmatpush1.msra.mxu0 0.0
        %2741 = vmatprep.subr.mxu0 0.0
        %2742 = vmatpush1.msra.mxu0 0.0
        %2743 = vmatprep.subr.mxu0 0.0
        %2744 = vmatpush1.msra.mxu0 0.0
        %2745 = vmatprep.subr.mxu0 0.0
        %2746 = vmatpush1.msra.mxu0 0.0
        %2747 = vmatprep.subr.mxu0 0.0
        %2748 = vmatpush1.msra.mxu0 0.0
        %2749 = vmatprep.subr.mxu0 0.0
        %2750 = vmatpush1.msra.mxu0 0.0
        %2751 = vmatprep.subr.mxu0 0.0
        %2752 = vmatpush1.msra.mxu0 0.0
        %2753 = vmatprep.subr.mxu0 0.0
        %2754 = vmatpush1.msra.mxu0 0.0
        %2755 = vmatprep.subr.mxu0 0.0
        %2756 = vmatpush1.msra.mxu0 0.0
        %2757 = vmatprep.subr.mxu0 0.0
        %2758 = vmatpush1.msra.mxu0 0.0
        %2759 = vmatprep.subr.mxu0 0.0
        %2760 = vmatpush1.msra.mxu0 0.0
        %2761 = vmatprep.subr.mxu0 0.0
        %2762 = vmatpush1.msra.mxu0 0.0
        %2763 = vmatprep.subr.mxu0 0.0
        %2764 = vmatpush1.msra.mxu0 0.0
        %2765 = vmatprep.subr.mxu0 0.0
        %2766 = vmatpush1.msra.mxu0 0.0
        %2767 = vmatprep.subr.mxu0 0.0
        %2768 = vmatpush1.msra.mxu0 0.0
        %2769 = vmatprep.subr.mxu0 0.0
        %2770 = vmatpush1.msra.mxu0 0.0
        %2771 = vmatprep.subr.mxu0 0.0
        %2772 = vmatpush1.msra.mxu0 0.0
        %2773 = vmatprep.subr.mxu0 0.0
        %2774 = vmatpush1.msra.mxu0 0.0
        %2775 = vmatprep.subr.mxu0 0.0
        %2776 = vmatpush1.msra.mxu0 0.0
        %2777 = vmatprep.subr.mxu0 0.0
        %2778 = vmatpush1.msra.mxu0 0.0
        %2779 = vmatprep.subr.mxu0 0.0
        %2780 = vmatpush1.msra.mxu0 0.0
        %2781 = vmatprep.subr.mxu0 0.0
        %2782 = vmatpush1.msra.mxu0 0.0
        %2783 = vmatprep.subr.mxu0 0.0
        %2784 = vmatpush1.msra.mxu0 0.0
        %2785 = vmatprep.subr.mxu0 0.0
        %2786 = vmatpush1.msra.mxu0 0.0
        %2787 = vmatprep.subr.mxu0 0.0
        %2788 = vmatpush1.msra.mxu0 0.0
        %2789 = vmatprep.subr.mxu0 0.0
        %2790 = vmatpush1.msra.mxu0 0.0
        %2791 = vmatprep.subr.mxu0 0.0
        %2792 = vmatpush1.msra.mxu0 0.0
        %2793 = vmatprep.subr.mxu0 0.0
        %2794 = vmatpush1.msra.mxu0 0.0
        %2795 = vmatprep.subr.mxu0 0.0
        %2796 = vmatpush1.msra.mxu0 0.0
        %2797 = vmatprep.mubr.f32.mxu0 0.0
        %2798 = vmatmul.mubr.f32.gmra.mrb[0].mxu0 %v2731
        %v2799 = vpop.f32.mrb[0].mxu0
        %v2800 = vadd.f32 0.0, %v2799
        %v2801 = vpop.f32.mrb[0].mxu0
        %2802 = vdwg.mxu0
        %2803 = vrot.lane.b32.xlu0 %v372, 40
        %v2804 = vpop.permute.xlu0 %2803
        %v2807 = vsel %vm393, %v2710, 0
        %2809 = vmatprep.subr.mxu0 0.0
        %2810 = vmatpush1.msra.mxu0 %v2804
        %2811 = vmatprep.subr.mxu0 0.0
        %2812 = vmatpush1.msra.mxu0 0.0
        %2813 = vmatprep.subr.mxu0 0.0
        %2814 = vmatpush1.msra.mxu0 0.0
        %2815 = vmatprep.subr.mxu0 0.0
        %2816 = vmatpush1.msra.mxu0 0.0
        %2817 = vmatprep.subr.mxu0 0.0
        %2818 = vmatpush1.msra.mxu0 0.0
        %2819 = vmatprep.subr.mxu0 0.0
        %2820 = vmatpush1.msra.mxu0 0.0
        %2821 = vmatprep.subr.mxu0 0.0
        %2822 = vmatpush1.msra.mxu0 0.0
        %2823 = vmatprep.subr.mxu0 0.0
        %2824 = vmatpush1.msra.mxu0 0.0
        %2825 = vmatprep.subr.mxu0 0.0
        %2826 = vmatpush1.msra.mxu0 0.0
        %2827 = vmatprep.subr.mxu0 0.0
        %2828 = vmatpush1.msra.mxu0 0.0
        %2829 = vmatprep.subr.mxu0 0.0
        %2830 = vmatpush1.msra.mxu0 0.0
        %2831 = vmatprep.subr.mxu0 0.0
        %2832 = vmatpush1.msra.mxu0 0.0
        %2833 = vmatprep.subr.mxu0 0.0
        %2834 = vmatpush1.msra.mxu0 0.0
        %2835 = vmatprep.subr.mxu0 0.0
        %2836 = vmatpush1.msra.mxu0 0.0
        %2837 = vmatprep.subr.mxu0 0.0
        %2838 = vmatpush1.msra.mxu0 0.0
        %2839 = vmatprep.subr.mxu0 0.0
        %2840 = vmatpush1.msra.mxu0 0.0
        %2841 = vmatprep.subr.mxu0 0.0
        %2842 = vmatpush1.msra.mxu0 0.0
        %2843 = vmatprep.subr.mxu0 0.0
        %2844 = vmatpush1.msra.mxu0 0.0
        %2845 = vmatprep.subr.mxu0 0.0
        %2846 = vmatpush1.msra.mxu0 0.0
        %2847 = vmatprep.subr.mxu0 0.0
        %2848 = vmatpush1.msra.mxu0 0.0
        %2849 = vmatprep.subr.mxu0 0.0
        %2850 = vmatpush1.msra.mxu0 0.0
        %2851 = vmatprep.subr.mxu0 0.0
        %2852 = vmatpush1.msra.mxu0 0.0
        %2853 = vmatprep.subr.mxu0 0.0
        %2854 = vmatpush1.msra.mxu0 0.0
        %2855 = vmatprep.subr.mxu0 0.0
        %2856 = vmatpush1.msra.mxu0 0.0
        %2857 = vmatprep.subr.mxu0 0.0
        %2858 = vmatpush1.msra.mxu0 0.0
        %2859 = vmatprep.subr.mxu0 0.0
        %2860 = vmatpush1.msra.mxu0 0.0
        %2861 = vmatprep.subr.mxu0 0.0
        %2862 = vmatpush1.msra.mxu0 0.0
        %2863 = vmatprep.subr.mxu0 0.0
        %2864 = vmatpush1.msra.mxu0 0.0
        %2865 = vmatprep.subr.mxu0 0.0
        %2866 = vmatpush1.msra.mxu0 0.0
        %2867 = vmatprep.subr.mxu0 0.0
        %2868 = vmatpush1.msra.mxu0 0.0
        %2869 = vmatprep.subr.mxu0 0.0
        %2870 = vmatpush1.msra.mxu0 0.0
        %2871 = vmatprep.subr.mxu0 0.0
        %2872 = vmatpush1.msra.mxu0 0.0
        %2873 = vmatprep.mubr.f32.mxu0 0.0
        %2874 = vmatmul.mubr.f32.gmra.mrb[0].mxu0 %v2807
        %v2875 = vpop.f32.mrb[0].mxu0
        %v2876 = vadd.f32 0.0, %v2875
        %v2877 = vpop.f32.mrb[0].mxu0
        %2878 = vdwg.mxu0
        %2879 = vrot.lane.b32.xlu0 %v377, 40
        %v2880 = vpop.permute.xlu0 %2879
        %v2883 = vsel %vm393, %v2712, 0
        %2885 = vmatprep.subr.mxu0 0.0
        %2886 = vmatpush1.msra.mxu0 %v2880
        %2887 = vmatprep.subr.mxu0 0.0
        %2888 = vmatpush1.msra.mxu0 0.0
        %2889 = vmatprep.subr.mxu0 0.0
        %2890 = vmatpush1.msra.mxu0 0.0
        %2891 = vmatprep.subr.mxu0 0.0
        %2892 = vmatpush1.msra.mxu0 0.0
        %2893 = vmatprep.subr.mxu0 0.0
        %2894 = vmatpush1.msra.mxu0 0.0
        %2895 = vmatprep.subr.mxu0 0.0
        %2896 = vmatpush1.msra.mxu0 0.0
        %2897 = vmatprep.subr.mxu0 0.0
        %2898 = vmatpush1.msra.mxu0 0.0
        %2899 = vmatprep.subr.mxu0 0.0
        %2900 = vmatpush1.msra.mxu0 0.0
        %2901 = vmatprep.subr.mxu0 0.0
        %2902 = vmatpush1.msra.mxu0 0.0
        %2903 = vmatprep.subr.mxu0 0.0
        %2904 = vmatpush1.msra.mxu0 0.0
        %2905 = vmatprep.subr.mxu0 0.0
        %2906 = vmatpush1.msra.mxu0 0.0
        %2907 = vmatprep.subr.mxu0 0.0
        %2908 = vmatpush1.msra.mxu0 0.0
        %2909 = vmatprep.subr.mxu0 0.0
        %2910 = vmatpush1.msra.mxu0 0.0
        %2911 = vmatprep.subr.mxu0 0.0
        %2912 = vmatpush1.msra.mxu0 0.0
        %2913 = vmatprep.subr.mxu0 0.0
        %2914 = vmatpush1.msra.mxu0 0.0
        %2915 = vmatprep.subr.mxu0 0.0
        %2916 = vmatpush1.msra.mxu0 0.0
        %2917 = vmatprep.subr.mxu0 0.0
        %2918 = vmatpush1.msra.mxu0 0.0
        %2919 = vmatprep.subr.mxu0 0.0
        %2920 = vmatpush1.msra.mxu0 0.0
        %2921 = vmatprep.subr.mxu0 0.0
        %2922 = vmatpush1.msra.mxu0 0.0
        %2923 = vmatprep.subr.mxu0 0.0
        %2924 = vmatpush1.msra.mxu0 0.0
        %2925 = vmatprep.subr.mxu0 0.0
        %2926 = vmatpush1.msra.mxu0 0.0
        %2927 = vmatprep.subr.mxu0 0.0
        %2928 = vmatpush1.msra.mxu0 0.0
        %2929 = vmatprep.subr.mxu0 0.0
        %2930 = vmatpush1.msra.mxu0 0.0
        %2931 = vmatprep.subr.mxu0 0.0
        %2932 = vmatpush1.msra.mxu0 0.0
        %2933 = vmatprep.subr.mxu0 0.0
        %2934 = vmatpush1.msra.mxu0 0.0
        %2935 = vmatprep.subr.mxu0 0.0
        %2936 = vmatpush1.msra.mxu0 0.0
        %2937 = vmatprep.subr.mxu0 0.0
        %2938 = vmatpush1.msra.mxu0 0.0
        %2939 = vmatprep.subr.mxu0 0.0
        %2940 = vmatpush1.msra.mxu0 0.0
        %2941 = vmatprep.subr.mxu0 0.0
        %2942 = vmatpush1.msra.mxu0 0.0
        %2943 = vmatprep.subr.mxu0 0.0
        %2944 = vmatpush1.msra.mxu0 0.0
        %2945 = vmatprep.subr.mxu0 0.0
        %2946 = vmatpush1.msra.mxu0 0.0
        %2947 = vmatprep.subr.mxu0 0.0
        %2948 = vmatpush1.msra.mxu0 0.0
        %2949 = vmatprep.mubr.f32.mxu0 0.0
        %2950 = vmatmul.mubr.f32.gmra.mrb[0].mxu0 %v2883
        %v2951 = vpop.f32.mrb[0].mxu0
        %v2952 = vadd.f32 0.0, %v2951
        %v2953 = vpop.f32.mrb[0].mxu0
        %2954 = vdwg.mxu0
        %2955 = vrot.lane.b32.xlu0 %v382, 40
        %v2956 = vpop.permute.xlu0 %2955
        %v2959 = vsel %vm393, %v2714, 0
        %2961 = vmatprep.subr.mxu0 0.0
        %2962 = vmatpush1.msra.mxu0 %v2956
        %2963 = vmatprep.subr.mxu0 0.0
        %2964 = vmatpush1.msra.mxu0 0.0
        %2965 = vmatprep.subr.mxu0 0.0
        %2966 = vmatpush1.msra.mxu0 0.0
        %2967 = vmatprep.subr.mxu0 0.0
        %2968 = vmatpush1.msra.mxu0 0.0
        %2969 = vmatprep.subr.mxu0 0.0
        %2970 = vmatpush1.msra.mxu0 0.0
        %2971 = vmatprep.subr.mxu0 0.0
        %2972 = vmatpush1.msra.mxu0 0.0
        %2973 = vmatprep.subr.mxu0 0.0
        %2974 = vmatpush1.msra.mxu0 0.0
        %2975 = vmatprep.subr.mxu0 0.0
        %2976 = vmatpush1.msra.mxu0 0.0
        %2977 = vmatprep.subr.mxu0 0.0
        %2978 = vmatpush1.msra.mxu0 0.0
        %2979 = vmatprep.subr.mxu0 0.0
        %2980 = vmatpush1.msra.mxu0 0.0
        %2981 = vmatprep.subr.mxu0 0.0
        %2982 = vmatpush1.msra.mxu0 0.0
        %2983 = vmatprep.subr.mxu0 0.0
        %2984 = vmatpush1.msra.mxu0 0.0
        %2985 = vmatprep.subr.mxu0 0.0
        %2986 = vmatpush1.msra.mxu0 0.0
        %2987 = vmatprep.subr.mxu0 0.0
        %2988 = vmatpush1.msra.mxu0 0.0
        %2989 = vmatprep.subr.mxu0 0.0
        %2990 = vmatpush1.msra.mxu0 0.0
        %2991 = vmatprep.subr.mxu0 0.0
        %2992 = vmatpush1.msra.mxu0 0.0
        %2993 = vmatprep.subr.mxu0 0.0
        %2994 = vmatpush1.msra.mxu0 0.0
        %2995 = vmatprep.subr.mxu0 0.0
        %2996 = vmatpush1.msra.mxu0 0.0
        %2997 = vmatprep.subr.mxu0 0.0
        %2998 = vmatpush1.msra.mxu0 0.0
        %2999 = vmatprep.subr.mxu0 0.0
        %3000 = vmatpush1.msra.mxu0 0.0
        %3001 = vmatprep.subr.mxu0 0.0
        %3002 = vmatpush1.msra.mxu0 0.0
        %3003 = vmatprep.subr.mxu0 0.0
        %3004 = vmatpush1.msra.mxu0 0.0
        %3005 = vmatprep.subr.mxu0 0.0
        %3006 = vmatpush1.msra.mxu0 0.0
        %3007 = vmatprep.subr.mxu0 0.0
        %3008 = vmatpush1.msra.mxu0 0.0
        %3009 = vmatprep.subr.mxu0 0.0
        %3010 = vmatpush1.msra.mxu0 0.0
        %3011 = vmatprep.subr.mxu0 0.0
        %3012 = vmatpush1.msra.mxu0 0.0
        %3013 = vmatprep.subr.mxu0 0.0
        %3014 = vmatpush1.msra.mxu0 0.0
        %3015 = vmatprep.subr.mxu0 0.0
        %3016 = vmatpush1.msra.mxu0 0.0
        %3017 = vmatprep.subr.mxu0 0.0
        %3018 = vmatpush1.msra.mxu0 0.0
        %3019 = vmatprep.subr.mxu0 0.0
        %3020 = vmatpush1.msra.mxu0 0.0
        %3021 = vmatprep.subr.mxu0 0.0
        %3022 = vmatpush1.msra.mxu0 0.0
        %3023 = vmatprep.subr.mxu0 0.0
        %3024 = vmatpush1.msra.mxu0 0.0
        %3025 = vmatprep.mubr.f32.mxu0 0.0
        %3026 = vmatmul.mubr.f32.gmra.mrb[0].mxu0 %v2959
        %v3027 = vpop.f32.mrb[0].mxu0
        %v3028 = vadd.f32 0.0, %v3027
        %v3029 = vpop.f32.mrb[0].mxu0
        %3030 = vdwg.mxu0
        %v3031 = vrcp.pop %v2717
        %v3032 = vmul.f32 1.0, %v3031
        %v3033 = vrcp.pop %v2720
        %v3034 = vmul.f32 1.0, %v3033
        %v3035 = vrcp.pop %v2723
        %v3036 = vmul.f32 1.0, %v3035
        %v3037 = vrcp.pop %v2726
        %v3038 = vmul.f32 1.0, %v3037
        %v3039 = vmul.f32 %v2800, %v3032
        %v3040 = vmul.f32 %v2876, %v3034
        %v3041 = vmul.f32 %v2952, %v3036
        %v3042 = vmul.f32 %v3028, %v3038
        %3047 = vrot.lane.b32.xlu0 %v1711, 8
        %v3048 = vpop.permute.xlu0 %3047
        %3049 = vrot.lane.b32.xlu0 %v1712, 8
        %v3050 = vpop.permute.xlu0 %3049
        %3051 = vrot.lane.b32.xlu0 %v1713, 8
        %v3052 = vpop.permute.xlu0 %3051
        %3053 = vrot.lane.b32.xlu0 %v1714, 8
        %v3054 = vpop.permute.xlu0 %3053
        %3063 = vrot.lane.b32.xlu0 %v2375, 16
        %v3064 = vpop.permute.xlu0 %3063
        %3065 = vrot.lane.b32.xlu0 %v2376, 16
        %v3066 = vpop.permute.xlu0 %3065
        %3067 = vrot.lane.b32.xlu0 %v2377, 16
        %v3068 = vpop.permute.xlu0 %3067
        %3069 = vrot.lane.b32.xlu0 %v2378, 16
        %v3070 = vpop.permute.xlu0 %3069
        %3079 = vrot.lane.b32.xlu0 %v3039, 24
        %v3080 = vpop.permute.xlu0 %3079
        %3081 = vrot.lane.b32.xlu0 %v3040, 24
        %v3082 = vpop.permute.xlu0 %3081
        %3083 = vrot.lane.b32.xlu0 %v3041, 24
        %v3084 = vpop.permute.xlu0 %3083
        %3085 = vrot.lane.b32.xlu0 %v3042, 24
        %v3086 = vpop.permute.xlu0 %3085
        %v3091 = vsel %vm393, %v1047, %v3048
        %v3092 = vsel %vm393, %v1048, %v3050
        %v3093 = vsel %vm393, %v1049, %v3052
        %v3094 = vsel %vm393, %v1050, %v3054
        %vm3095 = vcmask 130048
        %v3096 = vsel %vm3095, %v3091, %v3064
        %v3097 = vsel %vm3095, %v3092, %v3066
        %v3098 = vsel %vm3095, %v3093, %v3068
        %v3099 = vsel %vm3095, %v3094, %v3070
        %vm3100 = vcmask 195584
        %v3101 = vsel %vm3100, %v3096, %v3080
        %v3102 = vsel %vm3100, %v3097, %v3082
        %v3103 = vsel %vm3100, %v3098, %v3084
        %v3104 = vsel %vm3100, %v3099, %v3086
        %v3106 = vlaneseq
        %v3107 = vshrl.u32 %v3106, 7
        %v3108 = vsub.s32 0, %v3107
        %v3109 = vrot.slane %v389, %v3108
        %v3112 = vsel %vm287, %v3101, 0
        %v3115 = vsel %vm287, %v3102, 0
        %v3118 = vsel %vm287, %v3103, 0
        %v3121 = vsel %vm287, %v3104, 0
        %3123 = vmatprep.subr.mxu0 0.0
        %3124 = vmatpush1.msra.mxu0 %v385
        %3125 = vmatprep.subr.mxu0 0.0
        %3126 = vmatpush1.msra.mxu0 %v386
        %3127 = vmatprep.subr.mxu0 0.0
        %3128 = vmatpush1.msra.mxu0 %v387
        %3129 = vmatprep.subr.mxu0 0.0
        %3130 = vmatpush1.msra.mxu0 %v388
        %3131 = vmatprep.subr.mxu0 0.0
        %3132 = vmatpush1.msra.mxu0 0.0
        %3133 = vmatprep.subr.mxu0 0.0
        %3134 = vmatpush1.msra.mxu0 0.0
        %3135 = vmatprep.subr.mxu0 0.0
        %3136 = vmatpush1.msra.mxu0 0.0
        %3137 = vmatprep.subr.mxu0 0.0
        %3138 = vmatpush1.msra.mxu0 0.0
        %3139 = vmatprep.subr.mxu0 0.0
        %3140 = vmatpush1.msra.mxu0 0.0
        %3141 = vmatprep.subr.mxu0 0.0
        %3142 = vmatpush1.msra.mxu0 0.0
        %3143 = vmatprep.subr.mxu0 0.0
        %3144 = vmatpush1.msra.mxu0 0.0
        %3145 = vmatprep.subr.mxu0 0.0
        %3146 = vmatpush1.msra.mxu0 0.0
        %3147 = vmatprep.subr.mxu0 0.0
        %3148 = vmatpush1.msra.mxu0 0.0
        %3149 = vmatprep.subr.mxu0 0.0
        %3150 = vmatpush1.msra.mxu0 0.0
        %3151 = vmatprep.subr.mxu0 0.0
        %3152 = vmatpush1.msra.mxu0 0.0
        %3153 = vmatprep.subr.mxu0 0.0
        %3154 = vmatpush1.msra.mxu0 0.0
        %3155 = vmatprep.subr.mxu0 0.0
        %3156 = vmatpush1.msra.mxu0 0.0
        %3157 = vmatprep.subr.mxu0 0.0
        %3158 = vmatpush1.msra.mxu0 0.0
        %3159 = vmatprep.subr.mxu0 0.0
        %3160 = vmatpush1.msra.mxu0 0.0
        %3161 = vmatprep.subr.mxu0 0.0
        %3162 = vmatpush1.msra.mxu0 0.0
        %3163 = vmatprep.subr.mxu0 0.0
        %3164 = vmatpush1.msra.mxu0 0.0
        %3165 = vmatprep.subr.mxu0 0.0
        %3166 = vmatpush1.msra.mxu0 0.0
        %3167 = vmatprep.subr.mxu0 0.0
        %3168 = vmatpush1.msra.mxu0 0.0
        %3169 = vmatprep.subr.mxu0 0.0
        %3170 = vmatpush1.msra.mxu0 0.0
        %3171 = vmatprep.subr.mxu0 0.0
        %3172 = vmatpush1.msra.mxu0 0.0
        %3173 = vmatprep.subr.mxu0 0.0
        %3174 = vmatpush1.msra.mxu0 0.0
        %3175 = vmatprep.subr.mxu0 0.0
        %3176 = vmatpush1.msra.mxu0 0.0
        %3177 = vmatprep.subr.mxu0 0.0
        %3178 = vmatpush1.msra.mxu0 0.0
        %3179 = vmatprep.subr.mxu0 0.0
        %3180 = vmatpush1.msra.mxu0 0.0
        %3181 = vmatprep.subr.mxu0 0.0
        %3182 = vmatpush1.msra.mxu0 0.0
        %3183 = vmatprep.subr.mxu0 0.0
        %3184 = vmatpush1.msra.mxu0 0.0
        %3185 = vmatprep.subr.mxu0 0.0
        %3186 = vmatpush1.msra.mxu0 0.0
        %3187 = vmatprep.mubr.f32.mxu0 0.0
        %3188 = vmatmul.mubr.f32.gmra.mrb[0].mxu0 %v3112
        %v3189 = vpop.f32.mrb[0].mxu0
        %v3190 = vadd.f32 %v3109, %v3189
        %v3191 = vpop.f32.mrb[0].mxu0
        %3192 = vmatprep.mubr.f32.mxu0 0.0
        %3193 = vmatmul.mubr.f32.gmra.mrb[0].mxu0 %v3115
        %v3194 = vpop.f32.mrb[0].mxu0
        %v3195 = vadd.f32 %v3109, %v3194
        %v3196 = vpop.f32.mrb[0].mxu0
        %3197 = vmatprep.mubr.f32.mxu0 0.0
        %3198 = vmatmul.mubr.f32.gmra.mrb[0].mxu0 %v3118
        %v3199 = vpop.f32.mrb[0].mxu0
        %v3200 = vadd.f32 %v3109, %v3199
        %v3201 = vpop.f32.mrb[0].mxu0
        %3202 = vmatprep.mubr.f32.mxu0 0.0
        %3203 = vmatmul.mubr.f32.gmra.mrb[0].mxu0 %v3121
        %v3204 = vpop.f32.mrb[0].mxu0
        %v3205 = vadd.f32 %v3109, %v3204
        %v3206 = vpop.f32.mrb[0].mxu0
        %3207 = vdwg.mxu0
        %3208 = vst.msk [vmem:[%s271] sm:$0xff] %vm287, %v3190
        %3209 = vst.msk [vmem:[%s271 + $0x8] sm:$0xff] %vm287, %v3195
        %3210 = vst.msk [vmem:[%s271 + $0x10] sm:$0xff] %vm287, %v3200
        %3211 = vst.msk [vmem:[%s271 + $0x18] sm:$0xff] %vm287, %v3205
        %s3212 = sand.u32 %s141, 1
        %s3213 = scalar_lea.sflag [#allocation4], %s3212
        %s3214 = sand.u32 %s141, 1
        %s3215 = smul.addr %s3214, 32
        %s3216 = scalar_lea.vmem [#allocation8], %s3215
        // Predicated region
        $region53: #{tpu_custom_call.1} parent=39 // pred_check
          %p3217 = pneg %p151
        $region54: #{tpu_custom_call.1} parent=39 // pred_check_branch
          %3219 = sbr.rel (%p3217) target = $region56
        $region55: #{tpu_custom_call.1} parent=39 // pred_region
          %s3221 = ssub.s32 512, 512
          %3222 = vsyncadd %s3213, %s3221
          %s3223 = smul.addr %s23, 4
          %s3224 = smul.addr %s3223, 128
          %s3225 = scalar_lea.hbm %s5, %s3224
          %s3226 = sshll.u32 %s3216, 4
          %s3227 = int_to_ptr.vmem [resolvable:$true] %s3226
          %3232 = dma.vmem_to_hbm [thread:$0]  %s3227, 512, %s3225, %s3213, 128, 128, 8
        $region56: #{tpu_custom_call.1} parent=39 // pred_fallthru
          _
      $region40: #{tpu_custom_call.1} parent=5 // pred_fallthru
        _
      %p3233 = scmp.le.s32.totalorder 2, %s18
      // Predicated region
      $region57: #{tpu_custom_call.1} parent=5 // pred_check
        %p3234 = pneg %p3233
      $region58: #{tpu_custom_call.1} parent=5 // pred_check_branch
        %3236 = sbr.rel (%p3234) target = $region60
      $region59: #{tpu_custom_call.1} parent=5 // pred_region
        %s3237 = ssub.s32 %s18, 2
        // Predicated region
        $region61: #{tpu_custom_call.1} parent=59 // pred_check
          %p3238 = pneg %p157
        $region62: #{tpu_custom_call.1} parent=59 // pred_check_branch
          %3240 = sbr.rel (%p3238) target = $region64
        $region63: #{tpu_custom_call.1} parent=59 // pred_region
          %s3241 = sand.u32 %s142, 1
          %s3242 = scalar_lea.sflag [#allocation4], %s3241
          %s3243 = sand.u32 %s142, 1
          %s3244 = smul.addr %s3243, 32
          %s3245 = scalar_lea.vmem [#allocation8], %s3244
          %3246 = dma.done %s3242, 512
        $region64: #{tpu_custom_call.1} parent=59 // pred_fallthru
          _
      $region60: #{tpu_custom_call.1} parent=5 // pred_fallthru
        _
    $region6: #{tpu_custom_call.1} parent=1 // loop_footer
      %s22 = sadd.s32 1, %s18
    $region7: #{tpu_custom_call.1} parent=1 // loop_footer_branch
      %17 = sbr.rel target = $region3
    $region8: #{tpu_custom_call.1} parent=1 // loop_exit
      _
    %3247 = vsyncpa [#allocation3], 1
    %s3248 = scalar_lea.sflag [#allocation3], 1
    %3249 = vsyncpa %s3248, 1
    %3250 = vsyncpa [#allocation6], 1
    %3251 = vsyncpa [#allocation4], 1
    %s3252 = scalar_lea.sflag [#allocation4], 1
    %3253 = vsyncpa %s3252, 1

</llo_original>
